<compile_context>
chip_gen: v7x
topology: tpu7x:2x2x1
jax: 0.10.0
libtpu: 0.0.40
codegen_flags: <defaults>
</compile_context>

<pallas_src>
import jax
import jax.numpy as jnp
from jax.experimental import pallas as pl
from jax.experimental.pallas import tpu as pltpu


# -----------------------------------------------------------------------------
# Kernel: one grid step == Gblk point groups, each of shape (N, Cin).
# -----------------------------------------------------------------------------
def encoder_kernel(x_ref,                  # (Gblk, N, Cin)  f32
                   w1_ref, b1_ref,         # (Cin, 128) f32, (1, 128) f32   [conv1+BN1 folded]
                   w2_ref, b2_ref,         # (128, 256) bf16, (1, 256) f32
                   w3g_ref, w3l_ref,       # (256, 512) bf16 each           [conv3+BN2 folded, split]
                   b3_ref,                 # (1, 512) f32
                   w4_ref, b4_ref,         # (512, ENC) bf16, (1, ENC) f32
                   out_ref):               # (1, Gblk, ENC) f32
    gblk, n, cin = x_ref.shape
    enc = out_ref.shape[-1]
    m = gblk * n

    x = x_ref[...].reshape(m, cin)                                  # (M, Cin) f32

    # conv1 (+ folded BN1): K = Cin is tiny (3) -> f32 VPU FMAs (MXU has slack).
    h = x[:, 0:1] * w1_ref[0:1, :]
    for c in range(1, cin):
        h = h + x[:, c:c + 1] * w1_ref[c:c + 1, :]
    h = jnp.maximum(h + b1_ref[...], 0.0)                           # (M, 128) f32

    # conv2: local per-point features (bf16 operands, f32 accumulation).
    f = jnp.dot(h.astype(jnp.bfloat16), w2_ref[...],
                preferred_element_type=jnp.float32) + b2_ref[...]   # (M, 256) f32

    # feature_global = per-group max over points.  The block covers the full N
    # extent, so there are no padded rows inside the reduce.
    fg = jnp.max(f.reshape(gblk, n, 256), axis=1)                   # (Gblk, 256)

    # conv3 (+ folded BN2): cat([global, local], ch) @ W3
    #   == fg @ W3[:256] (per group) + f @ W3[256:] (per point)
    hg = jnp.dot(fg.astype(jnp.bfloat16), w3g_ref[...],
                 preferred_element_type=jnp.float32)                # (Gblk, 512)
    hl = jnp.dot(f.astype(jnp.bfloat16), w3l_ref[...],
                 preferred_element_type=jnp.float32)                # (M, 512)
    h2 = hl.reshape(gblk, n, 512) + hg.reshape(gblk, 1, 512) + b3_ref[...]
    h2 = jnp.maximum(h2, 0.0)                                       # (Gblk, N, 512)

    # conv4 + final per-group global max-pool.
    o = jnp.dot(h2.reshape(m, 512).astype(jnp.bfloat16), w4_ref[...],
                preferred_element_type=jnp.float32) + b4_ref[...]   # (M, ENC)
    out_ref[0] = jnp.max(o.reshape(gblk, n, enc), axis=1)           # (Gblk, ENC)


# -----------------------------------------------------------------------------
# Wrapper
# -----------------------------------------------------------------------------
def _round_up(x, m):
    return ((x + m - 1) // m) * m


def _is_dual_tensorcore():
    """True for dual-TensorCore parts (v7x); v5e/v6e are single-TC."""
    try:
        kind = jax.devices()[0].device_kind.lower()
    except Exception:
        return False
    return "v7" in kind


def _pick_group_block(bg, n, *, target_rows=1024, dual_core=False):
    """Groups per grid step: a multiple of 8 with Gblk*N <~ target_rows."""
    gblk = max(8, ((target_rows // max(n, 1)) // 8) * 8)
    if dual_core and bg > 8:
        # Leave >= 2 grid steps so both TensorCores get work (v7x only).
        gblk = min(gblk, max(8, _round_up(-(-bg // 2), 8)))
    # Never larger than the (padded) batch of groups.
    gblk = min(gblk, _round_up(bg, 8))
    return gblk


def encoder_forward(point_groups, params, group_block=None):
    """point_groups: (B, G, N, Cin) f32  ->  (B, G, ENC) f32."""
    bs, g, n, cin = point_groups.shape
    bg = bs * g
    x = point_groups.reshape(bg, n, cin).astype(jnp.float32)

    enc = params["w4t_bf16"].shape[1]
    if group_block is None:
        gblk = _pick_group_block(bg, n, dual_core=_is_dual_tensorcore())
    else:
        gblk = group_block

    # Pad BG up to a multiple of Gblk (8-aligned).  Padded groups produce
    # garbage max-pool outputs and are sliced off below.
    bg_pad = _round_up(bg, gblk)
    if bg_pad != bg:
        x = jnp.pad(x, ((0, bg_pad - bg), (0, 0), (0, 0)))
    nblk = bg_pad // gblk

    # Constant index_map -> each weight/bias tile is DMA'd into VMEM once and
    # reused across all grid steps (no per-step re-fetch).
    const = lambda *blk: pl.BlockSpec(blk, lambda i, _nd=len(blk): (0,) * _nd)

    out = pl.pallas_call(
        encoder_kernel,
        out_shape=jax.ShapeDtypeStruct((nblk, gblk, enc), jnp.float32),
        grid=(nblk,),
        in_specs=[
            pl.BlockSpec((gblk, n, cin), lambda i: (i, 0, 0)),
            const(cin, 128), const(1, 128),
            const(128, 256), const(1, 256),
            const(256, 512), const(256, 512), const(1, 512),
            const(512, enc), const(1, enc),
        ],
        out_specs=pl.BlockSpec((1, gblk, enc), lambda i: (i, 0, 0)),
        compiler_params=pltpu.CompilerParams(
            dimension_semantics=("parallel",),
            # ~<= 12 MiB peak at M=1024 (activations + weights + I/O buffers);
            # 32 MiB is within the scoped ceiling on v5e/v6e/v7x alike.
            vmem_limit_bytes=32 * 1024 * 1024),
    )(x,
      params["w1t"], params["b1"],
      params["w2t_bf16"], params["b2"],
      params["w3t_top_bf16"], params["w3t_bot_bf16"], params["b3"],
      params["w4t_bf16"], params["b4"])

    return out.reshape(bg_pad, enc)[:bg].reshape(bs, g, enc)


# -----------------------------------------------------------------------------
# Parameter construction (deterministic, synthetic) + BN folding
# -----------------------------------------------------------------------------
def fold_bn(w, b, gamma, beta, mean, var, eps=1e-5):
    # y = gamma * (Wx + b - mean) / sqrt(var + eps) + beta
    scale = gamma / jnp.sqrt(var + eps)
    return w * scale[:, None], (b - mean) * scale + beta


def make_params(key, in_channel, encoder_channel):
    ks = jax.random.split(key, 16)
    rnd = lambda k, shape, s=0.05: (s * jax.random.normal(k, shape)).astype(jnp.float32)

    # first_conv
    w1 = rnd(ks[0], (128, in_channel));  b1 = rnd(ks[1], (128,))
    g1 = 1.0 + rnd(ks[2], (128,));       be1 = rnd(ks[3], (128,))
    m1 = rnd(ks[4], (128,));             v1 = 1.0 + jnp.abs(rnd(ks[5], (128,)))
    w2 = rnd(ks[6], (256, 128));         b2 = rnd(ks[7], (256,))

    # second_conv
    w3 = rnd(ks[8], (512, 512));         b3 = rnd(ks[9], (512,))
    g2 = 1.0 + rnd(ks[10], (512,));      be2 = rnd(ks[11], (512,))
    m2 = rnd(ks[12], (512,));            v2 = 1.0 + jnp.abs(rnd(ks[13], (512,)))
    w4 = rnd(ks[14], (encoder_channel, 512))
    b4 = rnd(ks[15], (encoder_channel,))

    w1f, b1f = fold_bn(w1, b1, g1, be1, m1, v1)
    w3f, b3f = fold_bn(w3, b3, g2, be2, m2, v2)

    w2t = w2.T                                       # (128, 256)
    w3t = w3f.T                                      # (512_in, 512_out)
    w4t = w4.T                                       # (512, ENC)
    return {
        # conv1 stays f32 (VPU FMAs, tiny weights)
        "w1t": w1f.T.astype(jnp.float32), "b1": b1f.reshape(1, -1),
        # full-precision copies (for the f32 reference check)
        "w2t": w2t, "w3t": w3t, "w4t": w4t,
        # MXU weights in bf16, biases in f32
        "w2t_bf16": w2t.astype(jnp.bfloat16), "b2": b2.reshape(1, -1),
        "w3t_top_bf16": w3t[0:256, :].astype(jnp.bfloat16),   # global-feature half
        "w3t_bot_bf16": w3t[256:512, :].astype(jnp.bfloat16), # local-feature half
        "b3": b3f.reshape(1, -1),
        "w4t_bf16": w4t.astype(jnp.bfloat16), "b4": b4.reshape(1, -1),
    }


# Pure-JAX reference using the original concat formulation.  With
# use_bf16=True it mirrors the kernel's dtype strategy exactly; with
# use_bf16=False it is a full-f32 reference of the (BN-folded) module.
def encoder_reference(point_groups, params, use_bf16=True):
    bs, g, n, c = point_groups.shape
    x = point_groups.reshape(bs * g, n, c).astype(jnp.float32)
    if use_bf16:
        cast = lambda a: a.astype(jnp.bfloat16)
        w2 = params["w2t_bf16"]
        w3 = jnp.concatenate([params["w3t_top_bf16"], params["w3t_bot_bf16"]], axis=0)
        w4 = params["w4t_bf16"]
    else:
        cast = lambda a: a
        w2, w3, w4 = params["w2t"], params["w3t"], params["w4t"]

    h = jnp.maximum(jnp.einsum("bnc,co->bno", x, params["w1t"]) + params["b1"], 0.0)
    f = jnp.einsum("bnc,co->bno", cast(h), w2,
                   preferred_element_type=jnp.float32) + params["b2"]
    fg = jnp.max(f, axis=1, keepdims=True)
    cat = jnp.concatenate([jnp.broadcast_to(fg, f.shape), f], axis=-1)
    h2 = jnp.maximum(
        jnp.einsum("bnc,co->bno", cast(cat), w3,
                   preferred_element_type=jnp.float32) + params["b3"], 0.0)
    o = jnp.einsum("bnc,co->bno", cast(h2), w4,
                   preferred_element_type=jnp.float32) + params["b4"]
    return jnp.max(o, axis=1).reshape(bs, g, -1)


if __name__ == "__main__":
    IN_CHANNEL = 3
    ENCODER_CHANNEL = 256
    N = 32

    key = jax.random.PRNGKey(0)
    k_params, k_x1, k_x2 = jax.random.split(key, 3)
    params = make_params(k_params, IN_CHANNEL, ENCODER_CHANNEL)

    # Case 1: BG = 8 (already 8-aligned; no padding path).
    B, G = 2, 4
    x1 = jax.random.normal(k_x1, (B, G, N, IN_CHANNEL), dtype=jnp.float32)
    out1 = jax.block_until_ready(encoder_forward(x1, params))
    assert out1.shape == (B, G, ENCODER_CHANNEL), out1.shape

    ref1_bf16 = encoder_reference(x1, params, use_bf16=True)
    err_bf16 = float(jnp.max(jnp.abs(out1 - ref1_bf16)))
    assert jnp.allclose(out1, ref1_bf16, atol=1e-2, rtol=1e-2), err_bf16

    # Validate once against a full-f32 reference (bf16 MXU operands deviate
    # from the f32 PyTorch module; generous-but-meaningful tolerance).
    ref1_f32 = encoder_reference(x1, params, use_bf16=False)
    err_f32 = float(jnp.max(jnp.abs(out1 - ref1_f32)))
    assert jnp.allclose(out1, ref1_f32, atol=5e-2, rtol=5e-2), err_f32

    # Case 2: BG = 10 (not a multiple of 8) -> exercises pad + slice-off path.
    B2, G2 = 2, 5
    x2 = jax.random.normal(k_x2, (B2, G2, N, IN_CHANNEL), dtype=jnp.float32)
    out2 = jax.block_until_ready(encoder_forward(x2, params))
    assert out2.shape == (B2, G2, ENCODER_CHANNEL), out2.shape
    ref2 = encoder_reference(x2, params, use_bf16=True)
    err2 = float(jnp.max(jnp.abs(out2 - ref2)))
    assert jnp.allclose(out2, ref2, atol=1e-2, rtol=1e-2), err2

    print("KERNEL_OK")
</pallas_src>

<mosaic_0001>
module attributes {stable_mosaic.version = 11 : i64} {
  func.func @encoder_kernel(%arg0: i32, %arg1: memref<8x32x3xf32, #tpu.memory_space<vmem>>, %arg2: memref<3x128xf32, #tpu.memory_space<vmem>>, %arg3: memref<1x128xf32, #tpu.memory_space<vmem>>, %arg4: memref<128x256xbf16, #tpu.memory_space<vmem>>, %arg5: memref<1x256xf32, #tpu.memory_space<vmem>>, %arg6: memref<256x512xbf16, #tpu.memory_space<vmem>>, %arg7: memref<256x512xbf16, #tpu.memory_space<vmem>>, %arg8: memref<1x512xf32, #tpu.memory_space<vmem>>, %arg9: memref<512x256xbf16, #tpu.memory_space<vmem>>, %arg10: memref<1x256xf32, #tpu.memory_space<vmem>>, %arg11: memref<1x8x256xf32, #tpu.memory_space<vmem>>) attributes {dimension_semantics = [#tpu.dimension_semantics<parallel>], iteration_bounds = array<i64: 1>, scalar_prefetch = 0 : i64, scratch_operands = 0 : i64, tpu.core_type = #tpu.core_type<tc>, window_params = [{transform_indices = @transform_0, window_bounds = array<i64: 8, 32, 3>}, {pipeline_mode = #tpu.pipeline_mode<synchronous>, transform_indices = @transform_1, window_bounds = array<i64: 3, 128>}, {pipeline_mode = #tpu.pipeline_mode<synchronous>, transform_indices = @transform_2, window_bounds = array<i64: 1, 128>}, {pipeline_mode = #tpu.pipeline_mode<synchronous>, transform_indices = @transform_3, window_bounds = array<i64: 128, 256>}, {pipeline_mode = #tpu.pipeline_mode<synchronous>, transform_indices = @transform_4, window_bounds = array<i64: 1, 256>}, {pipeline_mode = #tpu.pipeline_mode<synchronous>, transform_indices = @transform_5, window_bounds = array<i64: 256, 512>}, {pipeline_mode = #tpu.pipeline_mode<synchronous>, transform_indices = @transform_6, window_bounds = array<i64: 256, 512>}, {pipeline_mode = #tpu.pipeline_mode<synchronous>, transform_indices = @transform_7, window_bounds = array<i64: 1, 512>}, {pipeline_mode = #tpu.pipeline_mode<synchronous>, transform_indices = @transform_8, window_bounds = array<i64: 512, 256>}, {pipeline_mode = #tpu.pipeline_mode<synchronous>, transform_indices = @transform_9, window_bounds = array<i64: 1, 256>}, {transform_indices = @transform_10, window_bounds = array<i64: 1, 8, 256>}]} {
    %c0 = arith.constant 0 : index
    %c0_0 = arith.constant 0 : index
    %c0_1 = arith.constant 0 : index
    %0 = vector.load %arg1[%c0, %c0_0, %c0_1] : memref<8x32x3xf32, #tpu.memory_space<vmem>>, vector<8x32x3xf32>
    %1 = vector.shape_cast %0 : vector<8x32x3xf32> to vector<256x3xf32>
    %2 = vector.extract_strided_slice %1 {offsets = [0, 0], sizes = [256, 1], strides = [1, 1]} : vector<256x3xf32> to vector<256x1xf32>
    %c0_2 = arith.constant 0 : index
    %c0_3 = arith.constant 0 : index
    %3 = vector.load %arg2[%c0_2, %c0_3] : memref<3x128xf32, #tpu.memory_space<vmem>>, vector<1x128xf32>
    %4 = vector.broadcast %2 : vector<256x1xf32> to vector<256x128xf32>
    %5 = vector.broadcast %3 : vector<1x128xf32> to vector<256x128xf32>
    %6 = arith.mulf %4, %5 : vector<256x128xf32>
    %7 = vector.extract_strided_slice %1 {offsets = [0, 1], sizes = [256, 1], strides = [1, 1]} : vector<256x3xf32> to vector<256x1xf32>
    %c1 = arith.constant 1 : index
    %c0_4 = arith.constant 0 : index
    %8 = vector.load %arg2[%c1, %c0_4] : memref<3x128xf32, #tpu.memory_space<vmem>>, vector<1x128xf32>
    %9 = vector.broadcast %7 : vector<256x1xf32> to vector<256x128xf32>
    %10 = vector.broadcast %8 : vector<1x128xf32> to vector<256x128xf32>
    %11 = arith.mulf %9, %10 : vector<256x128xf32>
    %12 = arith.addf %6, %11 : vector<256x128xf32>
    %13 = vector.extract_strided_slice %1 {offsets = [0, 2], sizes = [256, 1], strides = [1, 1]} : vector<256x3xf32> to vector<256x1xf32>
    %c2 = arith.constant 2 : index
    %c0_5 = arith.constant 0 : index
    %14 = vector.load %arg2[%c2, %c0_5] : memref<3x128xf32, #tpu.memory_space<vmem>>, vector<1x128xf32>
    %15 = vector.broadcast %13 : vector<256x1xf32> to vector<256x128xf32>
    %16 = vector.broadcast %14 : vector<1x128xf32> to vector<256x128xf32>
    %17 = arith.mulf %15, %16 : vector<256x128xf32>
    %18 = arith.addf %12, %17 : vector<256x128xf32>
    %c0_6 = arith.constant 0 : index
    %c0_7 = arith.constant 0 : index
    %19 = vector.load %arg3[%c0_6, %c0_7] : memref<1x128xf32, #tpu.memory_space<vmem>>, vector<1x128xf32>
    %20 = vector.broadcast %19 : vector<1x128xf32> to vector<256x128xf32>
    %21 = arith.addf %18, %20 : vector<256x128xf32>
    %cst = arith.constant 0.000000e+00 : f32
    %22 = vector.broadcast %cst : f32 to vector<256x128xf32>
    %23 = arith.maximumf %21, %22 : vector<256x128xf32>
    %24 = arith.truncf %23 : vector<256x128xf32> to vector<256x128xbf16>
    %c0_8 = arith.constant 0 : index
    %c0_9 = arith.constant 0 : index
    %25 = vector.load %arg4[%c0_8, %c0_9] : memref<128x256xbf16, #tpu.memory_space<vmem>>, vector<128x256xbf16>
    %cst_10 = arith.constant dense<0.000000e+00> : vector<256x256xf32>
    %26 = tpu.matmul %24, %25, %cst_10 {dimension_numbers = #tpu.dot_dimension_numbers<[1], [0], [0], [1], [0, 0, 1, 1], [], []>} : vector<256x128xbf16>, vector<128x256xbf16>, vector<256x256xf32> -> vector<256x256xf32>
    %c0_11 = arith.constant 0 : index
    %c0_12 = arith.constant 0 : index
    %27 = vector.load %arg5[%c0_11, %c0_12] : memref<1x256xf32, #tpu.memory_space<vmem>>, vector<1x256xf32>
    %28 = vector.broadcast %27 : vector<1x256xf32> to vector<256x256xf32>
    %29 = arith.addf %26, %28 : vector<256x256xf32>
    %30 = vector.shape_cast %29 : vector<256x256xf32> to vector<8x32x256xf32>
    %cst_13 = arith.constant dense<0xFF800000> : vector<8x256xf32>
    %31 = vector.multi_reduction <maximumf>, %30, %cst_13 [1] : vector<8x32x256xf32> to vector<8x256xf32>
    %32 = arith.truncf %31 : vector<8x256xf32> to vector<8x256xbf16>
    %c0_14 = arith.constant 0 : index
    %c0_15 = arith.constant 0 : index
    %33 = vector.load %arg6[%c0_14, %c0_15] : memref<256x512xbf16, #tpu.memory_space<vmem>>, vector<256x512xbf16>
    %cst_16 = arith.constant dense<0.000000e+00> : vector<8x512xf32>
    %34 = tpu.matmul %32, %33, %cst_16 {dimension_numbers = #tpu.dot_dimension_numbers<[1], [0], [0], [1], [0, 0, 1, 1], [], []>} : vector<8x256xbf16>, vector<256x512xbf16>, vector<8x512xf32> -> vector<8x512xf32>
    %35 = arith.truncf %29 : vector<256x256xf32> to vector<256x256xbf16>
    %c0_17 = arith.constant 0 : index
    %c0_18 = arith.constant 0 : index
    %36 = vector.load %arg7[%c0_17, %c0_18] : memref<256x512xbf16, #tpu.memory_space<vmem>>, vector<256x512xbf16>
    %cst_19 = arith.constant dense<0.000000e+00> : vector<256x512xf32>
    %37 = tpu.matmul %35, %36, %cst_19 {dimension_numbers = #tpu.dot_dimension_numbers<[1], [0], [0], [1], [0, 0, 1, 1], [], []>} : vector<256x256xbf16>, vector<256x512xbf16>, vector<256x512xf32> -> vector<256x512xf32>
    %38 = vector.shape_cast %37 : vector<256x512xf32> to vector<8x32x512xf32>
    %39 = vector.shape_cast %34 : vector<8x512xf32> to vector<8x1x512xf32>
    %40 = vector.broadcast %39 : vector<8x1x512xf32> to vector<8x32x512xf32>
    %41 = arith.addf %38, %40 : vector<8x32x512xf32>
    %c0_20 = arith.constant 0 : index
    %c0_21 = arith.constant 0 : index
    %42 = vector.load %arg8[%c0_20, %c0_21] : memref<1x512xf32, #tpu.memory_space<vmem>>, vector<1x512xf32>
    %43 = vector.shape_cast %42 : vector<1x512xf32> to vector<1x1x512xf32>
    %44 = vector.broadcast %43 : vector<1x1x512xf32> to vector<8x32x512xf32>
    %45 = arith.addf %41, %44 : vector<8x32x512xf32>
    %cst_22 = arith.constant 0.000000e+00 : f32
    %46 = vector.broadcast %cst_22 : f32 to vector<8x32x512xf32>
    %47 = arith.maximumf %45, %46 : vector<8x32x512xf32>
    %48 = vector.shape_cast %47 : vector<8x32x512xf32> to vector<256x512xf32>
    %49 = arith.truncf %48 : vector<256x512xf32> to vector<256x512xbf16>
    %c0_23 = arith.constant 0 : index
    %c0_24 = arith.constant 0 : index
    %50 = vector.load %arg9[%c0_23, %c0_24] : memref<512x256xbf16, #tpu.memory_space<vmem>>, vector<512x256xbf16>
    %cst_25 = arith.constant dense<0.000000e+00> : vector<256x256xf32>
    %51 = tpu.matmul %49, %50, %cst_25 {dimension_numbers = #tpu.dot_dimension_numbers<[1], [0], [0], [1], [0, 0, 1, 1], [], []>} : vector<256x512xbf16>, vector<512x256xbf16>, vector<256x256xf32> -> vector<256x256xf32>
    %c0_26 = arith.constant 0 : index
    %c0_27 = arith.constant 0 : index
    %52 = vector.load %arg10[%c0_26, %c0_27] : memref<1x256xf32, #tpu.memory_space<vmem>>, vector<1x256xf32>
    %53 = vector.broadcast %52 : vector<1x256xf32> to vector<256x256xf32>
    %54 = arith.addf %51, %53 : vector<256x256xf32>
    %55 = vector.shape_cast %54 : vector<256x256xf32> to vector<8x32x256xf32>
    %cst_28 = arith.constant dense<0xFF800000> : vector<8x256xf32>
    %56 = vector.multi_reduction <maximumf>, %55, %cst_28 [1] : vector<8x32x256xf32> to vector<8x256xf32>
    %c0_29 = arith.constant 0 : index
    %c0_30 = arith.constant 0 : index
    %c0_31 = arith.constant 0 : index
    %57 = vector.load %arg11[%c0_29, %c0_30, %c0_31] : memref<1x8x256xf32, #tpu.memory_space<vmem>>, vector<1x8x256xf32>
    %58 = vector.shape_cast %57 : vector<1x8x256xf32> to vector<8x256xf32>
    %59 = vector.shape_cast %56 : vector<8x256xf32> to vector<1x8x256xf32>
    tpu.vector_store %arg11[%c0_29, %c0_30, %c0_31], %59 {strides = array<i32>} : memref<1x8x256xf32, #tpu.memory_space<vmem>>, vector<1x8x256xf32>,
    return
  }
  func.func @transform_0(%arg0: i32) -> (i32, i32, i32) {
    %c0_i32 = arith.constant 0 : i32
    %c0_i32_0 = arith.constant 0 : i32
    %c0_i32_1 = arith.constant 0 : i32
    return %arg0, %c0_i32, %c0_i32_0 : i32, i32, i32
  }
  func.func @transform_1(%arg0: i32) -> (i32, i32) {
    %c0_i32 = arith.constant 0 : i32
    %c0_i32_0 = arith.constant 0 : i32
    %c0_i32_1 = arith.constant 0 : i32
    return %c0_i32, %c0_i32_0 : i32, i32
  }
  func.func @transform_2(%arg0: i32) -> (i32, i32) {
    %c0_i32 = arith.constant 0 : i32
    %c0_i32_0 = arith.constant 0 : i32
    %c0_i32_1 = arith.constant 0 : i32
    return %c0_i32, %c0_i32_0 : i32, i32
  }
  func.func @transform_3(%arg0: i32) -> (i32, i32) {
    %c0_i32 = arith.constant 0 : i32
    %c0_i32_0 = arith.constant 0 : i32
    %c0_i32_1 = arith.constant 0 : i32
    return %c0_i32, %c0_i32_0 : i32, i32
  }
  func.func @transform_4(%arg0: i32) -> (i32, i32) {
    %c0_i32 = arith.constant 0 : i32
    %c0_i32_0 = arith.constant 0 : i32
    %c0_i32_1 = arith.constant 0 : i32
    return %c0_i32, %c0_i32_0 : i32, i32
  }
  func.func @transform_5(%arg0: i32) -> (i32, i32) {
    %c0_i32 = arith.constant 0 : i32
    %c0_i32_0 = arith.constant 0 : i32
    %c0_i32_1 = arith.constant 0 : i32
    return %c0_i32, %c0_i32_0 : i32, i32
  }
  func.func @transform_6(%arg0: i32) -> (i32, i32) {
    %c0_i32 = arith.constant 0 : i32
    %c0_i32_0 = arith.constant 0 : i32
    %c0_i32_1 = arith.constant 0 : i32
    return %c0_i32, %c0_i32_0 : i32, i32
  }
  func.func @transform_7(%arg0: i32) -> (i32, i32) {
    %c0_i32 = arith.constant 0 : i32
    %c0_i32_0 = arith.constant 0 : i32
    %c0_i32_1 = arith.constant 0 : i32
    return %c0_i32, %c0_i32_0 : i32, i32
  }
  func.func @transform_8(%arg0: i32) -> (i32, i32) {
    %c0_i32 = arith.constant 0 : i32
    %c0_i32_0 = arith.constant 0 : i32
    %c0_i32_1 = arith.constant 0 : i32
    return %c0_i32, %c0_i32_0 : i32, i32
  }
  func.func @transform_9(%arg0: i32) -> (i32, i32) {
    %c0_i32 = arith.constant 0 : i32
    %c0_i32_0 = arith.constant 0 : i32
    %c0_i32_1 = arith.constant 0 : i32
    return %c0_i32, %c0_i32_0 : i32, i32
  }
  func.func @transform_10(%arg0: i32) -> (i32, i32, i32) {
    %c0_i32 = arith.constant 0 : i32
    %c0_i32_0 = arith.constant 0 : i32
    %c0_i32_1 = arith.constant 0 : i32
    return %arg0, %c0_i32, %c0_i32_0 : i32, i32, i32
  }
}

</mosaic_0001>

<llo_original>
// kernel: tpu_custom_call.1
$region0: #{tpu_custom_call.1}
  #allocation0 [shape = 'u32[]', space=smem, size = 0x4, offset = 0x4, fixed_abs, tag = 'smem constant byte address 0x4 - core index']
  #allocation1 [shape = 'u32[144,128]{1,0:T(1,128)}', space=vmem, size = 0x12000, scoped, tag = 'internal scratch']
  %s0 = inlined_call_operand.vmem [shape: f32[8,32,3], index: 0, kind: input, shape index: {}]
  %s1 = inlined_call_operand.vmem [shape: f32[3,128], index: 1, kind: input, shape index: {}]
  %s2 = inlined_call_operand.vmem [shape: f32[1,128], index: 2, kind: input, shape index: {}]
  %s3 = inlined_call_operand.vmem [shape: bf16[128,256], index: 3, kind: input, shape index: {}]
  %s4 = inlined_call_operand.vmem [shape: f32[1,256], index: 4, kind: input, shape index: {}]
  %s5 = inlined_call_operand.hbm [shape: bf16[256,512], index: 5, kind: input, shape index: {}]
  %s6 = inlined_call_operand.hbm [shape: bf16[256,512], index: 6, kind: input, shape index: {}]
  %s7 = inlined_call_operand.vmem [shape: f32[1,512], index: 7, kind: input, shape index: {}]
  %s8 = inlined_call_operand.hbm [shape: bf16[512,256], index: 8, kind: input, shape index: {}]
  %s9 = inlined_call_operand.vmem [shape: f32[1,256], index: 9, kind: input, shape index: {}]
  %s10 = inlined_call_operand.hbm [shape: f32[1,8,256], index: 10, kind: output, shape index: {}]
  %s11 = sld [smem:[#allocation0]]
  $region62: #{tpu_custom_call.1} parent=0
    _
  %s13 = ssub.s32 1, %s11
  %s14 = scalar_select 0, %s13, %s11
  $region1: #{tpu_custom_call.1} parent=0
    #allocation2 [shape = 'u8[262144]{0}', space=vmem, size = 0x40000, scoped, tag = 'input window, operand 5, single buffered']
    #allocation3 [shape = 's32[1]{0}', space=sflag, size = 0x4, scoped, tag = 'scoped memory for tpu_custom_call.1']
    #allocation4 [shape = 's32[1]{0}', space=sflag, size = 0x4, scoped, tag = 'scoped memory for tpu_custom_call.1']
    #allocation5 [shape = 'u8[262144]{0}', space=vmem, size = 0x40000, scoped, tag = 'input window, operand 6, single buffered']
    #allocation6 [shape = 's32[1]{0}', space=sflag, size = 0x4, scoped, tag = 'scoped memory for tpu_custom_call.1']
    #allocation7 [shape = 'u8[262144]{0}', space=vmem, size = 0x40000, scoped, tag = 'input window, operand 8, single buffered']
    #allocation8 [shape = 'u8[8192]{0}', space=vmem, size = 0x2000, scoped, tag = 'output window, operand 0, single buffered']
    %15 = vsyncpa [#allocation3], 0
    %16 = vsyncpa [#allocation6], 0
    %17 = vsyncpa [#allocation4], 0
    // Predicated region
    $region2: #{tpu_custom_call.1} parent=1 // pred_check
      _
    $region3: #{tpu_custom_call.1} parent=1 // pred_check_branch
      %19 = sbr.rel (0) target = $region5
    $region4: #{tpu_custom_call.1} parent=1 // pred_region
      _
    $region5: #{tpu_custom_call.1} parent=1 // pred_fallthru
      _
    // Predicated region
    $region6: #{tpu_custom_call.1} parent=1 // pred_check
      _
    $region7: #{tpu_custom_call.1} parent=1 // pred_check_branch
      %21 = sbr.rel (0) target = $region9
    $region8: #{tpu_custom_call.1} parent=1 // pred_region
      _
    $region9: #{tpu_custom_call.1} parent=1 // pred_fallthru
      _
    // Predicated region
    $region10: #{tpu_custom_call.1} parent=1 // pred_check
      _
    $region11: #{tpu_custom_call.1} parent=1 // pred_check_branch
      %23 = sbr.rel (0) target = $region13
    $region12: #{tpu_custom_call.1} parent=1 // pred_region
      _
    $region13: #{tpu_custom_call.1} parent=1 // pred_fallthru
      _
    // Predicated region
    $region14: #{tpu_custom_call.1} parent=1 // pred_check
      _
    $region15: #{tpu_custom_call.1} parent=1 // pred_check_branch
      %25 = sbr.rel (0) target = $region17
    $region16: #{tpu_custom_call.1} parent=1 // pred_region
      _
    $region17: #{tpu_custom_call.1} parent=1 // pred_fallthru
      _
    // Predicated region
    $region18: #{tpu_custom_call.1} parent=1 // pred_check
      _
    $region19: #{tpu_custom_call.1} parent=1 // pred_check_branch
      %27 = sbr.rel (0) target = $region21
    $region20: #{tpu_custom_call.1} parent=1 // pred_region
      _
    $region21: #{tpu_custom_call.1} parent=1 // pred_fallthru
      _
    // Predicated region
    $region22: #{tpu_custom_call.1} parent=1 // pred_check
      _
    $region23: #{tpu_custom_call.1} parent=1 // pred_check_branch
      %29 = sbr.rel (0) target = $region25
    $region24: #{tpu_custom_call.1} parent=1 // pred_region
      %s31 = ssub.s32 8192, 8192
      %32 = vsyncadd [#allocation3], %s31
      %s33 = sshll.u32 [#allocation2], 4
      %s34 = int_to_ptr.vmem [resolvable:$true] %s33
      %39 = dma.hbm_to_vmem [thread:$0]  %s5, 8192, %s34, [#allocation3], 256, 256, 16
    $region25: #{tpu_custom_call.1} parent=1 // pred_fallthru
      _
    // Predicated region
    $region26: #{tpu_custom_call.1} parent=1 // pred_check
      _
    $region27: #{tpu_custom_call.1} parent=1 // pred_check_branch
      %41 = sbr.rel (0) target = $region29
    $region28: #{tpu_custom_call.1} parent=1 // pred_region
      %s43 = ssub.s32 8192, 8192
      %44 = vsyncadd [#allocation6], %s43
      %s45 = sshll.u32 [#allocation5], 4
      %s46 = int_to_ptr.vmem [resolvable:$true] %s45
      %51 = dma.hbm_to_vmem [thread:$0]  %s6, 8192, %s46, [#allocation6], 256, 256, 16
    $region29: #{tpu_custom_call.1} parent=1 // pred_fallthru
      _
    // Predicated region
    $region30: #{tpu_custom_call.1} parent=1 // pred_check
      _
    $region31: #{tpu_custom_call.1} parent=1 // pred_check_branch
      %53 = sbr.rel (0) target = $region33
    $region32: #{tpu_custom_call.1} parent=1 // pred_region
      _
    $region33: #{tpu_custom_call.1} parent=1 // pred_fallthru
      _
    // Predicated region
    $region34: #{tpu_custom_call.1} parent=1 // pred_check
      _
    $region35: #{tpu_custom_call.1} parent=1 // pred_check_branch
      %55 = sbr.rel (0) target = $region37
    $region36: #{tpu_custom_call.1} parent=1 // pred_region
      %s57 = ssub.s32 8192, 8192
      %58 = vsyncadd [#allocation6], %s57
      %s59 = sshll.u32 [#allocation7], 4
      %s60 = int_to_ptr.vmem [resolvable:$true] %s59
      %65 = dma.hbm_to_vmem [thread:$0]  %s8, 8192, %s60, [#allocation6], 128, 128, 8
    $region37: #{tpu_custom_call.1} parent=1 // pred_fallthru
      _
    // Predicated region
    $region38: #{tpu_custom_call.1} parent=1 // pred_check
      _
    $region39: #{tpu_custom_call.1} parent=1 // pred_check_branch
      %67 = sbr.rel (0) target = $region41
    $region40: #{tpu_custom_call.1} parent=1 // pred_region
      _
    $region41: #{tpu_custom_call.1} parent=1 // pred_fallthru
      _
    // Predicated region
    $region42: #{tpu_custom_call.1} parent=1 // pred_check
      _
    $region43: #{tpu_custom_call.1} parent=1 // pred_check_branch
      %69 = sbr.rel (0) target = $region45
    $region44: #{tpu_custom_call.1} parent=1 // pred_region
      %70 = dma.done [#allocation3], 8192
    $region45: #{tpu_custom_call.1} parent=1 // pred_fallthru
      _
    // Predicated region
    $region46: #{tpu_custom_call.1} parent=1 // pred_check
      _
    $region47: #{tpu_custom_call.1} parent=1 // pred_check_branch
      %72 = sbr.rel (0) target = $region49
    $region48: #{tpu_custom_call.1} parent=1 // pred_region
      %73 = dma.done [#allocation6], 8192
    $region49: #{tpu_custom_call.1} parent=1 // pred_fallthru
      _
    // Predicated region
    $region50: #{tpu_custom_call.1} parent=1 // pred_check
      _
    $region51: #{tpu_custom_call.1} parent=1 // pred_check_branch
      %75 = sbr.rel (0) target = $region53
    $region52: #{tpu_custom_call.1} parent=1 // pred_region
      %76 = dma.done [#allocation6], 8192
    $region53: #{tpu_custom_call.1} parent=1 // pred_fallthru
      _
    %v78 = vld [vmem:[%s0] sm:$0xff]
    %v79 = vld [vmem:[%s0 + $0x8] sm:$0xff]
    %v80 = vld [vmem:[%s0 + $0x10] sm:$0xff]
    %v81 = vld [vmem:[%s0 + $0x18] sm:$0xff]
    %v82 = vld [vmem:[%s0 + $0x20] sm:$0xff]
    %v83 = vld [vmem:[%s0 + $0x28] sm:$0xff]
    %v84 = vld [vmem:[%s0 + $0x30] sm:$0xff]
    %v85 = vld [vmem:[%s0 + $0x38] sm:$0xff]
    %v86 = vld [vmem:[%s0 + $0x40] sm:$0xff]
    %v87 = vld [vmem:[%s0 + $0x48] sm:$0xff]
    %v88 = vld [vmem:[%s0 + $0x50] sm:$0xff]
    %v89 = vld [vmem:[%s0 + $0x58] sm:$0xff]
    %v90 = vld [vmem:[%s0 + $0x60] sm:$0xff]
    %v91 = vld [vmem:[%s0 + $0x68] sm:$0xff]
    %v92 = vld [vmem:[%s0 + $0x70] sm:$0xff]
    %v93 = vld [vmem:[%s0 + $0x78] sm:$0xff]
    %v94 = vld [vmem:[%s0 + $0x80] sm:$0xff]
    %v95 = vld [vmem:[%s0 + $0x88] sm:$0xff]
    %v96 = vld [vmem:[%s0 + $0x90] sm:$0xff]
    %v97 = vld [vmem:[%s0 + $0x98] sm:$0xff]
    %v98 = vld [vmem:[%s0 + $0xa0] sm:$0xff]
    %v99 = vld [vmem:[%s0 + $0xa8] sm:$0xff]
    %v100 = vld [vmem:[%s0 + $0xb0] sm:$0xff]
    %v101 = vld [vmem:[%s0 + $0xb8] sm:$0xff]
    %v102 = vld [vmem:[%s0 + $0xc0] sm:$0xff]
    %v103 = vld [vmem:[%s0 + $0xc8] sm:$0xff]
    %v104 = vld [vmem:[%s0 + $0xd0] sm:$0xff]
    %v105 = vld [vmem:[%s0 + $0xd8] sm:$0xff]
    %v106 = vld [vmem:[%s0 + $0xe0] sm:$0xff]
    %v107 = vld [vmem:[%s0 + $0xe8] sm:$0xff]
    %v108 = vld [vmem:[%s0 + $0xf0] sm:$0xff]
    %v109 = vld [vmem:[%s0 + $0xf8] sm:$0xff]
    %v110 = vld [vmem:[%s1] sm:$0x1]
    %112 = vset.pattern.permute.xlu0 0
    %113 = vperm.xlu0 %112, %v78
    %v114 = vpop.permute.xlu0 %113
    %117 = vset.pattern.permute.xlu0 0
    %118 = vperm.xlu0 %117, %v79
    %v119 = vpop.permute.xlu0 %118
    %122 = vset.pattern.permute.xlu0 0
    %123 = vperm.xlu0 %122, %v80
    %v124 = vpop.permute.xlu0 %123
    %127 = vset.pattern.permute.xlu0 0
    %128 = vperm.xlu0 %127, %v81
    %v129 = vpop.permute.xlu0 %128
    %132 = vset.pattern.permute.xlu0 0
    %133 = vperm.xlu0 %132, %v82
    %v134 = vpop.permute.xlu0 %133
    %137 = vset.pattern.permute.xlu0 0
    %138 = vperm.xlu0 %137, %v83
    %v139 = vpop.permute.xlu0 %138
    %142 = vset.pattern.permute.xlu0 0
    %143 = vperm.xlu0 %142, %v84
    %v144 = vpop.permute.xlu0 %143
    %147 = vset.pattern.permute.xlu0 0
    %148 = vperm.xlu0 %147, %v85
    %v149 = vpop.permute.xlu0 %148
    %152 = vset.pattern.permute.xlu0 0
    %153 = vperm.xlu0 %152, %v86
    %v154 = vpop.permute.xlu0 %153
    %157 = vset.pattern.permute.xlu0 0
    %158 = vperm.xlu0 %157, %v87
    %v159 = vpop.permute.xlu0 %158
    %162 = vset.pattern.permute.xlu0 0
    %163 = vperm.xlu0 %162, %v88
    %v164 = vpop.permute.xlu0 %163
    %167 = vset.pattern.permute.xlu0 0
    %168 = vperm.xlu0 %167, %v89
    %v169 = vpop.permute.xlu0 %168
    %172 = vset.pattern.permute.xlu0 0
    %173 = vperm.xlu0 %172, %v90
    %v174 = vpop.permute.xlu0 %173
    %177 = vset.pattern.permute.xlu0 0
    %178 = vperm.xlu0 %177, %v91
    %v179 = vpop.permute.xlu0 %178
    %182 = vset.pattern.permute.xlu0 0
    %183 = vperm.xlu0 %182, %v92
    %v184 = vpop.permute.xlu0 %183
    %187 = vset.pattern.permute.xlu0 0
    %188 = vperm.xlu0 %187, %v93
    %v189 = vpop.permute.xlu0 %188
    %192 = vset.pattern.permute.xlu0 0
    %193 = vperm.xlu0 %192, %v94
    %v194 = vpop.permute.xlu0 %193
    %197 = vset.pattern.permute.xlu0 0
    %198 = vperm.xlu0 %197, %v95
    %v199 = vpop.permute.xlu0 %198
    %202 = vset.pattern.permute.xlu0 0
    %203 = vperm.xlu0 %202, %v96
    %v204 = vpop.permute.xlu0 %203
    %207 = vset.pattern.permute.xlu0 0
    %208 = vperm.xlu0 %207, %v97
    %v209 = vpop.permute.xlu0 %208
    %212 = vset.pattern.permute.xlu0 0
    %213 = vperm.xlu0 %212, %v98
    %v214 = vpop.permute.xlu0 %213
    %217 = vset.pattern.permute.xlu0 0
    %218 = vperm.xlu0 %217, %v99
    %v219 = vpop.permute.xlu0 %218
    %222 = vset.pattern.permute.xlu0 0
    %223 = vperm.xlu0 %222, %v100
    %v224 = vpop.permute.xlu0 %223
    %227 = vset.pattern.permute.xlu0 0
    %228 = vperm.xlu0 %227, %v101
    %v229 = vpop.permute.xlu0 %228
    %232 = vset.pattern.permute.xlu0 0
    %233 = vperm.xlu0 %232, %v102
    %v234 = vpop.permute.xlu0 %233
    %237 = vset.pattern.permute.xlu0 0
    %238 = vperm.xlu0 %237, %v103
    %v239 = vpop.permute.xlu0 %238
    %242 = vset.pattern.permute.xlu0 0
    %243 = vperm.xlu0 %242, %v104
    %v244 = vpop.permute.xlu0 %243
    %247 = vset.pattern.permute.xlu0 0
    %248 = vperm.xlu0 %247, %v105
    %v249 = vpop.permute.xlu0 %248
    %252 = vset.pattern.permute.xlu0 0
    %253 = vperm.xlu0 %252, %v106
    %v254 = vpop.permute.xlu0 %253
    %257 = vset.pattern.permute.xlu0 0
    %258 = vperm.xlu0 %257, %v107
    %v259 = vpop.permute.xlu0 %258
    %262 = vset.pattern.permute.xlu0 0
    %263 = vperm.xlu0 %262, %v108
    %v264 = vpop.permute.xlu0 %263
    %267 = vset.pattern.permute.xlu0 0
    %268 = vperm.xlu0 %267, %v109
    %v269 = vpop.permute.xlu0 %268
    %v271 = vlaneseq
    %v272 = vshrl.u32 %v271, 7
    %v273 = vsub.s32 0, %v272
    %v274 = vrot.slane %v110, %v273
    %v275 = vmul.f32 %v114, %v274
    %v276 = vmul.f32 %v119, %v274
    %v277 = vmul.f32 %v124, %v274
    %v278 = vmul.f32 %v129, %v274
    %v279 = vmul.f32 %v134, %v274
    %v280 = vmul.f32 %v139, %v274
    %v281 = vmul.f32 %v144, %v274
    %v282 = vmul.f32 %v149, %v274
    %v283 = vmul.f32 %v154, %v274
    %v284 = vmul.f32 %v159, %v274
    %v285 = vmul.f32 %v164, %v274
    %v286 = vmul.f32 %v169, %v274
    %v287 = vmul.f32 %v174, %v274
    %v288 = vmul.f32 %v179, %v274
    %v289 = vmul.f32 %v184, %v274
    %v290 = vmul.f32 %v189, %v274
    %v291 = vmul.f32 %v194, %v274
    %v292 = vmul.f32 %v199, %v274
    %v293 = vmul.f32 %v204, %v274
    %v294 = vmul.f32 %v209, %v274
    %v295 = vmul.f32 %v214, %v274
    %v296 = vmul.f32 %v219, %v274
    %v297 = vmul.f32 %v224, %v274
    %v298 = vmul.f32 %v229, %v274
    %v299 = vmul.f32 %v234, %v274
    %v300 = vmul.f32 %v239, %v274
    %v301 = vmul.f32 %v244, %v274
    %v302 = vmul.f32 %v249, %v274
    %v303 = vmul.f32 %v254, %v274
    %v304 = vmul.f32 %v259, %v274
    %v305 = vmul.f32 %v264, %v274
    %v306 = vmul.f32 %v269, %v274
    %v307 = vld [vmem:[%s1 + $0x1] sm:$0x1]
    %308 = vset.pattern.permute.xlu0 1
    %309 = vperm.xlu0 %308, %v78
    %v310 = vpop.permute.xlu0 %309
    %312 = vset.pattern.permute.xlu0 1
    %313 = vperm.xlu0 %312, %v79
    %v314 = vpop.permute.xlu0 %313
    %316 = vset.pattern.permute.xlu0 1
    %317 = vperm.xlu0 %316, %v80
    %v318 = vpop.permute.xlu0 %317
    %320 = vset.pattern.permute.xlu0 1
    %321 = vperm.xlu0 %320, %v81
    %v322 = vpop.permute.xlu0 %321
    %324 = vset.pattern.permute.xlu0 1
    %325 = vperm.xlu0 %324, %v82
    %v326 = vpop.permute.xlu0 %325
    %328 = vset.pattern.permute.xlu0 1
    %329 = vperm.xlu0 %328, %v83
    %v330 = vpop.permute.xlu0 %329
    %332 = vset.pattern.permute.xlu0 1
    %333 = vperm.xlu0 %332, %v84
    %v334 = vpop.permute.xlu0 %333
    %336 = vset.pattern.permute.xlu0 1
    %337 = vperm.xlu0 %336, %v85
    %v338 = vpop.permute.xlu0 %337
    %340 = vset.pattern.permute.xlu0 1
    %341 = vperm.xlu0 %340, %v86
    %v342 = vpop.permute.xlu0 %341
    %344 = vset.pattern.permute.xlu0 1
    %345 = vperm.xlu0 %344, %v87
    %v346 = vpop.permute.xlu0 %345
    %348 = vset.pattern.permute.xlu0 1
    %349 = vperm.xlu0 %348, %v88
    %v350 = vpop.permute.xlu0 %349
    %352 = vset.pattern.permute.xlu0 1
    %353 = vperm.xlu0 %352, %v89
    %v354 = vpop.permute.xlu0 %353
    %356 = vset.pattern.permute.xlu0 1
    %357 = vperm.xlu0 %356, %v90
    %v358 = vpop.permute.xlu0 %357
    %360 = vset.pattern.permute.xlu0 1
    %361 = vperm.xlu0 %360, %v91
    %v362 = vpop.permute.xlu0 %361
    %364 = vset.pattern.permute.xlu0 1
    %365 = vperm.xlu0 %364, %v92
    %v366 = vpop.permute.xlu0 %365
    %368 = vset.pattern.permute.xlu0 1
    %369 = vperm.xlu0 %368, %v93
    %v370 = vpop.permute.xlu0 %369
    %372 = vset.pattern.permute.xlu0 1
    %373 = vperm.xlu0 %372, %v94
    %v374 = vpop.permute.xlu0 %373
    %376 = vset.pattern.permute.xlu0 1
    %377 = vperm.xlu0 %376, %v95
    %v378 = vpop.permute.xlu0 %377
    %380 = vset.pattern.permute.xlu0 1
    %381 = vperm.xlu0 %380, %v96
    %v382 = vpop.permute.xlu0 %381
    %384 = vset.pattern.permute.xlu0 1
    %385 = vperm.xlu0 %384, %v97
    %v386 = vpop.permute.xlu0 %385
    %388 = vset.pattern.permute.xlu0 1
    %389 = vperm.xlu0 %388, %v98
    %v390 = vpop.permute.xlu0 %389
    %392 = vset.pattern.permute.xlu0 1
    %393 = vperm.xlu0 %392, %v99
    %v394 = vpop.permute.xlu0 %393
    %396 = vset.pattern.permute.xlu0 1
    %397 = vperm.xlu0 %396, %v100
    %v398 = vpop.permute.xlu0 %397
    %400 = vset.pattern.permute.xlu0 1
    %401 = vperm.xlu0 %400, %v101
    %v402 = vpop.permute.xlu0 %401
    %404 = vset.pattern.permute.xlu0 1
    %405 = vperm.xlu0 %404, %v102
    %v406 = vpop.permute.xlu0 %405
    %408 = vset.pattern.permute.xlu0 1
    %409 = vperm.xlu0 %408, %v103
    %v410 = vpop.permute.xlu0 %409
    %412 = vset.pattern.permute.xlu0 1
    %413 = vperm.xlu0 %412, %v104
    %v414 = vpop.permute.xlu0 %413
    %416 = vset.pattern.permute.xlu0 1
    %417 = vperm.xlu0 %416, %v105
    %v418 = vpop.permute.xlu0 %417
    %420 = vset.pattern.permute.xlu0 1
    %421 = vperm.xlu0 %420, %v106
    %v422 = vpop.permute.xlu0 %421
    %424 = vset.pattern.permute.xlu0 1
    %425 = vperm.xlu0 %424, %v107
    %v426 = vpop.permute.xlu0 %425
    %428 = vset.pattern.permute.xlu0 1
    %429 = vperm.xlu0 %428, %v108
    %v430 = vpop.permute.xlu0 %429
    %432 = vset.pattern.permute.xlu0 1
    %433 = vperm.xlu0 %432, %v109
    %v434 = vpop.permute.xlu0 %433
    %v436 = vlaneseq
    %v437 = vshrl.u32 %v436, 7
    %v438 = vsub.s32 0, %v437
    %v439 = vrot.slane %v307, %v438
    %v440 = vmul.f32 %v310, %v439
    %v441 = vmul.f32 %v314, %v439
    %v442 = vmul.f32 %v318, %v439
    %v443 = vmul.f32 %v322, %v439
    %v444 = vmul.f32 %v326, %v439
    %v445 = vmul.f32 %v330, %v439
    %v446 = vmul.f32 %v334, %v439
    %v447 = vmul.f32 %v338, %v439
    %v448 = vmul.f32 %v342, %v439
    %v449 = vmul.f32 %v346, %v439
    %v450 = vmul.f32 %v350, %v439
    %v451 = vmul.f32 %v354, %v439
    %v452 = vmul.f32 %v358, %v439
    %v453 = vmul.f32 %v362, %v439
    %v454 = vmul.f32 %v366, %v439
    %v455 = vmul.f32 %v370, %v439
    %v456 = vmul.f32 %v374, %v439
    %v457 = vmul.f32 %v378, %v439
    %v458 = vmul.f32 %v382, %v439
    %v459 = vmul.f32 %v386, %v439
    %v460 = vmul.f32 %v390, %v439
    %v461 = vmul.f32 %v394, %v439
    %v462 = vmul.f32 %v398, %v439
    %v463 = vmul.f32 %v402, %v439
    %v464 = vmul.f32 %v406, %v439
    %v465 = vmul.f32 %v410, %v439
    %v466 = vmul.f32 %v414, %v439
    %v467 = vmul.f32 %v418, %v439
    %v468 = vmul.f32 %v422, %v439
    %v469 = vmul.f32 %v426, %v439
    %v470 = vmul.f32 %v430, %v439
    %v471 = vmul.f32 %v434, %v439
    %v472 = vadd.f32 %v275, %v440
    %v473 = vadd.f32 %v276, %v441
    %v474 = vadd.f32 %v277, %v442
    %v475 = vadd.f32 %v278, %v443
    %v476 = vadd.f32 %v279, %v444
    %v477 = vadd.f32 %v280, %v445
    %v478 = vadd.f32 %v281, %v446
    %v479 = vadd.f32 %v282, %v447
    %v480 = vadd.f32 %v283, %v448
    %v481 = vadd.f32 %v284, %v449
    %v482 = vadd.f32 %v285, %v450
    %v483 = vadd.f32 %v286, %v451
    %v484 = vadd.f32 %v287, %v452
    %v485 = vadd.f32 %v288, %v453
    %v486 = vadd.f32 %v289, %v454
    %v487 = vadd.f32 %v290, %v455
    %v488 = vadd.f32 %v291, %v456
    %v489 = vadd.f32 %v292, %v457
    %v490 = vadd.f32 %v293, %v458
    %v491 = vadd.f32 %v294, %v459
    %v492 = vadd.f32 %v295, %v460
    %v493 = vadd.f32 %v296, %v461
    %v494 = vadd.f32 %v297, %v462
    %v495 = vadd.f32 %v298, %v463
    %v496 = vadd.f32 %v299, %v464
    %v497 = vadd.f32 %v300, %v465
    %v498 = vadd.f32 %v301, %v466
    %v499 = vadd.f32 %v302, %v467
    %v500 = vadd.f32 %v303, %v468
    %v501 = vadd.f32 %v304, %v469
    %v502 = vadd.f32 %v305, %v470
    %v503 = vadd.f32 %v306, %v471
    %v504 = vld [vmem:[%s1 + $0x2] sm:$0x1]
    %505 = vset.pattern.permute.xlu0 2
    %506 = vperm.xlu0 %505, %v78
    %v507 = vpop.permute.xlu0 %506
    %509 = vset.pattern.permute.xlu0 2
    %510 = vperm.xlu0 %509, %v79
    %v511 = vpop.permute.xlu0 %510
    %513 = vset.pattern.permute.xlu0 2
    %514 = vperm.xlu0 %513, %v80
    %v515 = vpop.permute.xlu0 %514
    %517 = vset.pattern.permute.xlu0 2
    %518 = vperm.xlu0 %517, %v81
    %v519 = vpop.permute.xlu0 %518
    %521 = vset.pattern.permute.xlu0 2
    %522 = vperm.xlu0 %521, %v82
    %v523 = vpop.permute.xlu0 %522
    %525 = vset.pattern.permute.xlu0 2
    %526 = vperm.xlu0 %525, %v83
    %v527 = vpop.permute.xlu0 %526
    %529 = vset.pattern.permute.xlu0 2
    %530 = vperm.xlu0 %529, %v84
    %v531 = vpop.permute.xlu0 %530
    %533 = vset.pattern.permute.xlu0 2
    %534 = vperm.xlu0 %533, %v85
    %v535 = vpop.permute.xlu0 %534
    %537 = vset.pattern.permute.xlu0 2
    %538 = vperm.xlu0 %537, %v86
    %v539 = vpop.permute.xlu0 %538
    %541 = vset.pattern.permute.xlu0 2
    %542 = vperm.xlu0 %541, %v87
    %v543 = vpop.permute.xlu0 %542
    %545 = vset.pattern.permute.xlu0 2
    %546 = vperm.xlu0 %545, %v88
    %v547 = vpop.permute.xlu0 %546
    %549 = vset.pattern.permute.xlu0 2
    %550 = vperm.xlu0 %549, %v89
    %v551 = vpop.permute.xlu0 %550
    %553 = vset.pattern.permute.xlu0 2
    %554 = vperm.xlu0 %553, %v90
    %v555 = vpop.permute.xlu0 %554
    %557 = vset.pattern.permute.xlu0 2
    %558 = vperm.xlu0 %557, %v91
    %v559 = vpop.permute.xlu0 %558
    %561 = vset.pattern.permute.xlu0 2
    %562 = vperm.xlu0 %561, %v92
    %v563 = vpop.permute.xlu0 %562
    %565 = vset.pattern.permute.xlu0 2
    %566 = vperm.xlu0 %565, %v93
    %v567 = vpop.permute.xlu0 %566
    %569 = vset.pattern.permute.xlu0 2
    %570 = vperm.xlu0 %569, %v94
    %v571 = vpop.permute.xlu0 %570
    %573 = vset.pattern.permute.xlu0 2
    %574 = vperm.xlu0 %573, %v95
    %v575 = vpop.permute.xlu0 %574
    %577 = vset.pattern.permute.xlu0 2
    %578 = vperm.xlu0 %577, %v96
    %v579 = vpop.permute.xlu0 %578
    %581 = vset.pattern.permute.xlu0 2
    %582 = vperm.xlu0 %581, %v97
    %v583 = vpop.permute.xlu0 %582
    %585 = vset.pattern.permute.xlu0 2
    %586 = vperm.xlu0 %585, %v98
    %v587 = vpop.permute.xlu0 %586
    %589 = vset.pattern.permute.xlu0 2
    %590 = vperm.xlu0 %589, %v99
    %v591 = vpop.permute.xlu0 %590
    %593 = vset.pattern.permute.xlu0 2
    %594 = vperm.xlu0 %593, %v100
    %v595 = vpop.permute.xlu0 %594
    %597 = vset.pattern.permute.xlu0 2
    %598 = vperm.xlu0 %597, %v101
    %v599 = vpop.permute.xlu0 %598
    %601 = vset.pattern.permute.xlu0 2
    %602 = vperm.xlu0 %601, %v102
    %v603 = vpop.permute.xlu0 %602
    %605 = vset.pattern.permute.xlu0 2
    %606 = vperm.xlu0 %605, %v103
    %v607 = vpop.permute.xlu0 %606
    %609 = vset.pattern.permute.xlu0 2
    %610 = vperm.xlu0 %609, %v104
    %v611 = vpop.permute.xlu0 %610
    %613 = vset.pattern.permute.xlu0 2
    %614 = vperm.xlu0 %613, %v105
    %v615 = vpop.permute.xlu0 %614
    %617 = vset.pattern.permute.xlu0 2
    %618 = vperm.xlu0 %617, %v106
    %v619 = vpop.permute.xlu0 %618
    %621 = vset.pattern.permute.xlu0 2
    %622 = vperm.xlu0 %621, %v107
    %v623 = vpop.permute.xlu0 %622
    %625 = vset.pattern.permute.xlu0 2
    %626 = vperm.xlu0 %625, %v108
    %v627 = vpop.permute.xlu0 %626
    %629 = vset.pattern.permute.xlu0 2
    %630 = vperm.xlu0 %629, %v109
    %v631 = vpop.permute.xlu0 %630
    %v633 = vlaneseq
    %v634 = vshrl.u32 %v633, 7
    %v635 = vsub.s32 0, %v634
    %v636 = vrot.slane %v504, %v635
    %v637 = vmul.f32 %v507, %v636
    %v638 = vmul.f32 %v511, %v636
    %v639 = vmul.f32 %v515, %v636
    %v640 = vmul.f32 %v519, %v636
    %v641 = vmul.f32 %v523, %v636
    %v642 = vmul.f32 %v527, %v636
    %v643 = vmul.f32 %v531, %v636
    %v644 = vmul.f32 %v535, %v636
    %v645 = vmul.f32 %v539, %v636
    %v646 = vmul.f32 %v543, %v636
    %v647 = vmul.f32 %v547, %v636
    %v648 = vmul.f32 %v551, %v636
    %v649 = vmul.f32 %v555, %v636
    %v650 = vmul.f32 %v559, %v636
    %v651 = vmul.f32 %v563, %v636
    %v652 = vmul.f32 %v567, %v636
    %v653 = vmul.f32 %v571, %v636
    %v654 = vmul.f32 %v575, %v636
    %v655 = vmul.f32 %v579, %v636
    %v656 = vmul.f32 %v583, %v636
    %v657 = vmul.f32 %v587, %v636
    %v658 = vmul.f32 %v591, %v636
    %v659 = vmul.f32 %v595, %v636
    %v660 = vmul.f32 %v599, %v636
    %v661 = vmul.f32 %v603, %v636
    %v662 = vmul.f32 %v607, %v636
    %v663 = vmul.f32 %v611, %v636
    %v664 = vmul.f32 %v615, %v636
    %v665 = vmul.f32 %v619, %v636
    %v666 = vmul.f32 %v623, %v636
    %v667 = vmul.f32 %v627, %v636
    %v668 = vmul.f32 %v631, %v636
    %v669 = vadd.f32 %v472, %v637
    %v670 = vadd.f32 %v473, %v638
    %v671 = vadd.f32 %v474, %v639
    %v672 = vadd.f32 %v475, %v640
    %v673 = vadd.f32 %v476, %v641
    %v674 = vadd.f32 %v477, %v642
    %v675 = vadd.f32 %v478, %v643
    %v676 = vadd.f32 %v479, %v644
    %v677 = vadd.f32 %v480, %v645
    %v678 = vadd.f32 %v481, %v646
    %v679 = vadd.f32 %v482, %v647
    %v680 = vadd.f32 %v483, %v648
    %v681 = vadd.f32 %v484, %v649
    %v682 = vadd.f32 %v485, %v650
    %v683 = vadd.f32 %v486, %v651
    %v684 = vadd.f32 %v487, %v652
    %v685 = vadd.f32 %v488, %v653
    %v686 = vadd.f32 %v489, %v654
    %v687 = vadd.f32 %v490, %v655
    %v688 = vadd.f32 %v491, %v656
    %v689 = vadd.f32 %v492, %v657
    %v690 = vadd.f32 %v493, %v658
    %v691 = vadd.f32 %v494, %v659
    %v692 = vadd.f32 %v495, %v660
    %v693 = vadd.f32 %v496, %v661
    %v694 = vadd.f32 %v497, %v662
    %v695 = vadd.f32 %v498, %v663
    %v696 = vadd.f32 %v499, %v664
    %v697 = vadd.f32 %v500, %v665
    %v698 = vadd.f32 %v501, %v666
    %v699 = vadd.f32 %v502, %v667
    %v700 = vadd.f32 %v503, %v668
    %v701 = vld [vmem:[%s2] sm:$0x1]
    %v703 = vlaneseq
    %v704 = vshrl.u32 %v703, 7
    %v705 = vsub.s32 0, %v704
    %v706 = vrot.slane %v701, %v705
    %v708 = vadd.f32 %v669, %v706
    %v709 = vadd.f32 %v670, %v706
    %v710 = vadd.f32 %v671, %v706
    %v711 = vadd.f32 %v672, %v706
    %v712 = vadd.f32 %v673, %v706
    %v713 = vadd.f32 %v674, %v706
    %v714 = vadd.f32 %v675, %v706
    %v715 = vadd.f32 %v676, %v706
    %v716 = vadd.f32 %v677, %v706
    %v717 = vadd.f32 %v678, %v706
    %v718 = vadd.f32 %v679, %v706
    %v719 = vadd.f32 %v680, %v706
    %v720 = vadd.f32 %v681, %v706
    %v721 = vadd.f32 %v682, %v706
    %v722 = vadd.f32 %v683, %v706
    %v723 = vadd.f32 %v684, %v706
    %v724 = vadd.f32 %v685, %v706
    %v725 = vadd.f32 %v686, %v706
    %v726 = vadd.f32 %v687, %v706
    %v727 = vadd.f32 %v688, %v706
    %v728 = vadd.f32 %v689, %v706
    %v729 = vadd.f32 %v690, %v706
    %v730 = vadd.f32 %v691, %v706
    %v731 = vadd.f32 %v692, %v706
    %v732 = vadd.f32 %v693, %v706
    %v733 = vadd.f32 %v694, %v706
    %v734 = vadd.f32 %v695, %v706
    %v735 = vadd.f32 %v696, %v706
    %v736 = vadd.f32 %v697, %v706
    %v737 = vadd.f32 %v698, %v706
    %v738 = vadd.f32 %v699, %v706
    %v739 = vadd.f32 %v700, %v706
    %v740 = vmax.f32 %v708, 0.0
    %v741 = vmax.f32 %v709, 0.0
    %v742 = vmax.f32 %v710, 0.0
    %v743 = vmax.f32 %v711, 0.0
    %v744 = vmax.f32 %v712, 0.0
    %v745 = vmax.f32 %v713, 0.0
    %v746 = vmax.f32 %v714, 0.0
    %v747 = vmax.f32 %v715, 0.0
    %v748 = vmax.f32 %v716, 0.0
    %v749 = vmax.f32 %v717, 0.0
    %v750 = vmax.f32 %v718, 0.0
    %v751 = vmax.f32 %v719, 0.0
    %v752 = vmax.f32 %v720, 0.0
    %v753 = vmax.f32 %v721, 0.0
    %v754 = vmax.f32 %v722, 0.0
    %v755 = vmax.f32 %v723, 0.0
    %v756 = vmax.f32 %v724, 0.0
    %v757 = vmax.f32 %v725, 0.0
    %v758 = vmax.f32 %v726, 0.0
    %v759 = vmax.f32 %v727, 0.0
    %v760 = vmax.f32 %v728, 0.0
    %v761 = vmax.f32 %v729, 0.0
    %v762 = vmax.f32 %v730, 0.0
    %v763 = vmax.f32 %v731, 0.0
    %v764 = vmax.f32 %v732, 0.0
    %v765 = vmax.f32 %v733, 0.0
    %v766 = vmax.f32 %v734, 0.0
    %v767 = vmax.f32 %v735, 0.0
    %v768 = vmax.f32 %v736, 0.0
    %v769 = vmax.f32 %v737, 0.0
    %v770 = vmax.f32 %v738, 0.0
    %v771 = vmax.f32 %v739, 0.0
    %v772 = vpack.c.bf16 %v741, %v740
    %v773 = vpack.c.bf16 %v743, %v742
    %v774 = vpack.c.bf16 %v745, %v744
    %v775 = vpack.c.bf16 %v747, %v746
    %v776 = vpack.c.bf16 %v749, %v748
    %v777 = vpack.c.bf16 %v751, %v750
    %v778 = vpack.c.bf16 %v753, %v752
    %v779 = vpack.c.bf16 %v755, %v754
    %v780 = vpack.c.bf16 %v757, %v756
    %v781 = vpack.c.bf16 %v759, %v758
    %v782 = vpack.c.bf16 %v761, %v760
    %v783 = vpack.c.bf16 %v763, %v762
    %v784 = vpack.c.bf16 %v765, %v764
    %v785 = vpack.c.bf16 %v767, %v766
    %v786 = vpack.c.bf16 %v769, %v768
    %v787 = vpack.c.bf16 %v771, %v770
    %v788 = vld [vmem:[%s3] sm:$0xff]
    %v789 = vld [vmem:[%s3 + $0x8] sm:$0xff]
    %v790 = vld [vmem:[%s3 + $0x10] sm:$0xff]
    %v791 = vld [vmem:[%s3 + $0x18] sm:$0xff]
    %v792 = vld [vmem:[%s3 + $0x20] sm:$0xff]
    %v793 = vld [vmem:[%s3 + $0x28] sm:$0xff]
    %v794 = vld [vmem:[%s3 + $0x30] sm:$0xff]
    %v795 = vld [vmem:[%s3 + $0x38] sm:$0xff]
    %v796 = vld [vmem:[%s3 + $0x40] sm:$0xff]
    %v797 = vld [vmem:[%s3 + $0x48] sm:$0xff]
    %v798 = vld [vmem:[%s3 + $0x50] sm:$0xff]
    %v799 = vld [vmem:[%s3 + $0x58] sm:$0xff]
    %v800 = vld [vmem:[%s3 + $0x60] sm:$0xff]
    %v801 = vld [vmem:[%s3 + $0x68] sm:$0xff]
    %v802 = vld [vmem:[%s3 + $0x70] sm:$0xff]
    %v803 = vld [vmem:[%s3 + $0x78] sm:$0xff]
    %v804 = vld [vmem:[%s4] sm:$0x3]
    %v806 = vlaneseq
    %v807 = vshrl.u32 %v806, 7
    %v808 = vsub.s32 0, %v807
    %v809 = vrot.slane %v804, %v808
    %v810 = vlaneseq
    %v811 = vshrl.u32 %v810, 7
    %v812 = vsub.s32 1, %v811
    %v813 = vrot.slane %v804, %v812
    %v832 = vunpack.c.l.b16 %v788
    %v833 = vunpack.c.h.b16 %v788
    %v834 = vunpack.c.l.b16 %v789
    %v835 = vunpack.c.h.b16 %v789
    %v836 = vunpack.c.l.b16 %v790
    %v837 = vunpack.c.h.b16 %v790
    %v838 = vunpack.c.l.b16 %v791
    %v839 = vunpack.c.h.b16 %v791
    %v840 = vunpack.c.l.b16 %v792
    %v841 = vunpack.c.h.b16 %v792
    %v842 = vunpack.c.l.b16 %v793
    %v843 = vunpack.c.h.b16 %v793
    %v844 = vunpack.c.l.b16 %v794
    %v845 = vunpack.c.h.b16 %v794
    %v846 = vunpack.c.l.b16 %v795
    %v847 = vunpack.c.h.b16 %v795
    %v848 = vunpack.c.l.b16 %v796
    %v849 = vunpack.c.h.b16 %v796
    %v850 = vunpack.c.l.b16 %v797
    %v851 = vunpack.c.h.b16 %v797
    %v852 = vunpack.c.l.b16 %v798
    %v853 = vunpack.c.h.b16 %v798
    %v854 = vunpack.c.l.b16 %v799
    %v855 = vunpack.c.h.b16 %v799
    %v856 = vunpack.c.l.b16 %v800
    %v857 = vunpack.c.h.b16 %v800
    %v858 = vunpack.c.l.b16 %v801
    %v859 = vunpack.c.h.b16 %v801
    %v860 = vunpack.c.l.b16 %v802
    %v861 = vunpack.c.h.b16 %v802
    %v862 = vunpack.c.l.b16 %v803
    %v863 = vunpack.c.h.b16 %v803
    %v864 = vpack.c.b16 %v834, %v832
    %v865 = vpack.c.b16 %v835, %v833
    %v866 = vpack.c.b16 %v838, %v836
    %v867 = vpack.c.b16 %v839, %v837
    %v868 = vpack.c.b16 %v842, %v840
    %v869 = vpack.c.b16 %v843, %v841
    %v870 = vpack.c.b16 %v846, %v844
    %v871 = vpack.c.b16 %v847, %v845
    %v872 = vpack.c.b16 %v850, %v848
    %v873 = vpack.c.b16 %v851, %v849
    %v874 = vpack.c.b16 %v854, %v852
    %v875 = vpack.c.b16 %v855, %v853
    %v876 = vpack.c.b16 %v858, %v856
    %v877 = vpack.c.b16 %v859, %v857
    %v878 = vpack.c.b16 %v862, %v860
    %v879 = vpack.c.b16 %v863, %v861
    %896 = vmatprep.subr.bf16.mxu0 %v865
    %897 = vmatpush1.bf16.msra.mxu0 %v864
    %898 = vmatprep.subr.bf16.mxu0 %v867
    %899 = vmatpush1.bf16.msra.mxu0 %v866
    %900 = vmatprep.subr.bf16.mxu0 %v869
    %901 = vmatpush1.bf16.msra.mxu0 %v868
    %902 = vmatprep.subr.bf16.mxu0 %v871
    %903 = vmatpush1.bf16.msra.mxu0 %v870
    %904 = vmatprep.subr.bf16.mxu0 %v873
    %905 = vmatpush1.bf16.msra.mxu0 %v872
    %906 = vmatprep.subr.bf16.mxu0 %v875
    %907 = vmatpush1.bf16.msra.mxu0 %v874
    %908 = vmatprep.subr.bf16.mxu0 %v877
    %909 = vmatpush1.bf16.msra.mxu0 %v876
    %910 = vmatprep.subr.bf16.mxu0 %v879
    %911 = vmatpush1.bf16.msra.mxu0 %v878
    %912 = vmatprep.subr.bf16.mxu0 0
    %913 = vmatpush1.bf16.msra.mxu0 0
    %914 = vmatprep.subr.bf16.mxu0 0
    %915 = vmatpush1.bf16.msra.mxu0 0
    %916 = vmatprep.subr.bf16.mxu0 0
    %917 = vmatpush1.bf16.msra.mxu0 0
    %918 = vmatprep.subr.bf16.mxu0 0
    %919 = vmatpush1.bf16.msra.mxu0 0
    %920 = vmatprep.subr.bf16.mxu0 0
    %921 = vmatpush1.bf16.msra.mxu0 0
    %922 = vmatprep.subr.bf16.mxu0 0
    %923 = vmatpush1.bf16.msra.mxu0 0
    %924 = vmatprep.subr.bf16.mxu0 0
    %925 = vmatpush1.bf16.msra.mxu0 0
    %926 = vmatprep.subr.bf16.mxu0 0
    %927 = vmatpush1.bf16.msra.mxu0 0
    %928 = vmatprep.mubr.bf16.mxu0 0
    %929 = vmatmul.mubr.bf16.gmra.mrb[0].mxu0 %v772
    %v930 = vpop.f32.mrb[0].mxu0
    %v931 = vadd.f32 %v809, %v930
    %v932 = vpop.f32.mrb[0].mxu0
    %v933 = vadd.f32 %v813, %v932
    %v934 = vpop.f32.mrb[0].mxu0
    %v935 = vadd.f32 %v809, %v934
    %v936 = vpop.f32.mrb[0].mxu0
    %v937 = vadd.f32 %v813, %v936
    %938 = vmatprep.mubr.bf16.mxu0 0
    %939 = vmatmul.mubr.bf16.gmra.mrb[0].mxu0 %v773
    %v940 = vpop.f32.mrb[0].mxu0
    %v941 = vadd.f32 %v809, %v940
    %v942 = vpop.f32.mrb[0].mxu0
    %v943 = vadd.f32 %v813, %v942
    %v944 = vpop.f32.mrb[0].mxu0
    %v945 = vadd.f32 %v809, %v944
    %v946 = vpop.f32.mrb[0].mxu0
    %v947 = vadd.f32 %v813, %v946
    %948 = vmatprep.mubr.bf16.mxu0 0
    %949 = vmatmul.mubr.bf16.gmra.mrb[0].mxu0 %v774
    %v950 = vpop.f32.mrb[0].mxu0
    %v951 = vadd.f32 %v809, %v950
    %v952 = vpop.f32.mrb[0].mxu0
    %v953 = vadd.f32 %v813, %v952
    %v954 = vpop.f32.mrb[0].mxu0
    %v955 = vadd.f32 %v809, %v954
    %v956 = vpop.f32.mrb[0].mxu0
    %v957 = vadd.f32 %v813, %v956
    %958 = vmatprep.mubr.bf16.mxu0 0
    %959 = vmatmul.mubr.bf16.gmra.mrb[0].mxu0 %v775
    %v960 = vpop.f32.mrb[0].mxu0
    %v961 = vadd.f32 %v809, %v960
    %v962 = vpop.f32.mrb[0].mxu0
    %v963 = vadd.f32 %v813, %v962
    %v964 = vpop.f32.mrb[0].mxu0
    %v965 = vadd.f32 %v809, %v964
    %v966 = vpop.f32.mrb[0].mxu0
    %v967 = vadd.f32 %v813, %v966
    %968 = vmatprep.mubr.bf16.mxu0 0
    %969 = vmatmul.mubr.bf16.gmra.mrb[0].mxu0 %v776
    %v970 = vpop.f32.mrb[0].mxu0
    %v971 = vadd.f32 %v809, %v970
    %v972 = vpop.f32.mrb[0].mxu0
    %v973 = vadd.f32 %v813, %v972
    %v974 = vpop.f32.mrb[0].mxu0
    %v975 = vadd.f32 %v809, %v974
    %v976 = vpop.f32.mrb[0].mxu0
    %v977 = vadd.f32 %v813, %v976
    %978 = vmatprep.mubr.bf16.mxu0 0
    %979 = vmatmul.mubr.bf16.gmra.mrb[0].mxu0 %v777
    %v980 = vpop.f32.mrb[0].mxu0
    %v981 = vadd.f32 %v809, %v980
    %v982 = vpop.f32.mrb[0].mxu0
    %v983 = vadd.f32 %v813, %v982
    %v984 = vpop.f32.mrb[0].mxu0
    %v985 = vadd.f32 %v809, %v984
    %v986 = vpop.f32.mrb[0].mxu0
    %v987 = vadd.f32 %v813, %v986
    %988 = vmatprep.mubr.bf16.mxu0 0
    %989 = vmatmul.mubr.bf16.gmra.mrb[0].mxu0 %v778
    %v990 = vpop.f32.mrb[0].mxu0
    %v991 = vadd.f32 %v809, %v990
    %v992 = vpop.f32.mrb[0].mxu0
    %v993 = vadd.f32 %v813, %v992
    %v994 = vpop.f32.mrb[0].mxu0
    %v995 = vadd.f32 %v809, %v994
    %v996 = vpop.f32.mrb[0].mxu0
    %v997 = vadd.f32 %v813, %v996
    %998 = vmatprep.mubr.bf16.mxu0 0
    %999 = vmatmul.mubr.bf16.gmra.mrb[0].mxu0 %v779
    %v1000 = vpop.f32.mrb[0].mxu0
    %v1001 = vadd.f32 %v809, %v1000
    %v1002 = vpop.f32.mrb[0].mxu0
    %v1003 = vadd.f32 %v813, %v1002
    %v1004 = vpop.f32.mrb[0].mxu0
    %v1005 = vadd.f32 %v809, %v1004
    %v1006 = vpop.f32.mrb[0].mxu0
    %v1007 = vadd.f32 %v813, %v1006
    %1008 = vmatprep.mubr.bf16.mxu0 0
    %1009 = vmatmul.mubr.bf16.gmra.mrb[0].mxu0 %v780
    %v1010 = vpop.f32.mrb[0].mxu0
    %v1011 = vadd.f32 %v809, %v1010
    %v1012 = vpop.f32.mrb[0].mxu0
    %v1013 = vadd.f32 %v813, %v1012
    %v1014 = vpop.f32.mrb[0].mxu0
    %v1015 = vadd.f32 %v809, %v1014
    %v1016 = vpop.f32.mrb[0].mxu0
    %v1017 = vadd.f32 %v813, %v1016
    %1018 = vmatprep.mubr.bf16.mxu0 0
    %1019 = vmatmul.mubr.bf16.gmra.mrb[0].mxu0 %v781
    %v1020 = vpop.f32.mrb[0].mxu0
    %v1021 = vadd.f32 %v809, %v1020
    %v1022 = vpop.f32.mrb[0].mxu0
    %v1023 = vadd.f32 %v813, %v1022
    %v1024 = vpop.f32.mrb[0].mxu0
    %v1025 = vadd.f32 %v809, %v1024
    %v1026 = vpop.f32.mrb[0].mxu0
    %v1027 = vadd.f32 %v813, %v1026
    %1028 = vmatprep.mubr.bf16.mxu0 0
    %1029 = vmatmul.mubr.bf16.gmra.mrb[0].mxu0 %v782
    %v1030 = vpop.f32.mrb[0].mxu0
    %v1031 = vadd.f32 %v809, %v1030
    %v1032 = vpop.f32.mrb[0].mxu0
    %v1033 = vadd.f32 %v813, %v1032
    %v1034 = vpop.f32.mrb[0].mxu0
    %v1035 = vadd.f32 %v809, %v1034
    %v1036 = vpop.f32.mrb[0].mxu0
    %v1037 = vadd.f32 %v813, %v1036
    %1038 = vmatprep.mubr.bf16.mxu0 0
    %1039 = vmatmul.mubr.bf16.gmra.mrb[0].mxu0 %v783
    %v1040 = vpop.f32.mrb[0].mxu0
    %v1041 = vadd.f32 %v809, %v1040
    %v1042 = vpop.f32.mrb[0].mxu0
    %v1043 = vadd.f32 %v813, %v1042
    %v1044 = vpop.f32.mrb[0].mxu0
    %v1045 = vadd.f32 %v809, %v1044
    %v1046 = vpop.f32.mrb[0].mxu0
    %v1047 = vadd.f32 %v813, %v1046
    %1048 = vmatprep.mubr.bf16.mxu0 0
    %1049 = vmatmul.mubr.bf16.gmra.mrb[0].mxu0 %v784
    %v1050 = vpop.f32.mrb[0].mxu0
    %v1051 = vadd.f32 %v809, %v1050
    %v1052 = vpop.f32.mrb[0].mxu0
    %v1053 = vadd.f32 %v813, %v1052
    %v1054 = vpop.f32.mrb[0].mxu0
    %v1055 = vadd.f32 %v809, %v1054
    %v1056 = vpop.f32.mrb[0].mxu0
    %v1057 = vadd.f32 %v813, %v1056
    %1058 = vmatprep.mubr.bf16.mxu0 0
    %1059 = vmatmul.mubr.bf16.gmra.mrb[0].mxu0 %v785
    %v1060 = vpop.f32.mrb[0].mxu0
    %v1061 = vadd.f32 %v809, %v1060
    %v1062 = vpop.f32.mrb[0].mxu0
    %v1063 = vadd.f32 %v813, %v1062
    %v1064 = vpop.f32.mrb[0].mxu0
    %v1065 = vadd.f32 %v809, %v1064
    %v1066 = vpop.f32.mrb[0].mxu0
    %v1067 = vadd.f32 %v813, %v1066
    %1068 = vmatprep.mubr.bf16.mxu0 0
    %1069 = vmatmul.mubr.bf16.gmra.mrb[0].mxu0 %v786
    %v1070 = vpop.f32.mrb[0].mxu0
    %v1071 = vadd.f32 %v809, %v1070
    %v1072 = vpop.f32.mrb[0].mxu0
    %v1073 = vadd.f32 %v813, %v1072
    %v1074 = vpop.f32.mrb[0].mxu0
    %v1075 = vadd.f32 %v809, %v1074
    %v1076 = vpop.f32.mrb[0].mxu0
    %v1077 = vadd.f32 %v813, %v1076
    %1078 = vmatprep.mubr.bf16.mxu0 0
    %1079 = vmatmul.mubr.bf16.gmra.mrb[0].mxu0 %v787
    %v1080 = vpop.f32.mrb[0].mxu0
    %v1081 = vadd.f32 %v809, %v1080
    %v1082 = vpop.f32.mrb[0].mxu0
    %v1083 = vadd.f32 %v813, %v1082
    %v1084 = vpop.f32.mrb[0].mxu0
    %v1085 = vadd.f32 %v809, %v1084
    %v1086 = vpop.f32.mrb[0].mxu0
    %v1087 = vadd.f32 %v813, %v1086
    %1088 = vdwg.mxu0
    %v1089 = vmax.f32 %v931, %v935
    %v1090 = vmax.f32 %v1089, %v941
    %v1091 = vmax.f32 %v1090, %v945
    %v1092 = vrot.slane %v1091, 4
    %v1093 = vmax.f32 %v1091, %v1092
    %v1094 = vrot.slane %v1093, 2
    %v1095 = vmax.f32 %v1093, %v1094
    %v1096 = vrot.slane %v1095, 1
    %v1097 = vmax.f32 %v1095, %v1096
    %v1098 = vmax.f32 %v933, %v937
    %v1099 = vmax.f32 %v1098, %v943
    %v1100 = vmax.f32 %v1099, %v947
    %v1101 = vrot.slane %v1100, 4
    %v1102 = vmax.f32 %v1100, %v1101
    %v1103 = vrot.slane %v1102, 2
    %v1104 = vmax.f32 %v1102, %v1103
    %v1105 = vrot.slane %v1104, 1
    %v1106 = vmax.f32 %v1104, %v1105
    %v1107 = vmax.f32 %v951, %v955
    %v1108 = vmax.f32 %v1107, %v961
    %v1109 = vmax.f32 %v1108, %v965
    %v1110 = vrot.slane %v1109, 4
    %v1111 = vmax.f32 %v1109, %v1110
    %v1112 = vrot.slane %v1111, 2
    %v1113 = vmax.f32 %v1111, %v1112
    %v1114 = vrot.slane %v1113, 1
    %v1115 = vmax.f32 %v1113, %v1114
    %v1116 = vmax.f32 %v953, %v957
    %v1117 = vmax.f32 %v1116, %v963
    %v1118 = vmax.f32 %v1117, %v967
    %v1119 = vrot.slane %v1118, 4
    %v1120 = vmax.f32 %v1118, %v1119
    %v1121 = vrot.slane %v1120, 2
    %v1122 = vmax.f32 %v1120, %v1121
    %v1123 = vrot.slane %v1122, 1
    %v1124 = vmax.f32 %v1122, %v1123
    %v1125 = vmax.f32 %v971, %v975
    %v1126 = vmax.f32 %v1125, %v981
    %v1127 = vmax.f32 %v1126, %v985
    %v1128 = vrot.slane %v1127, 4
    %v1129 = vmax.f32 %v1127, %v1128
    %v1130 = vrot.slane %v1129, 2
    %v1131 = vmax.f32 %v1129, %v1130
    %v1132 = vrot.slane %v1131, 1
    %v1133 = vmax.f32 %v1131, %v1132
    %v1134 = vmax.f32 %v973, %v977
    %v1135 = vmax.f32 %v1134, %v983
    %v1136 = vmax.f32 %v1135, %v987
    %v1137 = vrot.slane %v1136, 4
    %v1138 = vmax.f32 %v1136, %v1137
    %v1139 = vrot.slane %v1138, 2
    %v1140 = vmax.f32 %v1138, %v1139
    %v1141 = vrot.slane %v1140, 1
    %v1142 = vmax.f32 %v1140, %v1141
    %v1143 = vmax.f32 %v991, %v995
    %v1144 = vmax.f32 %v1143, %v1001
    %v1145 = vmax.f32 %v1144, %v1005
    %v1146 = vrot.slane %v1145, 4
    %v1147 = vmax.f32 %v1145, %v1146
    %v1148 = vrot.slane %v1147, 2
    %v1149 = vmax.f32 %v1147, %v1148
    %v1150 = vrot.slane %v1149, 1
    %v1151 = vmax.f32 %v1149, %v1150
    %v1152 = vmax.f32 %v993, %v997
    %v1153 = vmax.f32 %v1152, %v1003
    %v1154 = vmax.f32 %v1153, %v1007
    %v1155 = vrot.slane %v1154, 4
    %v1156 = vmax.f32 %v1154, %v1155
    %v1157 = vrot.slane %v1156, 2
    %v1158 = vmax.f32 %v1156, %v1157
    %v1159 = vrot.slane %v1158, 1
    %v1160 = vmax.f32 %v1158, %v1159
    %v1161 = vmax.f32 %v1011, %v1015
    %v1162 = vmax.f32 %v1161, %v1021
    %v1163 = vmax.f32 %v1162, %v1025
    %v1164 = vrot.slane %v1163, 4
    %v1165 = vmax.f32 %v1163, %v1164
    %v1166 = vrot.slane %v1165, 2
    %v1167 = vmax.f32 %v1165, %v1166
    %v1168 = vrot.slane %v1167, 1
    %v1169 = vmax.f32 %v1167, %v1168
    %v1170 = vmax.f32 %v1013, %v1017
    %v1171 = vmax.f32 %v1170, %v1023
    %v1172 = vmax.f32 %v1171, %v1027
    %v1173 = vrot.slane %v1172, 4
    %v1174 = vmax.f32 %v1172, %v1173
    %v1175 = vrot.slane %v1174, 2
    %v1176 = vmax.f32 %v1174, %v1175
    %v1177 = vrot.slane %v1176, 1
    %v1178 = vmax.f32 %v1176, %v1177
    %v1179 = vmax.f32 %v1031, %v1035
    %v1180 = vmax.f32 %v1179, %v1041
    %v1181 = vmax.f32 %v1180, %v1045
    %v1182 = vrot.slane %v1181, 4
    %v1183 = vmax.f32 %v1181, %v1182
    %v1184 = vrot.slane %v1183, 2
    %v1185 = vmax.f32 %v1183, %v1184
    %v1186 = vrot.slane %v1185, 1
    %v1187 = vmax.f32 %v1185, %v1186
    %v1188 = vmax.f32 %v1033, %v1037
    %v1189 = vmax.f32 %v1188, %v1043
    %v1190 = vmax.f32 %v1189, %v1047
    %v1191 = vrot.slane %v1190, 4
    %v1192 = vmax.f32 %v1190, %v1191
    %v1193 = vrot.slane %v1192, 2
    %v1194 = vmax.f32 %v1192, %v1193
    %v1195 = vrot.slane %v1194, 1
    %v1196 = vmax.f32 %v1194, %v1195
    %v1197 = vmax.f32 %v1051, %v1055
    %v1198 = vmax.f32 %v1197, %v1061
    %v1199 = vmax.f32 %v1198, %v1065
    %v1200 = vrot.slane %v1199, 4
    %v1201 = vmax.f32 %v1199, %v1200
    %v1202 = vrot.slane %v1201, 2
    %v1203 = vmax.f32 %v1201, %v1202
    %v1204 = vrot.slane %v1203, 1
    %v1205 = vmax.f32 %v1203, %v1204
    %v1206 = vmax.f32 %v1053, %v1057
    %v1207 = vmax.f32 %v1206, %v1063
    %v1208 = vmax.f32 %v1207, %v1067
    %v1209 = vrot.slane %v1208, 4
    %v1210 = vmax.f32 %v1208, %v1209
    %v1211 = vrot.slane %v1210, 2
    %v1212 = vmax.f32 %v1210, %v1211
    %v1213 = vrot.slane %v1212, 1
    %v1214 = vmax.f32 %v1212, %v1213
    %v1215 = vmax.f32 %v1071, %v1075
    %v1216 = vmax.f32 %v1215, %v1081
    %v1217 = vmax.f32 %v1216, %v1085
    %v1218 = vrot.slane %v1217, 4
    %v1219 = vmax.f32 %v1217, %v1218
    %v1220 = vrot.slane %v1219, 2
    %v1221 = vmax.f32 %v1219, %v1220
    %v1222 = vrot.slane %v1221, 1
    %v1223 = vmax.f32 %v1221, %v1222
    %v1224 = vmax.f32 %v1073, %v1077
    %v1225 = vmax.f32 %v1224, %v1083
    %v1226 = vmax.f32 %v1225, %v1087
    %v1227 = vrot.slane %v1226, 4
    %v1228 = vmax.f32 %v1226, %v1227
    %v1229 = vrot.slane %v1228, 2
    %v1230 = vmax.f32 %v1228, %v1229
    %v1231 = vrot.slane %v1230, 1
    %v1232 = vmax.f32 %v1230, %v1231
    %v1233 = vpack.c.bf16 %v1097, %v1097
    %v1234 = vpack.c.bf16 %v1106, %v1106
    %v1235 = vpack.c.bf16 %v1115, %v1115
    %v1236 = vpack.c.bf16 %v1124, %v1124
    %v1237 = vpack.c.bf16 %v1133, %v1133
    %v1238 = vpack.c.bf16 %v1142, %v1142
    %v1239 = vpack.c.bf16 %v1151, %v1151
    %v1240 = vpack.c.bf16 %v1160, %v1160
    %v1241 = vpack.c.bf16 %v1169, %v1169
    %v1242 = vpack.c.bf16 %v1178, %v1178
    %v1243 = vpack.c.bf16 %v1187, %v1187
    %v1244 = vpack.c.bf16 %v1196, %v1196
    %v1245 = vpack.c.bf16 %v1205, %v1205
    %v1246 = vpack.c.bf16 %v1214, %v1214
    %v1247 = vpack.c.bf16 %v1223, %v1223
    %v1248 = vpack.c.bf16 %v1232, %v1232
    %v1249 = vld [vmem:[#allocation2] sm:$0xff]
    %v1250 = vld [vmem:[#allocation2 + $0x8] sm:$0xff]
    %v1251 = vld [vmem:[#allocation2 + $0x10] sm:$0xff]
    %v1252 = vld [vmem:[#allocation2 + $0x18] sm:$0xff]
    %v1253 = vld [vmem:[#allocation2 + $0x20] sm:$0xff]
    %v1254 = vld [vmem:[#allocation2 + $0x28] sm:$0xff]
    %v1255 = vld [vmem:[#allocation2 + $0x30] sm:$0xff]
    %v1256 = vld [vmem:[#allocation2 + $0x38] sm:$0xff]
    %v1257 = vld [vmem:[#allocation2 + $0x40] sm:$0xff]
    %v1258 = vld [vmem:[#allocation2 + $0x48] sm:$0xff]
    %v1259 = vld [vmem:[#allocation2 + $0x50] sm:$0xff]
    %v1260 = vld [vmem:[#allocation2 + $0x58] sm:$0xff]
    %v1261 = vld [vmem:[#allocation2 + $0x60] sm:$0xff]
    %v1262 = vld [vmem:[#allocation2 + $0x68] sm:$0xff]
    %v1263 = vld [vmem:[#allocation2 + $0x70] sm:$0xff]
    %v1264 = vld [vmem:[#allocation2 + $0x78] sm:$0xff]
    %v1265 = vld [vmem:[#allocation2 + $0x80] sm:$0xff]
    %v1266 = vld [vmem:[#allocation2 + $0x88] sm:$0xff]
    %v1267 = vld [vmem:[#allocation2 + $0x90] sm:$0xff]
    %v1268 = vld [vmem:[#allocation2 + $0x98] sm:$0xff]
    %v1269 = vld [vmem:[#allocation2 + $0xa0] sm:$0xff]
    %v1270 = vld [vmem:[#allocation2 + $0xa8] sm:$0xff]
    %v1271 = vld [vmem:[#allocation2 + $0xb0] sm:$0xff]
    %v1272 = vld [vmem:[#allocation2 + $0xb8] sm:$0xff]
    %v1273 = vld [vmem:[#allocation2 + $0xc0] sm:$0xff]
    %v1274 = vld [vmem:[#allocation2 + $0xc8] sm:$0xff]
    %v1275 = vld [vmem:[#allocation2 + $0xd0] sm:$0xff]
    %v1276 = vld [vmem:[#allocation2 + $0xd8] sm:$0xff]
    %v1277 = vld [vmem:[#allocation2 + $0xe0] sm:$0xff]
    %v1278 = vld [vmem:[#allocation2 + $0xe8] sm:$0xff]
    %v1279 = vld [vmem:[#allocation2 + $0xf0] sm:$0xff]
    %v1280 = vld [vmem:[#allocation2 + $0xf8] sm:$0xff]
    %v1281 = vld [vmem:[#allocation2 + $0x100] sm:$0xff]
    %v1282 = vld [vmem:[#allocation2 + $0x108] sm:$0xff]
    %v1283 = vld [vmem:[#allocation2 + $0x110] sm:$0xff]
    %v1284 = vld [vmem:[#allocation2 + $0x118] sm:$0xff]
    %v1285 = vld [vmem:[#allocation2 + $0x120] sm:$0xff]
    %v1286 = vld [vmem:[#allocation2 + $0x128] sm:$0xff]
    %v1287 = vld [vmem:[#allocation2 + $0x130] sm:$0xff]
    %v1288 = vld [vmem:[#allocation2 + $0x138] sm:$0xff]
    %v1289 = vld [vmem:[#allocation2 + $0x140] sm:$0xff]
    %v1290 = vld [vmem:[#allocation2 + $0x148] sm:$0xff]
    %v1291 = vld [vmem:[#allocation2 + $0x150] sm:$0xff]
    %v1292 = vld [vmem:[#allocation2 + $0x158] sm:$0xff]
    %v1293 = vld [vmem:[#allocation2 + $0x160] sm:$0xff]
    %v1294 = vld [vmem:[#allocation2 + $0x168] sm:$0xff]
    %v1295 = vld [vmem:[#allocation2 + $0x170] sm:$0xff]
    %v1296 = vld [vmem:[#allocation2 + $0x178] sm:$0xff]
    %v1297 = vld [vmem:[#allocation2 + $0x180] sm:$0xff]
    %v1298 = vld [vmem:[#allocation2 + $0x188] sm:$0xff]
    %v1299 = vld [vmem:[#allocation2 + $0x190] sm:$0xff]
    %v1300 = vld [vmem:[#allocation2 + $0x198] sm:$0xff]
    %v1301 = vld [vmem:[#allocation2 + $0x1a0] sm:$0xff]
    %v1302 = vld [vmem:[#allocation2 + $0x1a8] sm:$0xff]
    %v1303 = vld [vmem:[#allocation2 + $0x1b0] sm:$0xff]
    %v1304 = vld [vmem:[#allocation2 + $0x1b8] sm:$0xff]
    %v1305 = vld [vmem:[#allocation2 + $0x1c0] sm:$0xff]
    %v1306 = vld [vmem:[#allocation2 + $0x1c8] sm:$0xff]
    %v1307 = vld [vmem:[#allocation2 + $0x1d0] sm:$0xff]
    %v1308 = vld [vmem:[#allocation2 + $0x1d8] sm:$0xff]
    %v1309 = vld [vmem:[#allocation2 + $0x1e0] sm:$0xff]
    %v1310 = vld [vmem:[#allocation2 + $0x1e8] sm:$0xff]
    %v1311 = vld [vmem:[#allocation2 + $0x1f0] sm:$0xff]
    %v1312 = vld [vmem:[#allocation2 + $0x1f8] sm:$0xff]
    %v1329 = vunpack.c.l.b16 %v1233
    %v1330 = vunpack.c.l.b16 %v1234
    %v1331 = vunpack.c.l.b16 %v1235
    %v1332 = vunpack.c.l.b16 %v1236
    %v1333 = vunpack.c.l.b16 %v1237
    %v1334 = vunpack.c.l.b16 %v1238
    %v1335 = vunpack.c.l.b16 %v1239
    %v1336 = vunpack.c.l.b16 %v1240
    %v1337 = vunpack.c.l.b16 %v1241
    %v1338 = vunpack.c.l.b16 %v1242
    %v1339 = vunpack.c.l.b16 %v1243
    %v1340 = vunpack.c.l.b16 %v1244
    %v1341 = vunpack.c.l.b16 %v1245
    %v1342 = vunpack.c.l.b16 %v1246
    %v1343 = vunpack.c.l.b16 %v1247
    %v1344 = vunpack.c.l.b16 %v1248
    %vm1345 = vcmask 1041409
    %v1346 = vsel %vm1345, %v1331, %v1329
    %vm1347 = vcmask 1042434
    %v1348 = vsel %vm1347, %v1333, %v1346
    %vm1349 = vcmask 1043459
    %v1350 = vsel %vm1349, %v1335, %v1348
    %vm1351 = vcmask 1044484
    %v1352 = vsel %vm1351, %v1337, %v1350
    %vm1353 = vcmask 1045509
    %v1354 = vsel %vm1353, %v1339, %v1352
    %vm1355 = vcmask 1046534
    %v1356 = vsel %vm1355, %v1341, %v1354
    %vm1357 = vcmask 1047559
    %v1358 = vsel %vm1357, %v1343, %v1356
    %v1359 = vsel %vm1345, %v1332, %v1330
    %v1360 = vsel %vm1347, %v1334, %v1359
    %v1361 = vsel %vm1349, %v1336, %v1360
    %v1362 = vsel %vm1351, %v1338, %v1361
    %v1363 = vsel %vm1353, %v1340, %v1362
    %v1364 = vsel %vm1355, %v1342, %v1363
    %v1365 = vsel %vm1357, %v1344, %v1364
    %v1366 = vpack.c.b16 %v1358, %v1358
    %v1367 = vpack.c.b16 %v1365, %v1365
    %v1434 = vunpack.c.l.b16 %v1249
    %v1435 = vunpack.c.h.b16 %v1249
    %v1436 = vunpack.c.l.b16 %v1250
    %v1437 = vunpack.c.h.b16 %v1250
    %v1438 = vunpack.c.l.b16 %v1251
    %v1439 = vunpack.c.h.b16 %v1251
    %v1440 = vunpack.c.l.b16 %v1252
    %v1441 = vunpack.c.h.b16 %v1252
    %v1442 = vunpack.c.l.b16 %v1253
    %v1443 = vunpack.c.h.b16 %v1253
    %v1444 = vunpack.c.l.b16 %v1254
    %v1445 = vunpack.c.h.b16 %v1254
    %v1446 = vunpack.c.l.b16 %v1255
    %v1447 = vunpack.c.h.b16 %v1255
    %v1448 = vunpack.c.l.b16 %v1256
    %v1449 = vunpack.c.h.b16 %v1256
    %v1450 = vunpack.c.l.b16 %v1257
    %v1451 = vunpack.c.h.b16 %v1257
    %v1452 = vunpack.c.l.b16 %v1258
    %v1453 = vunpack.c.h.b16 %v1258
    %v1454 = vunpack.c.l.b16 %v1259
    %v1455 = vunpack.c.h.b16 %v1259
    %v1456 = vunpack.c.l.b16 %v1260
    %v1457 = vunpack.c.h.b16 %v1260
    %v1458 = vunpack.c.l.b16 %v1261
    %v1459 = vunpack.c.h.b16 %v1261
    %v1460 = vunpack.c.l.b16 %v1262
    %v1461 = vunpack.c.h.b16 %v1262
    %v1462 = vunpack.c.l.b16 %v1263
    %v1463 = vunpack.c.h.b16 %v1263
    %v1464 = vunpack.c.l.b16 %v1264
    %v1465 = vunpack.c.h.b16 %v1264
    %v1466 = vunpack.c.l.b16 %v1265
    %v1467 = vunpack.c.h.b16 %v1265
    %v1468 = vunpack.c.l.b16 %v1266
    %v1469 = vunpack.c.h.b16 %v1266
    %v1470 = vunpack.c.l.b16 %v1267
    %v1471 = vunpack.c.h.b16 %v1267
    %v1472 = vunpack.c.l.b16 %v1268
    %v1473 = vunpack.c.h.b16 %v1268
    %v1474 = vunpack.c.l.b16 %v1269
    %v1475 = vunpack.c.h.b16 %v1269
    %v1476 = vunpack.c.l.b16 %v1270
    %v1477 = vunpack.c.h.b16 %v1270
    %v1478 = vunpack.c.l.b16 %v1271
    %v1479 = vunpack.c.h.b16 %v1271
    %v1480 = vunpack.c.l.b16 %v1272
    %v1481 = vunpack.c.h.b16 %v1272
    %v1482 = vunpack.c.l.b16 %v1273
    %v1483 = vunpack.c.h.b16 %v1273
    %v1484 = vunpack.c.l.b16 %v1274
    %v1485 = vunpack.c.h.b16 %v1274
    %v1486 = vunpack.c.l.b16 %v1275
    %v1487 = vunpack.c.h.b16 %v1275
    %v1488 = vunpack.c.l.b16 %v1276
    %v1489 = vunpack.c.h.b16 %v1276
    %v1490 = vunpack.c.l.b16 %v1277
    %v1491 = vunpack.c.h.b16 %v1277
    %v1492 = vunpack.c.l.b16 %v1278
    %v1493 = vunpack.c.h.b16 %v1278
    %v1494 = vunpack.c.l.b16 %v1279
    %v1495 = vunpack.c.h.b16 %v1279
    %v1496 = vunpack.c.l.b16 %v1280
    %v1497 = vunpack.c.h.b16 %v1280
    %v1498 = vunpack.c.l.b16 %v1281
    %v1499 = vunpack.c.h.b16 %v1281
    %v1500 = vunpack.c.l.b16 %v1282
    %v1501 = vunpack.c.h.b16 %v1282
    %v1502 = vunpack.c.l.b16 %v1283
    %v1503 = vunpack.c.h.b16 %v1283
    %v1504 = vunpack.c.l.b16 %v1284
    %v1505 = vunpack.c.h.b16 %v1284
    %v1506 = vunpack.c.l.b16 %v1285
    %v1507 = vunpack.c.h.b16 %v1285
    %v1508 = vunpack.c.l.b16 %v1286
    %v1509 = vunpack.c.h.b16 %v1286
    %v1510 = vunpack.c.l.b16 %v1287
    %v1511 = vunpack.c.h.b16 %v1287
    %v1512 = vunpack.c.l.b16 %v1288
    %v1513 = vunpack.c.h.b16 %v1288
    %v1514 = vunpack.c.l.b16 %v1289
    %v1515 = vunpack.c.h.b16 %v1289
    %v1516 = vunpack.c.l.b16 %v1290
    %v1517 = vunpack.c.h.b16 %v1290
    %v1518 = vunpack.c.l.b16 %v1291
    %v1519 = vunpack.c.h.b16 %v1291
    %v1520 = vunpack.c.l.b16 %v1292
    %v1521 = vunpack.c.h.b16 %v1292
    %v1522 = vunpack.c.l.b16 %v1293
    %v1523 = vunpack.c.h.b16 %v1293
    %v1524 = vunpack.c.l.b16 %v1294
    %v1525 = vunpack.c.h.b16 %v1294
    %v1526 = vunpack.c.l.b16 %v1295
    %v1527 = vunpack.c.h.b16 %v1295
    %v1528 = vunpack.c.l.b16 %v1296
    %v1529 = vunpack.c.h.b16 %v1296
    %v1530 = vunpack.c.l.b16 %v1297
    %v1531 = vunpack.c.h.b16 %v1297
    %v1532 = vunpack.c.l.b16 %v1298
    %v1533 = vunpack.c.h.b16 %v1298
    %v1534 = vunpack.c.l.b16 %v1299
    %v1535 = vunpack.c.h.b16 %v1299
    %v1536 = vunpack.c.l.b16 %v1300
    %v1537 = vunpack.c.h.b16 %v1300
    %v1538 = vunpack.c.l.b16 %v1301
    %v1539 = vunpack.c.h.b16 %v1301
    %v1540 = vunpack.c.l.b16 %v1302
    %v1541 = vunpack.c.h.b16 %v1302
    %v1542 = vunpack.c.l.b16 %v1303
    %v1543 = vunpack.c.h.b16 %v1303
    %v1544 = vunpack.c.l.b16 %v1304
    %v1545 = vunpack.c.h.b16 %v1304
    %v1546 = vunpack.c.l.b16 %v1305
    %v1547 = vunpack.c.h.b16 %v1305
    %v1548 = vunpack.c.l.b16 %v1306
    %v1549 = vunpack.c.h.b16 %v1306
    %v1550 = vunpack.c.l.b16 %v1307
    %v1551 = vunpack.c.h.b16 %v1307
    %v1552 = vunpack.c.l.b16 %v1308
    %v1553 = vunpack.c.h.b16 %v1308
    %v1554 = vunpack.c.l.b16 %v1309
    %v1555 = vunpack.c.h.b16 %v1309
    %v1556 = vunpack.c.l.b16 %v1310
    %v1557 = vunpack.c.h.b16 %v1310
    %v1558 = vunpack.c.l.b16 %v1311
    %v1559 = vunpack.c.h.b16 %v1311
    %v1560 = vunpack.c.l.b16 %v1312
    %v1561 = vunpack.c.h.b16 %v1312
    %v1562 = vpack.c.b16 %v1438, %v1434
    %v1563 = vpack.c.b16 %v1439, %v1435
    %v1564 = vpack.c.b16 %v1440, %v1436
    %v1565 = vpack.c.b16 %v1441, %v1437
    %v1566 = vpack.c.b16 %v1446, %v1442
    %v1567 = vpack.c.b16 %v1447, %v1443
    %v1568 = vpack.c.b16 %v1448, %v1444
    %v1569 = vpack.c.b16 %v1449, %v1445
    %v1570 = vpack.c.b16 %v1454, %v1450
    %v1571 = vpack.c.b16 %v1455, %v1451
    %v1572 = vpack.c.b16 %v1456, %v1452
    %v1573 = vpack.c.b16 %v1457, %v1453
    %v1574 = vpack.c.b16 %v1462, %v1458
    %v1575 = vpack.c.b16 %v1463, %v1459
    %v1576 = vpack.c.b16 %v1464, %v1460
    %v1577 = vpack.c.b16 %v1465, %v1461
    %v1578 = vpack.c.b16 %v1470, %v1466
    %v1579 = vpack.c.b16 %v1471, %v1467
    %v1580 = vpack.c.b16 %v1472, %v1468
    %v1581 = vpack.c.b16 %v1473, %v1469
    %v1582 = vpack.c.b16 %v1478, %v1474
    %v1583 = vpack.c.b16 %v1479, %v1475
    %v1584 = vpack.c.b16 %v1480, %v1476
    %v1585 = vpack.c.b16 %v1481, %v1477
    %v1586 = vpack.c.b16 %v1486, %v1482
    %v1587 = vpack.c.b16 %v1487, %v1483
    %v1588 = vpack.c.b16 %v1488, %v1484
    %v1589 = vpack.c.b16 %v1489, %v1485
    %v1590 = vpack.c.b16 %v1494, %v1490
    %v1591 = vpack.c.b16 %v1495, %v1491
    %v1592 = vpack.c.b16 %v1496, %v1492
    %v1593 = vpack.c.b16 %v1497, %v1493
    %v1594 = vpack.c.b16 %v1502, %v1498
    %v1595 = vpack.c.b16 %v1503, %v1499
    %v1596 = vpack.c.b16 %v1504, %v1500
    %v1597 = vpack.c.b16 %v1505, %v1501
    %v1598 = vpack.c.b16 %v1510, %v1506
    %v1599 = vpack.c.b16 %v1511, %v1507
    %v1600 = vpack.c.b16 %v1512, %v1508
    %v1601 = vpack.c.b16 %v1513, %v1509
    %v1602 = vpack.c.b16 %v1518, %v1514
    %v1603 = vpack.c.b16 %v1519, %v1515
    %v1604 = vpack.c.b16 %v1520, %v1516
    %v1605 = vpack.c.b16 %v1521, %v1517
    %v1606 = vpack.c.b16 %v1526, %v1522
    %v1607 = vpack.c.b16 %v1527, %v1523
    %v1608 = vpack.c.b16 %v1528, %v1524
    %v1609 = vpack.c.b16 %v1529, %v1525
    %v1610 = vpack.c.b16 %v1534, %v1530
    %v1611 = vpack.c.b16 %v1535, %v1531
    %v1612 = vpack.c.b16 %v1536, %v1532
    %v1613 = vpack.c.b16 %v1537, %v1533
    %v1614 = vpack.c.b16 %v1542, %v1538
    %v1615 = vpack.c.b16 %v1543, %v1539
    %v1616 = vpack.c.b16 %v1544, %v1540
    %v1617 = vpack.c.b16 %v1545, %v1541
    %v1618 = vpack.c.b16 %v1550, %v1546
    %v1619 = vpack.c.b16 %v1551, %v1547
    %v1620 = vpack.c.b16 %v1552, %v1548
    %v1621 = vpack.c.b16 %v1553, %v1549
    %v1622 = vpack.c.b16 %v1558, %v1554
    %v1623 = vpack.c.b16 %v1559, %v1555
    %v1624 = vpack.c.b16 %v1560, %v1556
    %v1625 = vpack.c.b16 %v1561, %v1557
    %1690 = vmatprep.subr.bf16.mxu0 %v1563
    %1691 = vmatpush1.bf16.msra.mxu0 %v1562
    %1692 = vmatprep.subr.bf16.mxu0 %v1567
    %1693 = vmatpush1.bf16.msra.mxu0 %v1566
    %1694 = vmatprep.subr.bf16.mxu0 %v1571
    %1695 = vmatpush1.bf16.msra.mxu0 %v1570
    %1696 = vmatprep.subr.bf16.mxu0 %v1575
    %1697 = vmatpush1.bf16.msra.mxu0 %v1574
    %1698 = vmatprep.subr.bf16.mxu0 %v1579
    %1699 = vmatpush1.bf16.msra.mxu0 %v1578
    %1700 = vmatprep.subr.bf16.mxu0 %v1583
    %1701 = vmatpush1.bf16.msra.mxu0 %v1582
    %1702 = vmatprep.subr.bf16.mxu0 %v1587
    %1703 = vmatpush1.bf16.msra.mxu0 %v1586
    %1704 = vmatprep.subr.bf16.mxu0 %v1591
    %1705 = vmatpush1.bf16.msra.mxu0 %v1590
    %1706 = vmatprep.subr.bf16.mxu0 %v1595
    %1707 = vmatpush1.bf16.msra.mxu0 %v1594
    %1708 = vmatprep.subr.bf16.mxu0 %v1599
    %1709 = vmatpush1.bf16.msra.mxu0 %v1598
    %1710 = vmatprep.subr.bf16.mxu0 %v1603
    %1711 = vmatpush1.bf16.msra.mxu0 %v1602
    %1712 = vmatprep.subr.bf16.mxu0 %v1607
    %1713 = vmatpush1.bf16.msra.mxu0 %v1606
    %1714 = vmatprep.subr.bf16.mxu0 %v1611
    %1715 = vmatpush1.bf16.msra.mxu0 %v1610
    %1716 = vmatprep.subr.bf16.mxu0 %v1615
    %1717 = vmatpush1.bf16.msra.mxu0 %v1614
    %1718 = vmatprep.subr.bf16.mxu0 %v1619
    %1719 = vmatpush1.bf16.msra.mxu0 %v1618
    %1720 = vmatprep.subr.bf16.mxu0 %v1623
    %1721 = vmatpush1.bf16.msra.mxu0 %v1622
    %1722 = vmatprep.mubr.bf16.mxu0 %v1367
    %1723 = vmatmul.mubr.bf16.gmra.mrb[0].mxu0 %v1366
    %v1724 = vpop.f32.mrb[0].mxu0
    %v1725 = vadd.f32 0.0, %v1724
    %v1726 = vpop.f32.mrb[0].mxu0
    %v1727 = vadd.f32 0.0, %v1726
    %v1728 = vpop.f32.mrb[0].mxu0
    %v1729 = vpop.f32.mrb[0].mxu0
    %1730 = vdwg.mxu0
    %1731 = vmatprep.subr.bf16.mxu0 %v1565
    %1732 = vmatpush1.bf16.msra.mxu0 %v1564
    %1733 = vmatprep.subr.bf16.mxu0 %v1569
    %1734 = vmatpush1.bf16.msra.mxu0 %v1568
    %1735 = vmatprep.subr.bf16.mxu0 %v1573
    %1736 = vmatpush1.bf16.msra.mxu0 %v1572
    %1737 = vmatprep.subr.bf16.mxu0 %v1577
    %1738 = vmatpush1.bf16.msra.mxu0 %v1576
    %1739 = vmatprep.subr.bf16.mxu0 %v1581
    %1740 = vmatpush1.bf16.msra.mxu0 %v1580
    %1741 = vmatprep.subr.bf16.mxu0 %v1585
    %1742 = vmatpush1.bf16.msra.mxu0 %v1584
    %1743 = vmatprep.subr.bf16.mxu0 %v1589
    %1744 = vmatpush1.bf16.msra.mxu0 %v1588
    %1745 = vmatprep.subr.bf16.mxu0 %v1593
    %1746 = vmatpush1.bf16.msra.mxu0 %v1592
    %1747 = vmatprep.subr.bf16.mxu0 %v1597
    %1748 = vmatpush1.bf16.msra.mxu0 %v1596
    %1749 = vmatprep.subr.bf16.mxu0 %v1601
    %1750 = vmatpush1.bf16.msra.mxu0 %v1600
    %1751 = vmatprep.subr.bf16.mxu0 %v1605
    %1752 = vmatpush1.bf16.msra.mxu0 %v1604
    %1753 = vmatprep.subr.bf16.mxu0 %v1609
    %1754 = vmatpush1.bf16.msra.mxu0 %v1608
    %1755 = vmatprep.subr.bf16.mxu0 %v1613
    %1756 = vmatpush1.bf16.msra.mxu0 %v1612
    %1757 = vmatprep.subr.bf16.mxu0 %v1617
    %1758 = vmatpush1.bf16.msra.mxu0 %v1616
    %1759 = vmatprep.subr.bf16.mxu0 %v1621
    %1760 = vmatpush1.bf16.msra.mxu0 %v1620
    %1761 = vmatprep.subr.bf16.mxu0 %v1625
    %1762 = vmatpush1.bf16.msra.mxu0 %v1624
    %1763 = vmatprep.mubr.bf16.mxu0 %v1367
    %1764 = vmatmul.mubr.bf16.gmra.mrb[0].mxu0 %v1366
    %v1765 = vpop.f32.mrb[0].mxu0
    %v1766 = vadd.f32 0.0, %v1765
    %v1767 = vpop.f32.mrb[0].mxu0
    %v1768 = vadd.f32 0.0, %v1767
    %v1769 = vpop.f32.mrb[0].mxu0
    %v1770 = vpop.f32.mrb[0].mxu0
    %1771 = vdwg.mxu0
    %v1772 = vpack.c.bf16 %v935, %v931
    %v1773 = vpack.c.bf16 %v937, %v933
    %v1774 = vpack.c.bf16 %v945, %v941
    %v1775 = vpack.c.bf16 %v947, %v943
    %v1776 = vpack.c.bf16 %v955, %v951
    %v1777 = vpack.c.bf16 %v957, %v953
    %v1778 = vpack.c.bf16 %v965, %v961
    %v1779 = vpack.c.bf16 %v967, %v963
    %v1780 = vpack.c.bf16 %v975, %v971
    %v1781 = vpack.c.bf16 %v977, %v973
    %v1782 = vpack.c.bf16 %v985, %v981
    %v1783 = vpack.c.bf16 %v987, %v983
    %v1784 = vpack.c.bf16 %v995, %v991
    %v1785 = vpack.c.bf16 %v997, %v993
    %v1786 = vpack.c.bf16 %v1005, %v1001
    %v1787 = vpack.c.bf16 %v1007, %v1003
    %v1788 = vpack.c.bf16 %v1015, %v1011
    %v1789 = vpack.c.bf16 %v1017, %v1013
    %v1790 = vpack.c.bf16 %v1025, %v1021
    %v1791 = vpack.c.bf16 %v1027, %v1023
    %v1792 = vpack.c.bf16 %v1035, %v1031
    %v1793 = vpack.c.bf16 %v1037, %v1033
    %v1794 = vpack.c.bf16 %v1045, %v1041
    %v1795 = vpack.c.bf16 %v1047, %v1043
    %v1796 = vpack.c.bf16 %v1055, %v1051
    %v1797 = vpack.c.bf16 %v1057, %v1053
    %v1798 = vpack.c.bf16 %v1065, %v1061
    %v1799 = vpack.c.bf16 %v1067, %v1063
    %v1800 = vpack.c.bf16 %v1075, %v1071
    %v1801 = vpack.c.bf16 %v1077, %v1073
    %v1802 = vpack.c.bf16 %v1085, %v1081
    %v1803 = vpack.c.bf16 %v1087, %v1083
    %v1804 = vld [vmem:[#allocation5] sm:$0xff]
    %v1805 = vld [vmem:[#allocation5 + $0x8] sm:$0xff]
    %v1806 = vld [vmem:[#allocation5 + $0x10] sm:$0xff]
    %v1807 = vld [vmem:[#allocation5 + $0x18] sm:$0xff]
    %v1808 = vld [vmem:[#allocation5 + $0x20] sm:$0xff]
    %v1809 = vld [vmem:[#allocation5 + $0x28] sm:$0xff]
    %v1810 = vld [vmem:[#allocation5 + $0x30] sm:$0xff]
    %v1811 = vld [vmem:[#allocation5 + $0x38] sm:$0xff]
    %v1812 = vld [vmem:[#allocation5 + $0x40] sm:$0xff]
    %v1813 = vld [vmem:[#allocation5 + $0x48] sm:$0xff]
    %v1814 = vld [vmem:[#allocation5 + $0x50] sm:$0xff]
    %v1815 = vld [vmem:[#allocation5 + $0x58] sm:$0xff]
    %v1816 = vld [vmem:[#allocation5 + $0x60] sm:$0xff]
    %v1817 = vld [vmem:[#allocation5 + $0x68] sm:$0xff]
    %v1818 = vld [vmem:[#allocation5 + $0x70] sm:$0xff]
    %v1819 = vld [vmem:[#allocation5 + $0x78] sm:$0xff]
    %v1820 = vld [vmem:[#allocation5 + $0x80] sm:$0xff]
    %v1821 = vld [vmem:[#allocation5 + $0x88] sm:$0xff]
    %v1822 = vld [vmem:[#allocation5 + $0x90] sm:$0xff]
    %v1823 = vld [vmem:[#allocation5 + $0x98] sm:$0xff]
    %v1824 = vld [vmem:[#allocation5 + $0xa0] sm:$0xff]
    %v1825 = vld [vmem:[#allocation5 + $0xa8] sm:$0xff]
    %v1826 = vld [vmem:[#allocation5 + $0xb0] sm:$0xff]
    %v1827 = vld [vmem:[#allocation5 + $0xb8] sm:$0xff]
    %v1828 = vld [vmem:[#allocation5 + $0xc0] sm:$0xff]
    %v1829 = vld [vmem:[#allocation5 + $0xc8] sm:$0xff]
    %v1830 = vld [vmem:[#allocation5 + $0xd0] sm:$0xff]
    %v1831 = vld [vmem:[#allocation5 + $0xd8] sm:$0xff]
    %v1832 = vld [vmem:[#allocation5 + $0xe0] sm:$0xff]
    %v1833 = vld [vmem:[#allocation5 + $0xe8] sm:$0xff]
    %v1834 = vld [vmem:[#allocation5 + $0xf0] sm:$0xff]
    %v1835 = vld [vmem:[#allocation5 + $0xf8] sm:$0xff]
    %v1836 = vld [vmem:[#allocation5 + $0x100] sm:$0xff]
    %v1837 = vld [vmem:[#allocation5 + $0x108] sm:$0xff]
    %v1838 = vld [vmem:[#allocation5 + $0x110] sm:$0xff]
    %v1839 = vld [vmem:[#allocation5 + $0x118] sm:$0xff]
    %v1840 = vld [vmem:[#allocation5 + $0x120] sm:$0xff]
    %v1841 = vld [vmem:[#allocation5 + $0x128] sm:$0xff]
    %v1842 = vld [vmem:[#allocation5 + $0x130] sm:$0xff]
    %v1843 = vld [vmem:[#allocation5 + $0x138] sm:$0xff]
    %v1844 = vld [vmem:[#allocation5 + $0x140] sm:$0xff]
    %v1845 = vld [vmem:[#allocation5 + $0x148] sm:$0xff]
    %v1846 = vld [vmem:[#allocation5 + $0x150] sm:$0xff]
    %v1847 = vld [vmem:[#allocation5 + $0x158] sm:$0xff]
    %v1848 = vld [vmem:[#allocation5 + $0x160] sm:$0xff]
    %v1849 = vld [vmem:[#allocation5 + $0x168] sm:$0xff]
    %v1850 = vld [vmem:[#allocation5 + $0x170] sm:$0xff]
    %v1851 = vld [vmem:[#allocation5 + $0x178] sm:$0xff]
    %v1852 = vld [vmem:[#allocation5 + $0x180] sm:$0xff]
    %v1853 = vld [vmem:[#allocation5 + $0x188] sm:$0xff]
    %v1854 = vld [vmem:[#allocation5 + $0x190] sm:$0xff]
    %v1855 = vld [vmem:[#allocation5 + $0x198] sm:$0xff]
    %v1856 = vld [vmem:[#allocation5 + $0x1a0] sm:$0xff]
    %v1857 = vld [vmem:[#allocation5 + $0x1a8] sm:$0xff]
    %v1858 = vld [vmem:[#allocation5 + $0x1b0] sm:$0xff]
    %v1859 = vld [vmem:[#allocation5 + $0x1b8] sm:$0xff]
    %v1860 = vld [vmem:[#allocation5 + $0x1c0] sm:$0xff]
    %v1861 = vld [vmem:[#allocation5 + $0x1c8] sm:$0xff]
    %v1862 = vld [vmem:[#allocation5 + $0x1d0] sm:$0xff]
    %v1863 = vld [vmem:[#allocation5 + $0x1d8] sm:$0xff]
    %v1864 = vld [vmem:[#allocation5 + $0x1e0] sm:$0xff]
    %v1865 = vld [vmem:[#allocation5 + $0x1e8] sm:$0xff]
    %v1866 = vld [vmem:[#allocation5 + $0x1f0] sm:$0xff]
    %v1867 = vld [vmem:[#allocation5 + $0x1f8] sm:$0xff]
    %v1932 = vunpack.c.l.b16 %v1804
    %v1933 = vunpack.c.h.b16 %v1804
    %v1934 = vunpack.c.l.b16 %v1805
    %v1935 = vunpack.c.h.b16 %v1805
    %v1936 = vunpack.c.l.b16 %v1806
    %v1937 = vunpack.c.h.b16 %v1806
    %v1938 = vunpack.c.l.b16 %v1807
    %v1939 = vunpack.c.h.b16 %v1807
    %v1940 = vunpack.c.l.b16 %v1808
    %v1941 = vunpack.c.h.b16 %v1808
    %v1942 = vunpack.c.l.b16 %v1809
    %v1943 = vunpack.c.h.b16 %v1809
    %v1944 = vunpack.c.l.b16 %v1810
    %v1945 = vunpack.c.h.b16 %v1810
    %v1946 = vunpack.c.l.b16 %v1811
    %v1947 = vunpack.c.h.b16 %v1811
    %v1948 = vunpack.c.l.b16 %v1812
    %v1949 = vunpack.c.h.b16 %v1812
    %v1950 = vunpack.c.l.b16 %v1813
    %v1951 = vunpack.c.h.b16 %v1813
    %v1952 = vunpack.c.l.b16 %v1814
    %v1953 = vunpack.c.h.b16 %v1814
    %v1954 = vunpack.c.l.b16 %v1815
    %v1955 = vunpack.c.h.b16 %v1815
    %v1956 = vunpack.c.l.b16 %v1816
    %v1957 = vunpack.c.h.b16 %v1816
    %v1958 = vunpack.c.l.b16 %v1817
    %v1959 = vunpack.c.h.b16 %v1817
    %v1960 = vunpack.c.l.b16 %v1818
    %v1961 = vunpack.c.h.b16 %v1818
    %v1962 = vunpack.c.l.b16 %v1819
    %v1963 = vunpack.c.h.b16 %v1819
    %v1964 = vunpack.c.l.b16 %v1820
    %v1965 = vunpack.c.h.b16 %v1820
    %v1966 = vunpack.c.l.b16 %v1821
    %v1967 = vunpack.c.h.b16 %v1821
    %v1968 = vunpack.c.l.b16 %v1822
    %v1969 = vunpack.c.h.b16 %v1822
    %v1970 = vunpack.c.l.b16 %v1823
    %v1971 = vunpack.c.h.b16 %v1823
    %v1972 = vunpack.c.l.b16 %v1824
    %v1973 = vunpack.c.h.b16 %v1824
    %v1974 = vunpack.c.l.b16 %v1825
    %v1975 = vunpack.c.h.b16 %v1825
    %v1976 = vunpack.c.l.b16 %v1826
    %v1977 = vunpack.c.h.b16 %v1826
    %v1978 = vunpack.c.l.b16 %v1827
    %v1979 = vunpack.c.h.b16 %v1827
    %v1980 = vunpack.c.l.b16 %v1828
    %v1981 = vunpack.c.h.b16 %v1828
    %v1982 = vunpack.c.l.b16 %v1829
    %v1983 = vunpack.c.h.b16 %v1829
    %v1984 = vunpack.c.l.b16 %v1830
    %v1985 = vunpack.c.h.b16 %v1830
    %v1986 = vunpack.c.l.b16 %v1831
    %v1987 = vunpack.c.h.b16 %v1831
    %v1988 = vunpack.c.l.b16 %v1832
    %v1989 = vunpack.c.h.b16 %v1832
    %v1990 = vunpack.c.l.b16 %v1833
    %v1991 = vunpack.c.h.b16 %v1833
    %v1992 = vunpack.c.l.b16 %v1834
    %v1993 = vunpack.c.h.b16 %v1834
    %v1994 = vunpack.c.l.b16 %v1835
    %v1995 = vunpack.c.h.b16 %v1835
    %v1996 = vunpack.c.l.b16 %v1836
    %v1997 = vunpack.c.h.b16 %v1836
    %v1998 = vunpack.c.l.b16 %v1837
    %v1999 = vunpack.c.h.b16 %v1837
    %v2000 = vunpack.c.l.b16 %v1838
    %v2001 = vunpack.c.h.b16 %v1838
    %v2002 = vunpack.c.l.b16 %v1839
    %v2003 = vunpack.c.h.b16 %v1839
    %v2004 = vunpack.c.l.b16 %v1840
    %v2005 = vunpack.c.h.b16 %v1840
    %v2006 = vunpack.c.l.b16 %v1841
    %v2007 = vunpack.c.h.b16 %v1841
    %v2008 = vunpack.c.l.b16 %v1842
    %v2009 = vunpack.c.h.b16 %v1842
    %v2010 = vunpack.c.l.b16 %v1843
    %v2011 = vunpack.c.h.b16 %v1843
    %v2012 = vunpack.c.l.b16 %v1844
    %v2013 = vunpack.c.h.b16 %v1844
    %v2014 = vunpack.c.l.b16 %v1845
    %v2015 = vunpack.c.h.b16 %v1845
    %v2016 = vunpack.c.l.b16 %v1846
    %v2017 = vunpack.c.h.b16 %v1846
    %v2018 = vunpack.c.l.b16 %v1847
    %v2019 = vunpack.c.h.b16 %v1847
    %v2020 = vunpack.c.l.b16 %v1848
    %v2021 = vunpack.c.h.b16 %v1848
    %v2022 = vunpack.c.l.b16 %v1849
    %v2023 = vunpack.c.h.b16 %v1849
    %v2024 = vunpack.c.l.b16 %v1850
    %v2025 = vunpack.c.h.b16 %v1850
    %v2026 = vunpack.c.l.b16 %v1851
    %v2027 = vunpack.c.h.b16 %v1851
    %v2028 = vunpack.c.l.b16 %v1852
    %v2029 = vunpack.c.h.b16 %v1852
    %v2030 = vunpack.c.l.b16 %v1853
    %v2031 = vunpack.c.h.b16 %v1853
    %v2032 = vunpack.c.l.b16 %v1854
    %v2033 = vunpack.c.h.b16 %v1854
    %v2034 = vunpack.c.l.b16 %v1855
    %v2035 = vunpack.c.h.b16 %v1855
    %v2036 = vunpack.c.l.b16 %v1856
    %v2037 = vunpack.c.h.b16 %v1856
    %v2038 = vunpack.c.l.b16 %v1857
    %v2039 = vunpack.c.h.b16 %v1857
    %v2040 = vunpack.c.l.b16 %v1858
    %v2041 = vunpack.c.h.b16 %v1858
    %v2042 = vunpack.c.l.b16 %v1859
    %v2043 = vunpack.c.h.b16 %v1859
    %v2044 = vunpack.c.l.b16 %v1860
    %v2045 = vunpack.c.h.b16 %v1860
    %v2046 = vunpack.c.l.b16 %v1861
    %v2047 = vunpack.c.h.b16 %v1861
    %v2048 = vunpack.c.l.b16 %v1862
    %v2049 = vunpack.c.h.b16 %v1862
    %v2050 = vunpack.c.l.b16 %v1863
    %v2051 = vunpack.c.h.b16 %v1863
    %v2052 = vunpack.c.l.b16 %v1864
    %v2053 = vunpack.c.h.b16 %v1864
    %v2054 = vunpack.c.l.b16 %v1865
    %v2055 = vunpack.c.h.b16 %v1865
    %v2056 = vunpack.c.l.b16 %v1866
    %v2057 = vunpack.c.h.b16 %v1866
    %v2058 = vunpack.c.l.b16 %v1867
    %v2059 = vunpack.c.h.b16 %v1867
    %v2060 = vpack.c.b16 %v1936, %v1932
    %v2061 = vpack.c.b16 %v1937, %v1933
    %v2062 = vpack.c.b16 %v1938, %v1934
    %v2063 = vpack.c.b16 %v1939, %v1935
    %v2064 = vpack.c.b16 %v1944, %v1940
    %v2065 = vpack.c.b16 %v1945, %v1941
    %v2066 = vpack.c.b16 %v1946, %v1942
    %v2067 = vpack.c.b16 %v1947, %v1943
    %v2068 = vpack.c.b16 %v1952, %v1948
    %v2069 = vpack.c.b16 %v1953, %v1949
    %v2070 = vpack.c.b16 %v1954, %v1950
    %v2071 = vpack.c.b16 %v1955, %v1951
    %v2072 = vpack.c.b16 %v1960, %v1956
    %v2073 = vpack.c.b16 %v1961, %v1957
    %v2074 = vpack.c.b16 %v1962, %v1958
    %v2075 = vpack.c.b16 %v1963, %v1959
    %v2076 = vpack.c.b16 %v1968, %v1964
    %v2077 = vpack.c.b16 %v1969, %v1965
    %v2078 = vpack.c.b16 %v1970, %v1966
    %v2079 = vpack.c.b16 %v1971, %v1967
    %v2080 = vpack.c.b16 %v1976, %v1972
    %v2081 = vpack.c.b16 %v1977, %v1973
    %v2082 = vpack.c.b16 %v1978, %v1974
    %v2083 = vpack.c.b16 %v1979, %v1975
    %v2084 = vpack.c.b16 %v1984, %v1980
    %v2085 = vpack.c.b16 %v1985, %v1981
    %v2086 = vpack.c.b16 %v1986, %v1982
    %v2087 = vpack.c.b16 %v1987, %v1983
    %v2088 = vpack.c.b16 %v1992, %v1988
    %v2089 = vpack.c.b16 %v1993, %v1989
    %v2090 = vpack.c.b16 %v1994, %v1990
    %v2091 = vpack.c.b16 %v1995, %v1991
    %v2092 = vpack.c.b16 %v2000, %v1996
    %v2093 = vpack.c.b16 %v2001, %v1997
    %v2094 = vpack.c.b16 %v2002, %v1998
    %v2095 = vpack.c.b16 %v2003, %v1999
    %v2096 = vpack.c.b16 %v2008, %v2004
    %v2097 = vpack.c.b16 %v2009, %v2005
    %v2098 = vpack.c.b16 %v2010, %v2006
    %v2099 = vpack.c.b16 %v2011, %v2007
    %v2100 = vpack.c.b16 %v2016, %v2012
    %v2101 = vpack.c.b16 %v2017, %v2013
    %v2102 = vpack.c.b16 %v2018, %v2014
    %v2103 = vpack.c.b16 %v2019, %v2015
    %v2104 = vpack.c.b16 %v2024, %v2020
    %v2105 = vpack.c.b16 %v2025, %v2021
    %v2106 = vpack.c.b16 %v2026, %v2022
    %v2107 = vpack.c.b16 %v2027, %v2023
    %v2108 = vpack.c.b16 %v2032, %v2028
    %v2109 = vpack.c.b16 %v2033, %v2029
    %v2110 = vpack.c.b16 %v2034, %v2030
    %v2111 = vpack.c.b16 %v2035, %v2031
    %v2112 = vpack.c.b16 %v2040, %v2036
    %v2113 = vpack.c.b16 %v2041, %v2037
    %v2114 = vpack.c.b16 %v2042, %v2038
    %v2115 = vpack.c.b16 %v2043, %v2039
    %v2116 = vpack.c.b16 %v2048, %v2044
    %v2117 = vpack.c.b16 %v2049, %v2045
    %v2118 = vpack.c.b16 %v2050, %v2046
    %v2119 = vpack.c.b16 %v2051, %v2047
    %v2120 = vpack.c.b16 %v2056, %v2052
    %v2121 = vpack.c.b16 %v2057, %v2053
    %v2122 = vpack.c.b16 %v2058, %v2054
    %v2123 = vpack.c.b16 %v2059, %v2055
    %2188 = vmatprep.subr.bf16.mxu0 %v2061
    %2189 = vmatpush1.bf16.msra.mxu0 %v2060
    %2190 = vmatprep.subr.bf16.mxu0 %v2065
    %2191 = vmatpush1.bf16.msra.mxu0 %v2064
    %2192 = vmatprep.subr.bf16.mxu0 %v2069
    %2193 = vmatpush1.bf16.msra.mxu0 %v2068
    %2194 = vmatprep.subr.bf16.mxu0 %v2073
    %2195 = vmatpush1.bf16.msra.mxu0 %v2072
    %2196 = vmatprep.subr.bf16.mxu0 %v2077
    %2197 = vmatpush1.bf16.msra.mxu0 %v2076
    %2198 = vmatprep.subr.bf16.mxu0 %v2081
    %2199 = vmatpush1.bf16.msra.mxu0 %v2080
    %2200 = vmatprep.subr.bf16.mxu0 %v2085
    %2201 = vmatpush1.bf16.msra.mxu0 %v2084
    %2202 = vmatprep.subr.bf16.mxu0 %v2089
    %2203 = vmatpush1.bf16.msra.mxu0 %v2088
    %2204 = vmatprep.subr.bf16.mxu0 %v2093
    %2205 = vmatpush1.bf16.msra.mxu0 %v2092
    %2206 = vmatprep.subr.bf16.mxu0 %v2097
    %2207 = vmatpush1.bf16.msra.mxu0 %v2096
    %2208 = vmatprep.subr.bf16.mxu0 %v2101
    %2209 = vmatpush1.bf16.msra.mxu0 %v2100
    %2210 = vmatprep.subr.bf16.mxu0 %v2105
    %2211 = vmatpush1.bf16.msra.mxu0 %v2104
    %2212 = vmatprep.subr.bf16.mxu0 %v2109
    %2213 = vmatpush1.bf16.msra.mxu0 %v2108
    %2214 = vmatprep.subr.bf16.mxu0 %v2113
    %2215 = vmatpush1.bf16.msra.mxu0 %v2112
    %2216 = vmatprep.subr.bf16.mxu0 %v2117
    %2217 = vmatpush1.bf16.msra.mxu0 %v2116
    %2218 = vmatprep.subr.bf16.mxu0 %v2121
    %2219 = vmatpush1.bf16.msra.mxu0 %v2120
    %2220 = vmatprep.mubr.bf16.mxu0 %v1773
    %2221 = vmatmul.mubr.bf16.gmra.mrb[0].mxu0 %v1772
    %v2222 = vpop.f32.mrb[0].mxu0
    %v2223 = vadd.f32 0.0, %v2222
    %v2224 = vpop.f32.mrb[0].mxu0
    %v2225 = vadd.f32 0.0, %v2224
    %v2226 = vpop.f32.mrb[0].mxu0
    %v2227 = vadd.f32 0.0, %v2226
    %v2228 = vpop.f32.mrb[0].mxu0
    %v2229 = vadd.f32 0.0, %v2228
    %2230 = vmatprep.mubr.bf16.mxu0 %v1775
    %2231 = vmatmul.mubr.bf16.gmra.mrb[0].mxu0 %v1774
    %v2232 = vpop.f32.mrb[0].mxu0
    %v2233 = vadd.f32 0.0, %v2232
    %v2234 = vpop.f32.mrb[0].mxu0
    %v2235 = vadd.f32 0.0, %v2234
    %v2236 = vpop.f32.mrb[0].mxu0
    %v2237 = vadd.f32 0.0, %v2236
    %v2238 = vpop.f32.mrb[0].mxu0
    %v2239 = vadd.f32 0.0, %v2238
    %2240 = vmatprep.mubr.bf16.mxu0 %v1777
    %2241 = vmatmul.mubr.bf16.gmra.mrb[0].mxu0 %v1776
    %v2242 = vpop.f32.mrb[0].mxu0
    %v2243 = vadd.f32 0.0, %v2242
    %v2244 = vpop.f32.mrb[0].mxu0
    %v2245 = vadd.f32 0.0, %v2244
    %v2246 = vpop.f32.mrb[0].mxu0
    %v2247 = vadd.f32 0.0, %v2246
    %v2248 = vpop.f32.mrb[0].mxu0
    %v2249 = vadd.f32 0.0, %v2248
    %2250 = vmatprep.mubr.bf16.mxu0 %v1779
    %2251 = vmatmul.mubr.bf16.gmra.mrb[0].mxu0 %v1778
    %v2252 = vpop.f32.mrb[0].mxu0
    %v2253 = vadd.f32 0.0, %v2252
    %v2254 = vpop.f32.mrb[0].mxu0
    %v2255 = vadd.f32 0.0, %v2254
    %v2256 = vpop.f32.mrb[0].mxu0
    %v2257 = vadd.f32 0.0, %v2256
    %v2258 = vpop.f32.mrb[0].mxu0
    %v2259 = vadd.f32 0.0, %v2258
    %2260 = vmatprep.mubr.bf16.mxu0 %v1781
    %2261 = vmatmul.mubr.bf16.gmra.mrb[0].mxu0 %v1780
    %v2262 = vpop.f32.mrb[0].mxu0
    %v2263 = vadd.f32 0.0, %v2262
    %v2264 = vpop.f32.mrb[0].mxu0
    %v2265 = vadd.f32 0.0, %v2264
    %v2266 = vpop.f32.mrb[0].mxu0
    %v2267 = vadd.f32 0.0, %v2266
    %v2268 = vpop.f32.mrb[0].mxu0
    %v2269 = vadd.f32 0.0, %v2268
    %2270 = vmatprep.mubr.bf16.mxu0 %v1783
    %2271 = vmatmul.mubr.bf16.gmra.mrb[0].mxu0 %v1782
    %v2272 = vpop.f32.mrb[0].mxu0
    %v2273 = vadd.f32 0.0, %v2272
    %v2274 = vpop.f32.mrb[0].mxu0
    %v2275 = vadd.f32 0.0, %v2274
    %v2276 = vpop.f32.mrb[0].mxu0
    %v2277 = vadd.f32 0.0, %v2276
    %v2278 = vpop.f32.mrb[0].mxu0
    %v2279 = vadd.f32 0.0, %v2278
    %2280 = vmatprep.mubr.bf16.mxu0 %v1785
    %2281 = vmatmul.mubr.bf16.gmra.mrb[0].mxu0 %v1784
    %v2282 = vpop.f32.mrb[0].mxu0
    %v2283 = vadd.f32 0.0, %v2282
    %v2284 = vpop.f32.mrb[0].mxu0
    %v2285 = vadd.f32 0.0, %v2284
    %v2286 = vpop.f32.mrb[0].mxu0
    %v2287 = vadd.f32 0.0, %v2286
    %v2288 = vpop.f32.mrb[0].mxu0
    %v2289 = vadd.f32 0.0, %v2288
    %2290 = vmatprep.mubr.bf16.mxu0 %v1787
    %2291 = vmatmul.mubr.bf16.gmra.mrb[0].mxu0 %v1786
    %v2292 = vpop.f32.mrb[0].mxu0
    %v2293 = vadd.f32 0.0, %v2292
    %v2294 = vpop.f32.mrb[0].mxu0
    %v2295 = vadd.f32 0.0, %v2294
    %v2296 = vpop.f32.mrb[0].mxu0
    %v2297 = vadd.f32 0.0, %v2296
    %v2298 = vpop.f32.mrb[0].mxu0
    %v2299 = vadd.f32 0.0, %v2298
    %2300 = vmatprep.mubr.bf16.mxu0 %v1789
    %2301 = vmatmul.mubr.bf16.gmra.mrb[0].mxu0 %v1788
    %v2302 = vpop.f32.mrb[0].mxu0
    %v2303 = vadd.f32 0.0, %v2302
    %v2304 = vpop.f32.mrb[0].mxu0
    %v2305 = vadd.f32 0.0, %v2304
    %v2306 = vpop.f32.mrb[0].mxu0
    %v2307 = vadd.f32 0.0, %v2306
    %v2308 = vpop.f32.mrb[0].mxu0
    %v2309 = vadd.f32 0.0, %v2308
    %2310 = vmatprep.mubr.bf16.mxu0 %v1791
    %2311 = vmatmul.mubr.bf16.gmra.mrb[0].mxu0 %v1790
    %v2312 = vpop.f32.mrb[0].mxu0
    %v2313 = vadd.f32 0.0, %v2312
    %v2314 = vpop.f32.mrb[0].mxu0
    %v2315 = vadd.f32 0.0, %v2314
    %v2316 = vpop.f32.mrb[0].mxu0
    %v2317 = vadd.f32 0.0, %v2316
    %v2318 = vpop.f32.mrb[0].mxu0
    %v2319 = vadd.f32 0.0, %v2318
    %2320 = vmatprep.mubr.bf16.mxu0 %v1793
    %2321 = vmatmul.mubr.bf16.gmra.mrb[0].mxu0 %v1792
    %v2322 = vpop.f32.mrb[0].mxu0
    %v2323 = vadd.f32 0.0, %v2322
    %v2324 = vpop.f32.mrb[0].mxu0
    %v2325 = vadd.f32 0.0, %v2324
    %v2326 = vpop.f32.mrb[0].mxu0
    %v2327 = vadd.f32 0.0, %v2326
    %v2328 = vpop.f32.mrb[0].mxu0
    %v2329 = vadd.f32 0.0, %v2328
    %2330 = vmatprep.mubr.bf16.mxu0 %v1795
    %2331 = vmatmul.mubr.bf16.gmra.mrb[0].mxu0 %v1794
    %v2332 = vpop.f32.mrb[0].mxu0
    %v2333 = vadd.f32 0.0, %v2332
    %v2334 = vpop.f32.mrb[0].mxu0
    %v2335 = vadd.f32 0.0, %v2334
    %v2336 = vpop.f32.mrb[0].mxu0
    %v2337 = vadd.f32 0.0, %v2336
    %v2338 = vpop.f32.mrb[0].mxu0
    %v2339 = vadd.f32 0.0, %v2338
    %2340 = vmatprep.mubr.bf16.mxu0 %v1797
    %2341 = vmatmul.mubr.bf16.gmra.mrb[0].mxu0 %v1796
    %v2342 = vpop.f32.mrb[0].mxu0
    %v2343 = vadd.f32 0.0, %v2342
    %v2344 = vpop.f32.mrb[0].mxu0
    %v2345 = vadd.f32 0.0, %v2344
    %v2346 = vpop.f32.mrb[0].mxu0
    %v2347 = vadd.f32 0.0, %v2346
    %v2348 = vpop.f32.mrb[0].mxu0
    %v2349 = vadd.f32 0.0, %v2348
    %2350 = vmatprep.mubr.bf16.mxu0 %v1799
    %2351 = vmatmul.mubr.bf16.gmra.mrb[0].mxu0 %v1798
    %v2352 = vpop.f32.mrb[0].mxu0
    %v2353 = vadd.f32 0.0, %v2352
    %v2354 = vpop.f32.mrb[0].mxu0
    %v2355 = vadd.f32 0.0, %v2354
    %v2356 = vpop.f32.mrb[0].mxu0
    %v2357 = vadd.f32 0.0, %v2356
    %v2358 = vpop.f32.mrb[0].mxu0
    %v2359 = vadd.f32 0.0, %v2358
    %2360 = vmatprep.mubr.bf16.mxu0 %v1801
    %2361 = vmatmul.mubr.bf16.gmra.mrb[0].mxu0 %v1800
    %v2362 = vpop.f32.mrb[0].mxu0
    %v2363 = vadd.f32 0.0, %v2362
    %v2364 = vpop.f32.mrb[0].mxu0
    %v2365 = vadd.f32 0.0, %v2364
    %v2366 = vpop.f32.mrb[0].mxu0
    %v2367 = vadd.f32 0.0, %v2366
    %v2368 = vpop.f32.mrb[0].mxu0
    %v2369 = vadd.f32 0.0, %v2368
    %2370 = vmatprep.mubr.bf16.mxu0 %v1803
    %2371 = vmatmul.mubr.bf16.gmra.mrb[0].mxu0 %v1802
    %v2372 = vpop.f32.mrb[0].mxu0
    %v2373 = vadd.f32 0.0, %v2372
    %v2374 = vpop.f32.mrb[0].mxu0
    %v2375 = vadd.f32 0.0, %v2374
    %v2376 = vpop.f32.mrb[0].mxu0
    %v2377 = vadd.f32 0.0, %v2376
    %v2378 = vpop.f32.mrb[0].mxu0
    %v2379 = vadd.f32 0.0, %v2378
    %2380 = vdwg.mxu0
    %2381 = vmatprep.subr.bf16.mxu0 %v2063
    %2382 = vmatpush1.bf16.msra.mxu0 %v2062
    %2383 = vmatprep.subr.bf16.mxu0 %v2067
    %2384 = vmatpush1.bf16.msra.mxu0 %v2066
    %2385 = vmatprep.subr.bf16.mxu0 %v2071
    %2386 = vmatpush1.bf16.msra.mxu0 %v2070
    %2387 = vmatprep.subr.bf16.mxu0 %v2075
    %2388 = vmatpush1.bf16.msra.mxu0 %v2074
    %2389 = vmatprep.subr.bf16.mxu0 %v2079
    %2390 = vmatpush1.bf16.msra.mxu0 %v2078
    %2391 = vmatprep.subr.bf16.mxu0 %v2083
    %2392 = vmatpush1.bf16.msra.mxu0 %v2082
    %2393 = vmatprep.subr.bf16.mxu0 %v2087
    %2394 = vmatpush1.bf16.msra.mxu0 %v2086
    %2395 = vmatprep.subr.bf16.mxu0 %v2091
    %2396 = vmatpush1.bf16.msra.mxu0 %v2090
    %2397 = vmatprep.subr.bf16.mxu0 %v2095
    %2398 = vmatpush1.bf16.msra.mxu0 %v2094
    %2399 = vmatprep.subr.bf16.mxu0 %v2099
    %2400 = vmatpush1.bf16.msra.mxu0 %v2098
    %2401 = vmatprep.subr.bf16.mxu0 %v2103
    %2402 = vmatpush1.bf16.msra.mxu0 %v2102
    %2403 = vmatprep.subr.bf16.mxu0 %v2107
    %2404 = vmatpush1.bf16.msra.mxu0 %v2106
    %2405 = vmatprep.subr.bf16.mxu0 %v2111
    %2406 = vmatpush1.bf16.msra.mxu0 %v2110
    %2407 = vmatprep.subr.bf16.mxu0 %v2115
    %2408 = vmatpush1.bf16.msra.mxu0 %v2114
    %2409 = vmatprep.subr.bf16.mxu0 %v2119
    %2410 = vmatpush1.bf16.msra.mxu0 %v2118
    %2411 = vmatprep.subr.bf16.mxu0 %v2123
    %2412 = vmatpush1.bf16.msra.mxu0 %v2122
    %2413 = vmatprep.mubr.bf16.mxu0 %v1773
    %2414 = vmatmul.mubr.bf16.gmra.mrb[0].mxu0 %v1772
    %v2415 = vpop.f32.mrb[0].mxu0
    %v2416 = vadd.f32 0.0, %v2415
    %v2417 = vpop.f32.mrb[0].mxu0
    %v2418 = vadd.f32 0.0, %v2417
    %v2419 = vpop.f32.mrb[0].mxu0
    %v2420 = vadd.f32 0.0, %v2419
    %v2421 = vpop.f32.mrb[0].mxu0
    %v2422 = vadd.f32 0.0, %v2421
    %2423 = vmatprep.mubr.bf16.mxu0 %v1775
    %2424 = vmatmul.mubr.bf16.gmra.mrb[0].mxu0 %v1774
    %v2425 = vpop.f32.mrb[0].mxu0
    %v2426 = vadd.f32 0.0, %v2425
    %v2427 = vpop.f32.mrb[0].mxu0
    %v2428 = vadd.f32 0.0, %v2427
    %v2429 = vpop.f32.mrb[0].mxu0
    %v2430 = vadd.f32 0.0, %v2429
    %v2431 = vpop.f32.mrb[0].mxu0
    %v2432 = vadd.f32 0.0, %v2431
    %2433 = vmatprep.mubr.bf16.mxu0 %v1777
    %2434 = vmatmul.mubr.bf16.gmra.mrb[0].mxu0 %v1776
    %v2435 = vpop.f32.mrb[0].mxu0
    %v2436 = vadd.f32 0.0, %v2435
    %v2437 = vpop.f32.mrb[0].mxu0
    %v2438 = vadd.f32 0.0, %v2437
    %v2439 = vpop.f32.mrb[0].mxu0
    %v2440 = vadd.f32 0.0, %v2439
    %v2441 = vpop.f32.mrb[0].mxu0
    %v2442 = vadd.f32 0.0, %v2441
    %2443 = vmatprep.mubr.bf16.mxu0 %v1779
    %2444 = vmatmul.mubr.bf16.gmra.mrb[0].mxu0 %v1778
    %v2445 = vpop.f32.mrb[0].mxu0
    %v2446 = vadd.f32 0.0, %v2445
    %v2447 = vpop.f32.mrb[0].mxu0
    %v2448 = vadd.f32 0.0, %v2447
    %v2449 = vpop.f32.mrb[0].mxu0
    %v2450 = vadd.f32 0.0, %v2449
    %v2451 = vpop.f32.mrb[0].mxu0
    %v2452 = vadd.f32 0.0, %v2451
    %2453 = vmatprep.mubr.bf16.mxu0 %v1781
    %2454 = vmatmul.mubr.bf16.gmra.mrb[0].mxu0 %v1780
    %v2455 = vpop.f32.mrb[0].mxu0
    %v2456 = vadd.f32 0.0, %v2455
    %v2457 = vpop.f32.mrb[0].mxu0
    %v2458 = vadd.f32 0.0, %v2457
    %v2459 = vpop.f32.mrb[0].mxu0
    %v2460 = vadd.f32 0.0, %v2459
    %v2461 = vpop.f32.mrb[0].mxu0
    %v2462 = vadd.f32 0.0, %v2461
    %2463 = vmatprep.mubr.bf16.mxu0 %v1783
    %2464 = vmatmul.mubr.bf16.gmra.mrb[0].mxu0 %v1782
    %v2465 = vpop.f32.mrb[0].mxu0
    %v2466 = vadd.f32 0.0, %v2465
    %v2467 = vpop.f32.mrb[0].mxu0
    %v2468 = vadd.f32 0.0, %v2467
    %v2469 = vpop.f32.mrb[0].mxu0
    %v2470 = vadd.f32 0.0, %v2469
    %v2471 = vpop.f32.mrb[0].mxu0
    %v2472 = vadd.f32 0.0, %v2471
    %2473 = vmatprep.mubr.bf16.mxu0 %v1785
    %2474 = vmatmul.mubr.bf16.gmra.mrb[0].mxu0 %v1784
    %v2475 = vpop.f32.mrb[0].mxu0
    %v2476 = vadd.f32 0.0, %v2475
    %v2477 = vpop.f32.mrb[0].mxu0
    %v2478 = vadd.f32 0.0, %v2477
    %v2479 = vpop.f32.mrb[0].mxu0
    %v2480 = vadd.f32 0.0, %v2479
    %v2481 = vpop.f32.mrb[0].mxu0
    %v2482 = vadd.f32 0.0, %v2481
    %2483 = vmatprep.mubr.bf16.mxu0 %v1787
    %2484 = vmatmul.mubr.bf16.gmra.mrb[0].mxu0 %v1786
    %v2485 = vpop.f32.mrb[0].mxu0
    %v2486 = vadd.f32 0.0, %v2485
    %v2487 = vpop.f32.mrb[0].mxu0
    %v2488 = vadd.f32 0.0, %v2487
    %v2489 = vpop.f32.mrb[0].mxu0
    %v2490 = vadd.f32 0.0, %v2489
    %v2491 = vpop.f32.mrb[0].mxu0
    %v2492 = vadd.f32 0.0, %v2491
    %2493 = vmatprep.mubr.bf16.mxu0 %v1789
    %2494 = vmatmul.mubr.bf16.gmra.mrb[0].mxu0 %v1788
    %v2495 = vpop.f32.mrb[0].mxu0
    %v2496 = vadd.f32 0.0, %v2495
    %v2497 = vpop.f32.mrb[0].mxu0
    %v2498 = vadd.f32 0.0, %v2497
    %v2499 = vpop.f32.mrb[0].mxu0
    %v2500 = vadd.f32 0.0, %v2499
    %v2501 = vpop.f32.mrb[0].mxu0
    %v2502 = vadd.f32 0.0, %v2501
    %2503 = vmatprep.mubr.bf16.mxu0 %v1791
    %2504 = vmatmul.mubr.bf16.gmra.mrb[0].mxu0 %v1790
    %v2505 = vpop.f32.mrb[0].mxu0
    %v2506 = vadd.f32 0.0, %v2505
    %v2507 = vpop.f32.mrb[0].mxu0
    %v2508 = vadd.f32 0.0, %v2507
    %v2509 = vpop.f32.mrb[0].mxu0
    %v2510 = vadd.f32 0.0, %v2509
    %v2511 = vpop.f32.mrb[0].mxu0
    %v2512 = vadd.f32 0.0, %v2511
    %2513 = vmatprep.mubr.bf16.mxu0 %v1793
    %2514 = vmatmul.mubr.bf16.gmra.mrb[0].mxu0 %v1792
    %v2515 = vpop.f32.mrb[0].mxu0
    %v2516 = vadd.f32 0.0, %v2515
    %v2517 = vpop.f32.mrb[0].mxu0
    %v2518 = vadd.f32 0.0, %v2517
    %v2519 = vpop.f32.mrb[0].mxu0
    %v2520 = vadd.f32 0.0, %v2519
    %v2521 = vpop.f32.mrb[0].mxu0
    %v2522 = vadd.f32 0.0, %v2521
    %2523 = vmatprep.mubr.bf16.mxu0 %v1795
    %2524 = vmatmul.mubr.bf16.gmra.mrb[0].mxu0 %v1794
    %v2525 = vpop.f32.mrb[0].mxu0
    %v2526 = vadd.f32 0.0, %v2525
    %v2527 = vpop.f32.mrb[0].mxu0
    %v2528 = vadd.f32 0.0, %v2527
    %v2529 = vpop.f32.mrb[0].mxu0
    %v2530 = vadd.f32 0.0, %v2529
    %v2531 = vpop.f32.mrb[0].mxu0
    %v2532 = vadd.f32 0.0, %v2531
    %2533 = vmatprep.mubr.bf16.mxu0 %v1797
    %2534 = vmatmul.mubr.bf16.gmra.mrb[0].mxu0 %v1796
    %v2535 = vpop.f32.mrb[0].mxu0
    %v2536 = vadd.f32 0.0, %v2535
    %v2537 = vpop.f32.mrb[0].mxu0
    %v2538 = vadd.f32 0.0, %v2537
    %v2539 = vpop.f32.mrb[0].mxu0
    %v2540 = vadd.f32 0.0, %v2539
    %v2541 = vpop.f32.mrb[0].mxu0
    %v2542 = vadd.f32 0.0, %v2541
    %2543 = vmatprep.mubr.bf16.mxu0 %v1799
    %2544 = vmatmul.mubr.bf16.gmra.mrb[0].mxu0 %v1798
    %v2545 = vpop.f32.mrb[0].mxu0
    %v2546 = vadd.f32 0.0, %v2545
    %v2547 = vpop.f32.mrb[0].mxu0
    %v2548 = vadd.f32 0.0, %v2547
    %v2549 = vpop.f32.mrb[0].mxu0
    %v2550 = vadd.f32 0.0, %v2549
    %v2551 = vpop.f32.mrb[0].mxu0
    %v2552 = vadd.f32 0.0, %v2551
    %2553 = vmatprep.mubr.bf16.mxu0 %v1801
    %2554 = vmatmul.mubr.bf16.gmra.mrb[0].mxu0 %v1800
    %v2555 = vpop.f32.mrb[0].mxu0
    %v2556 = vadd.f32 0.0, %v2555
    %v2557 = vpop.f32.mrb[0].mxu0
    %v2558 = vadd.f32 0.0, %v2557
    %v2559 = vpop.f32.mrb[0].mxu0
    %v2560 = vadd.f32 0.0, %v2559
    %v2561 = vpop.f32.mrb[0].mxu0
    %v2562 = vadd.f32 0.0, %v2561
    %2563 = vmatprep.mubr.bf16.mxu0 %v1803
    %2564 = vmatmul.mubr.bf16.gmra.mrb[0].mxu0 %v1802
    %v2565 = vpop.f32.mrb[0].mxu0
    %v2566 = vadd.f32 0.0, %v2565
    %v2567 = vpop.f32.mrb[0].mxu0
    %v2568 = vadd.f32 0.0, %v2567
    %v2569 = vpop.f32.mrb[0].mxu0
    %v2570 = vadd.f32 0.0, %v2569
    %v2571 = vpop.f32.mrb[0].mxu0
    %v2572 = vadd.f32 0.0, %v2571
    %2573 = vdwg.mxu0
    %v2578 = vcombine.low %v1725, %v1727
    %v2579 = vcombine.high %v1725, %v1727
    %v2580 = vcombine.low %v1766, %v1768
    %v2581 = vcombine.high %v1766, %v1768
    %v2583 = vunpack.c.l.s4 1966171168
    %v2584 = vunpack.c.0.s8 %v2583
    %v2585 = vlaneseq
    %v2586 = vshrl.u32 %v2585, 7
    %v2587 = vsub.s32 %v2584, %v2586
    %v2588 = vrot.slane %v2578, %v2587
    %v2590 = vunpack.c.l.s4 1966171168
    %v2591 = vunpack.c.0.s8 %v2590
    %v2592 = vlaneseq
    %v2593 = vshrl.u32 %v2592, 7
    %v2594 = vsub.s32 %v2591, %v2593
    %v2595 = vrot.slane %v2579, %v2594
    %v2597 = vunpack.c.l.s4 1966171168
    %v2598 = vunpack.c.0.s8 %v2597
    %v2599 = vlaneseq
    %v2600 = vshrl.u32 %v2599, 7
    %v2601 = vsub.s32 %v2598, %v2600
    %v2602 = vrot.slane %v2580, %v2601
    %v2604 = vunpack.c.l.s4 1966171168
    %v2605 = vunpack.c.0.s8 %v2604
    %v2606 = vlaneseq
    %v2607 = vshrl.u32 %v2606, 7
    %v2608 = vsub.s32 %v2605, %v2607
    %v2609 = vrot.slane %v2581, %v2608
    %v2610 = vcombine.low %v2588, %v2602
    %v2611 = vcombine.high %v2588, %v2602
    %v2612 = vcombine.low %v2595, %v2609
    %v2613 = vcombine.high %v2595, %v2609
    %v2615 = vunpack.c.l.s4 1966171168
    %v2616 = vunpack.c.0.s8 %v2615
    %v2617 = vlaneseq
    %v2618 = vshrl.u32 %v2617, 7
    %v2619 = vsub.s32 %v2616, %v2618
    %v2620 = vrot.slane %v2610, %v2619
    %v2622 = vunpack.c.l.s4 1966171168
    %v2623 = vunpack.c.0.s8 %v2622
    %v2624 = vlaneseq
    %v2625 = vshrl.u32 %v2624, 7
    %v2626 = vsub.s32 %v2623, %v2625
    %v2627 = vrot.slane %v2612, %v2626
    %v2629 = vunpack.c.l.s4 1966171168
    %v2630 = vunpack.c.0.s8 %v2629
    %v2631 = vlaneseq
    %v2632 = vshrl.u32 %v2631, 7
    %v2633 = vsub.s32 %v2630, %v2632
    %v2634 = vrot.slane %v2611, %v2633
    %v2636 = vunpack.c.l.s4 1966171168
    %v2637 = vunpack.c.0.s8 %v2636
    %v2638 = vlaneseq
    %v2639 = vshrl.u32 %v2638, 7
    %v2640 = vsub.s32 %v2637, %v2639
    %v2641 = vrot.slane %v2613, %v2640
    %v2642 = vcombine.high %v2620, %v2620
    %v2643 = vcombine.high %v2627, %v2627
    %v2644 = vcombine.high %v2634, %v2634
    %v2645 = vcombine.high %v2641, %v2641
    %v2646 = vlaneseq
    %v2647 = vshrl.u32 %v2646, 7
    %v2648 = vsub.s32 0, %v2647
    %v2649 = vrot.slane %v2620, %v2648
    %v2650 = vlaneseq
    %v2651 = vshrl.u32 %v2650, 7
    %v2652 = vsub.s32 1, %v2651
    %v2653 = vrot.slane %v2620, %v2652
    %v2654 = vlaneseq
    %v2655 = vshrl.u32 %v2654, 7
    %v2656 = vsub.s32 2, %v2655
    %v2657 = vrot.slane %v2620, %v2656
    %v2658 = vlaneseq
    %v2659 = vshrl.u32 %v2658, 7
    %v2660 = vsub.s32 3, %v2659
    %v2661 = vrot.slane %v2620, %v2660
    %v2662 = vlaneseq
    %v2663 = vshrl.u32 %v2662, 7
    %v2664 = vsub.s32 0, %v2663
    %v2665 = vrot.slane %v2634, %v2664
    %v2666 = vlaneseq
    %v2667 = vshrl.u32 %v2666, 7
    %v2668 = vsub.s32 1, %v2667
    %v2669 = vrot.slane %v2634, %v2668
    %v2670 = vlaneseq
    %v2671 = vshrl.u32 %v2670, 7
    %v2672 = vsub.s32 2, %v2671
    %v2673 = vrot.slane %v2634, %v2672
    %v2674 = vlaneseq
    %v2675 = vshrl.u32 %v2674, 7
    %v2676 = vsub.s32 3, %v2675
    %v2677 = vrot.slane %v2634, %v2676
    %v2678 = vlaneseq
    %v2679 = vshrl.u32 %v2678, 7
    %v2680 = vsub.s32 0, %v2679
    %v2681 = vrot.slane %v2642, %v2680
    %v2682 = vlaneseq
    %v2683 = vshrl.u32 %v2682, 7
    %v2684 = vsub.s32 1, %v2683
    %v2685 = vrot.slane %v2642, %v2684
    %v2686 = vlaneseq
    %v2687 = vshrl.u32 %v2686, 7
    %v2688 = vsub.s32 2, %v2687
    %v2689 = vrot.slane %v2642, %v2688
    %v2690 = vlaneseq
    %v2691 = vshrl.u32 %v2690, 7
    %v2692 = vsub.s32 3, %v2691
    %v2693 = vrot.slane %v2642, %v2692
    %v2694 = vlaneseq
    %v2695 = vshrl.u32 %v2694, 7
    %v2696 = vsub.s32 0, %v2695
    %v2697 = vrot.slane %v2644, %v2696
    %v2698 = vlaneseq
    %v2699 = vshrl.u32 %v2698, 7
    %v2700 = vsub.s32 1, %v2699
    %v2701 = vrot.slane %v2644, %v2700
    %v2702 = vlaneseq
    %v2703 = vshrl.u32 %v2702, 7
    %v2704 = vsub.s32 2, %v2703
    %v2705 = vrot.slane %v2644, %v2704
    %v2706 = vlaneseq
    %v2707 = vshrl.u32 %v2706, 7
    %v2708 = vsub.s32 3, %v2707
    %v2709 = vrot.slane %v2644, %v2708
    %v2710 = vlaneseq
    %v2711 = vshrl.u32 %v2710, 7
    %v2712 = vsub.s32 0, %v2711
    %v2713 = vrot.slane %v2627, %v2712
    %v2714 = vlaneseq
    %v2715 = vshrl.u32 %v2714, 7
    %v2716 = vsub.s32 1, %v2715
    %v2717 = vrot.slane %v2627, %v2716
    %v2718 = vlaneseq
    %v2719 = vshrl.u32 %v2718, 7
    %v2720 = vsub.s32 2, %v2719
    %v2721 = vrot.slane %v2627, %v2720
    %v2722 = vlaneseq
    %v2723 = vshrl.u32 %v2722, 7
    %v2724 = vsub.s32 3, %v2723
    %v2725 = vrot.slane %v2627, %v2724
    %v2726 = vlaneseq
    %v2727 = vshrl.u32 %v2726, 7
    %v2728 = vsub.s32 0, %v2727
    %v2729 = vrot.slane %v2641, %v2728
    %v2730 = vlaneseq
    %v2731 = vshrl.u32 %v2730, 7
    %v2732 = vsub.s32 1, %v2731
    %v2733 = vrot.slane %v2641, %v2732
    %v2734 = vlaneseq
    %v2735 = vshrl.u32 %v2734, 7
    %v2736 = vsub.s32 2, %v2735
    %v2737 = vrot.slane %v2641, %v2736
    %v2738 = vlaneseq
    %v2739 = vshrl.u32 %v2738, 7
    %v2740 = vsub.s32 3, %v2739
    %v2741 = vrot.slane %v2641, %v2740
    %v2742 = vlaneseq
    %v2743 = vshrl.u32 %v2742, 7
    %v2744 = vsub.s32 0, %v2743
    %v2745 = vrot.slane %v2643, %v2744
    %v2746 = vlaneseq
    %v2747 = vshrl.u32 %v2746, 7
    %v2748 = vsub.s32 1, %v2747
    %v2749 = vrot.slane %v2643, %v2748
    %v2750 = vlaneseq
    %v2751 = vshrl.u32 %v2750, 7
    %v2752 = vsub.s32 2, %v2751
    %v2753 = vrot.slane %v2643, %v2752
    %v2754 = vlaneseq
    %v2755 = vshrl.u32 %v2754, 7
    %v2756 = vsub.s32 3, %v2755
    %v2757 = vrot.slane %v2643, %v2756
    %v2758 = vlaneseq
    %v2759 = vshrl.u32 %v2758, 7
    %v2760 = vsub.s32 0, %v2759
    %v2761 = vrot.slane %v2645, %v2760
    %v2762 = vlaneseq
    %v2763 = vshrl.u32 %v2762, 7
    %v2764 = vsub.s32 1, %v2763
    %v2765 = vrot.slane %v2645, %v2764
    %v2766 = vlaneseq
    %v2767 = vshrl.u32 %v2766, 7
    %v2768 = vsub.s32 2, %v2767
    %v2769 = vrot.slane %v2645, %v2768
    %v2770 = vlaneseq
    %v2771 = vshrl.u32 %v2770, 7
    %v2772 = vsub.s32 3, %v2771
    %v2773 = vrot.slane %v2645, %v2772
    %v2806 = vadd.f32 %v2223, %v2649
    %v2807 = vadd.f32 %v2225, %v2653
    %v2808 = vadd.f32 %v2416, %v2657
    %v2809 = vadd.f32 %v2418, %v2661
    %v2810 = vadd.f32 %v2227, %v2649
    %v2811 = vadd.f32 %v2229, %v2653
    %v2812 = vadd.f32 %v2420, %v2657
    %v2813 = vadd.f32 %v2422, %v2661
    %v2814 = vadd.f32 %v2233, %v2649
    %v2815 = vadd.f32 %v2235, %v2653
    %v2816 = vadd.f32 %v2426, %v2657
    %v2817 = vadd.f32 %v2428, %v2661
    %v2818 = vadd.f32 %v2237, %v2649
    %v2819 = vadd.f32 %v2239, %v2653
    %v2820 = vadd.f32 %v2430, %v2657
    %v2821 = vadd.f32 %v2432, %v2661
    %v2822 = vadd.f32 %v2243, %v2665
    %v2823 = vadd.f32 %v2245, %v2669
    %v2824 = vadd.f32 %v2436, %v2673
    %v2825 = vadd.f32 %v2438, %v2677
    %v2826 = vadd.f32 %v2247, %v2665
    %v2827 = vadd.f32 %v2249, %v2669
    %v2828 = vadd.f32 %v2440, %v2673
    %v2829 = vadd.f32 %v2442, %v2677
    %v2830 = vadd.f32 %v2253, %v2665
    %v2831 = vadd.f32 %v2255, %v2669
    %v2832 = vadd.f32 %v2446, %v2673
    %v2833 = vadd.f32 %v2448, %v2677
    %v2834 = vadd.f32 %v2257, %v2665
    %v2835 = vadd.f32 %v2259, %v2669
    %v2836 = vadd.f32 %v2450, %v2673
    %v2837 = vadd.f32 %v2452, %v2677
    %v2838 = vadd.f32 %v2263, %v2681
    %v2839 = vadd.f32 %v2265, %v2685
    %v2840 = vadd.f32 %v2456, %v2689
    %v2841 = vadd.f32 %v2458, %v2693
    %v2842 = vadd.f32 %v2267, %v2681
    %v2843 = vadd.f32 %v2269, %v2685
    %v2844 = vadd.f32 %v2460, %v2689
    %v2845 = vadd.f32 %v2462, %v2693
    %v2846 = vadd.f32 %v2273, %v2681
    %v2847 = vadd.f32 %v2275, %v2685
    %v2848 = vadd.f32 %v2466, %v2689
    %v2849 = vadd.f32 %v2468, %v2693
    %v2850 = vadd.f32 %v2277, %v2681
    %v2851 = vadd.f32 %v2279, %v2685
    %v2852 = vadd.f32 %v2470, %v2689
    %v2853 = vadd.f32 %v2472, %v2693
    %v2854 = vadd.f32 %v2283, %v2697
    %v2855 = vadd.f32 %v2285, %v2701
    %v2856 = vadd.f32 %v2476, %v2705
    %v2857 = vadd.f32 %v2478, %v2709
    %v2858 = vadd.f32 %v2287, %v2697
    %v2859 = vadd.f32 %v2289, %v2701
    %v2860 = vadd.f32 %v2480, %v2705
    %v2861 = vadd.f32 %v2482, %v2709
    %v2862 = vadd.f32 %v2293, %v2697
    %v2863 = vadd.f32 %v2295, %v2701
    %v2864 = vadd.f32 %v2486, %v2705
    %v2865 = vadd.f32 %v2488, %v2709
    %v2866 = vadd.f32 %v2297, %v2697
    %v2867 = vadd.f32 %v2299, %v2701
    %v2868 = vadd.f32 %v2490, %v2705
    %v2869 = vadd.f32 %v2492, %v2709
    %v2870 = vadd.f32 %v2303, %v2713
    %v2871 = vadd.f32 %v2305, %v2717
    %v2872 = vadd.f32 %v2496, %v2721
    %v2873 = vadd.f32 %v2498, %v2725
    %v2874 = vadd.f32 %v2307, %v2713
    %v2875 = vadd.f32 %v2309, %v2717
    %v2876 = vadd.f32 %v2500, %v2721
    %v2877 = vadd.f32 %v2502, %v2725
    %v2878 = vadd.f32 %v2313, %v2713
    %v2879 = vadd.f32 %v2315, %v2717
    %v2880 = vadd.f32 %v2506, %v2721
    %v2881 = vadd.f32 %v2508, %v2725
    %v2882 = vadd.f32 %v2317, %v2713
    %v2883 = vadd.f32 %v2319, %v2717
    %v2884 = vadd.f32 %v2510, %v2721
    %v2885 = vadd.f32 %v2512, %v2725
    %v2886 = vadd.f32 %v2323, %v2729
    %v2887 = vadd.f32 %v2325, %v2733
    %v2888 = vadd.f32 %v2516, %v2737
    %v2889 = vadd.f32 %v2518, %v2741
    %v2890 = vadd.f32 %v2327, %v2729
    %v2891 = vadd.f32 %v2329, %v2733
    %v2892 = vadd.f32 %v2520, %v2737
    %v2893 = vadd.f32 %v2522, %v2741
    %v2894 = vadd.f32 %v2333, %v2729
    %v2895 = vadd.f32 %v2335, %v2733
    %v2896 = vadd.f32 %v2526, %v2737
    %v2897 = vadd.f32 %v2528, %v2741
    %v2898 = vadd.f32 %v2337, %v2729
    %v2899 = vadd.f32 %v2339, %v2733
    %v2900 = vadd.f32 %v2530, %v2737
    %v2901 = vadd.f32 %v2532, %v2741
    %v2902 = vadd.f32 %v2343, %v2745
    %v2903 = vadd.f32 %v2345, %v2749
    %v2904 = vadd.f32 %v2536, %v2753
    %v2905 = vadd.f32 %v2538, %v2757
    %v2906 = vadd.f32 %v2347, %v2745
    %v2907 = vadd.f32 %v2349, %v2749
    %v2908 = vadd.f32 %v2540, %v2753
    %v2909 = vadd.f32 %v2542, %v2757
    %v2910 = vadd.f32 %v2353, %v2745
    %v2911 = vadd.f32 %v2355, %v2749
    %v2912 = vadd.f32 %v2546, %v2753
    %v2913 = vadd.f32 %v2548, %v2757
    %v2914 = vadd.f32 %v2357, %v2745
    %v2915 = vadd.f32 %v2359, %v2749
    %v2916 = vadd.f32 %v2550, %v2753
    %v2917 = vadd.f32 %v2552, %v2757
    %v2918 = vadd.f32 %v2363, %v2761
    %v2919 = vadd.f32 %v2365, %v2765
    %v2920 = vadd.f32 %v2556, %v2769
    %v2921 = vadd.f32 %v2558, %v2773
    %v2922 = vadd.f32 %v2367, %v2761
    %v2923 = vadd.f32 %v2369, %v2765
    %v2924 = vadd.f32 %v2560, %v2769
    %v2925 = vadd.f32 %v2562, %v2773
    %v2926 = vadd.f32 %v2373, %v2761
    %v2927 = vadd.f32 %v2375, %v2765
    %v2928 = vadd.f32 %v2566, %v2769
    %v2929 = vadd.f32 %v2568, %v2773
    %v2930 = vadd.f32 %v2377, %v2761
    %v2931 = vadd.f32 %v2379, %v2765
    %v2932 = vadd.f32 %v2570, %v2769
    %v2933 = vadd.f32 %v2572, %v2773
    %v2934 = vld [vmem:[%s7] sm:$0xf]
    %v2936 = vlaneseq
    %v2937 = vshrl.u32 %v2936, 7
    %v2938 = vsub.s32 0, %v2937
    %v2939 = vrot.slane %v2934, %v2938
    %v2940 = vlaneseq
    %v2941 = vshrl.u32 %v2940, 7
    %v2942 = vsub.s32 1, %v2941
    %v2943 = vrot.slane %v2934, %v2942
    %v2944 = vlaneseq
    %v2945 = vshrl.u32 %v2944, 7
    %v2946 = vsub.s32 2, %v2945
    %v2947 = vrot.slane %v2934, %v2946
    %v2948 = vlaneseq
    %v2949 = vshrl.u32 %v2948, 7
    %v2950 = vsub.s32 3, %v2949
    %v2951 = vrot.slane %v2934, %v2950
    %v2956 = vadd.f32 %v2806, %v2939
    %v2957 = vadd.f32 %v2807, %v2943
    %v2958 = vadd.f32 %v2808, %v2947
    %v2959 = vadd.f32 %v2809, %v2951
    %v2960 = vadd.f32 %v2810, %v2939
    %v2961 = vadd.f32 %v2811, %v2943
    %v2962 = vadd.f32 %v2812, %v2947
    %v2963 = vadd.f32 %v2813, %v2951
    %v2964 = vadd.f32 %v2814, %v2939
    %v2965 = vadd.f32 %v2815, %v2943
    %v2966 = vadd.f32 %v2816, %v2947
    %v2967 = vadd.f32 %v2817, %v2951
    %v2968 = vadd.f32 %v2818, %v2939
    %v2969 = vadd.f32 %v2819, %v2943
    %v2970 = vadd.f32 %v2820, %v2947
    %v2971 = vadd.f32 %v2821, %v2951
    %v2972 = vadd.f32 %v2822, %v2939
    %v2973 = vadd.f32 %v2823, %v2943
    %v2974 = vadd.f32 %v2824, %v2947
    %v2975 = vadd.f32 %v2825, %v2951
    %v2976 = vadd.f32 %v2826, %v2939
    %v2977 = vadd.f32 %v2827, %v2943
    %v2978 = vadd.f32 %v2828, %v2947
    %v2979 = vadd.f32 %v2829, %v2951
    %v2980 = vadd.f32 %v2830, %v2939
    %v2981 = vadd.f32 %v2831, %v2943
    %v2982 = vadd.f32 %v2832, %v2947
    %v2983 = vadd.f32 %v2833, %v2951
    %v2984 = vadd.f32 %v2834, %v2939
    %v2985 = vadd.f32 %v2835, %v2943
    %v2986 = vadd.f32 %v2836, %v2947
    %v2987 = vadd.f32 %v2837, %v2951
    %v2988 = vadd.f32 %v2838, %v2939
    %v2989 = vadd.f32 %v2839, %v2943
    %v2990 = vadd.f32 %v2840, %v2947
    %v2991 = vadd.f32 %v2841, %v2951
    %v2992 = vadd.f32 %v2842, %v2939
    %v2993 = vadd.f32 %v2843, %v2943
    %v2994 = vadd.f32 %v2844, %v2947
    %v2995 = vadd.f32 %v2845, %v2951
    %v2996 = vadd.f32 %v2846, %v2939
    %v2997 = vadd.f32 %v2847, %v2943
    %v2998 = vadd.f32 %v2848, %v2947
    %v2999 = vadd.f32 %v2849, %v2951
    %v3000 = vadd.f32 %v2850, %v2939
    %v3001 = vadd.f32 %v2851, %v2943
    %v3002 = vadd.f32 %v2852, %v2947
    %v3003 = vadd.f32 %v2853, %v2951
    %v3004 = vadd.f32 %v2854, %v2939
    %v3005 = vadd.f32 %v2855, %v2943
    %v3006 = vadd.f32 %v2856, %v2947
    %v3007 = vadd.f32 %v2857, %v2951
    %v3008 = vadd.f32 %v2858, %v2939
    %v3009 = vadd.f32 %v2859, %v2943
    %v3010 = vadd.f32 %v2860, %v2947
    %v3011 = vadd.f32 %v2861, %v2951
    %v3012 = vadd.f32 %v2862, %v2939
    %v3013 = vadd.f32 %v2863, %v2943
    %v3014 = vadd.f32 %v2864, %v2947
    %v3015 = vadd.f32 %v2865, %v2951
    %v3016 = vadd.f32 %v2866, %v2939
    %v3017 = vadd.f32 %v2867, %v2943
    %v3018 = vadd.f32 %v2868, %v2947
    %v3019 = vadd.f32 %v2869, %v2951
    %v3020 = vadd.f32 %v2870, %v2939
    %v3021 = vadd.f32 %v2871, %v2943
    %v3022 = vadd.f32 %v2872, %v2947
    %v3023 = vadd.f32 %v2873, %v2951
    %v3024 = vadd.f32 %v2874, %v2939
    %v3025 = vadd.f32 %v2875, %v2943
    %v3026 = vadd.f32 %v2876, %v2947
    %v3027 = vadd.f32 %v2877, %v2951
    %v3028 = vadd.f32 %v2878, %v2939
    %v3029 = vadd.f32 %v2879, %v2943
    %v3030 = vadd.f32 %v2880, %v2947
    %v3031 = vadd.f32 %v2881, %v2951
    %v3032 = vadd.f32 %v2882, %v2939
    %v3033 = vadd.f32 %v2883, %v2943
    %v3034 = vadd.f32 %v2884, %v2947
    %v3035 = vadd.f32 %v2885, %v2951
    %v3036 = vadd.f32 %v2886, %v2939
    %v3037 = vadd.f32 %v2887, %v2943
    %v3038 = vadd.f32 %v2888, %v2947
    %v3039 = vadd.f32 %v2889, %v2951
    %v3040 = vadd.f32 %v2890, %v2939
    %v3041 = vadd.f32 %v2891, %v2943
    %v3042 = vadd.f32 %v2892, %v2947
    %v3043 = vadd.f32 %v2893, %v2951
    %v3044 = vadd.f32 %v2894, %v2939
    %v3045 = vadd.f32 %v2895, %v2943
    %v3046 = vadd.f32 %v2896, %v2947
    %v3047 = vadd.f32 %v2897, %v2951
    %v3048 = vadd.f32 %v2898, %v2939
    %v3049 = vadd.f32 %v2899, %v2943
    %v3050 = vadd.f32 %v2900, %v2947
    %v3051 = vadd.f32 %v2901, %v2951
    %v3052 = vadd.f32 %v2902, %v2939
    %v3053 = vadd.f32 %v2903, %v2943
    %v3054 = vadd.f32 %v2904, %v2947
    %v3055 = vadd.f32 %v2905, %v2951
    %v3056 = vadd.f32 %v2906, %v2939
    %v3057 = vadd.f32 %v2907, %v2943
    %v3058 = vadd.f32 %v2908, %v2947
    %v3059 = vadd.f32 %v2909, %v2951
    %v3060 = vadd.f32 %v2910, %v2939
    %v3061 = vadd.f32 %v2911, %v2943
    %v3062 = vadd.f32 %v2912, %v2947
    %v3063 = vadd.f32 %v2913, %v2951
    %v3064 = vadd.f32 %v2914, %v2939
    %v3065 = vadd.f32 %v2915, %v2943
    %v3066 = vadd.f32 %v2916, %v2947
    %v3067 = vadd.f32 %v2917, %v2951
    %v3068 = vadd.f32 %v2918, %v2939
    %v3069 = vadd.f32 %v2919, %v2943
    %v3070 = vadd.f32 %v2920, %v2947
    %v3071 = vadd.f32 %v2921, %v2951
    %v3072 = vadd.f32 %v2922, %v2939
    %v3073 = vadd.f32 %v2923, %v2943
    %v3074 = vadd.f32 %v2924, %v2947
    %v3075 = vadd.f32 %v2925, %v2951
    %v3076 = vadd.f32 %v2926, %v2939
    %v3077 = vadd.f32 %v2927, %v2943
    %v3078 = vadd.f32 %v2928, %v2947
    %v3079 = vadd.f32 %v2929, %v2951
    %v3080 = vadd.f32 %v2930, %v2939
    %v3081 = vadd.f32 %v2931, %v2943
    %v3082 = vadd.f32 %v2932, %v2947
    %v3083 = vadd.f32 %v2933, %v2951
    %v3084 = vmax.f32 %v2956, 0.0
    %v3085 = vmax.f32 %v2957, 0.0
    %v3086 = vmax.f32 %v2958, 0.0
    %v3087 = vmax.f32 %v2959, 0.0
    %v3088 = vmax.f32 %v2960, 0.0
    %v3089 = vmax.f32 %v2961, 0.0
    %v3090 = vmax.f32 %v2962, 0.0
    %v3091 = vmax.f32 %v2963, 0.0
    %v3092 = vmax.f32 %v2964, 0.0
    %v3093 = vmax.f32 %v2965, 0.0
    %v3094 = vmax.f32 %v2966, 0.0
    %v3095 = vmax.f32 %v2967, 0.0
    %v3096 = vmax.f32 %v2968, 0.0
    %v3097 = vmax.f32 %v2969, 0.0
    %v3098 = vmax.f32 %v2970, 0.0
    %v3099 = vmax.f32 %v2971, 0.0
    %v3100 = vmax.f32 %v2972, 0.0
    %v3101 = vmax.f32 %v2973, 0.0
    %v3102 = vmax.f32 %v2974, 0.0
    %v3103 = vmax.f32 %v2975, 0.0
    %v3104 = vmax.f32 %v2976, 0.0
    %v3105 = vmax.f32 %v2977, 0.0
    %v3106 = vmax.f32 %v2978, 0.0
    %v3107 = vmax.f32 %v2979, 0.0
    %v3108 = vmax.f32 %v2980, 0.0
    %v3109 = vmax.f32 %v2981, 0.0
    %v3110 = vmax.f32 %v2982, 0.0
    %v3111 = vmax.f32 %v2983, 0.0
    %v3112 = vmax.f32 %v2984, 0.0
    %v3113 = vmax.f32 %v2985, 0.0
    %v3114 = vmax.f32 %v2986, 0.0
    %v3115 = vmax.f32 %v2987, 0.0
    %v3116 = vmax.f32 %v2988, 0.0
    %v3117 = vmax.f32 %v2989, 0.0
    %v3118 = vmax.f32 %v2990, 0.0
    %v3119 = vmax.f32 %v2991, 0.0
    %v3120 = vmax.f32 %v2992, 0.0
    %v3121 = vmax.f32 %v2993, 0.0
    %v3122 = vmax.f32 %v2994, 0.0
    %v3123 = vmax.f32 %v2995, 0.0
    %v3124 = vmax.f32 %v2996, 0.0
    %v3125 = vmax.f32 %v2997, 0.0
    %v3126 = vmax.f32 %v2998, 0.0
    %v3127 = vmax.f32 %v2999, 0.0
    %v3128 = vmax.f32 %v3000, 0.0
    %v3129 = vmax.f32 %v3001, 0.0
    %v3130 = vmax.f32 %v3002, 0.0
    %v3131 = vmax.f32 %v3003, 0.0
    %v3132 = vmax.f32 %v3004, 0.0
    %v3133 = vmax.f32 %v3005, 0.0
    %v3134 = vmax.f32 %v3006, 0.0
    %v3135 = vmax.f32 %v3007, 0.0
    %v3136 = vmax.f32 %v3008, 0.0
    %v3137 = vmax.f32 %v3009, 0.0
    %v3138 = vmax.f32 %v3010, 0.0
    %v3139 = vmax.f32 %v3011, 0.0
    %v3140 = vmax.f32 %v3012, 0.0
    %v3141 = vmax.f32 %v3013, 0.0
    %v3142 = vmax.f32 %v3014, 0.0
    %v3143 = vmax.f32 %v3015, 0.0
    %v3144 = vmax.f32 %v3016, 0.0
    %v3145 = vmax.f32 %v3017, 0.0
    %v3146 = vmax.f32 %v3018, 0.0
    %v3147 = vmax.f32 %v3019, 0.0
    %v3148 = vmax.f32 %v3020, 0.0
    %v3149 = vmax.f32 %v3021, 0.0
    %v3150 = vmax.f32 %v3022, 0.0
    %v3151 = vmax.f32 %v3023, 0.0
    %v3152 = vmax.f32 %v3024, 0.0
    %v3153 = vmax.f32 %v3025, 0.0
    %v3154 = vmax.f32 %v3026, 0.0
    %v3155 = vmax.f32 %v3027, 0.0
    %v3156 = vmax.f32 %v3028, 0.0
    %v3157 = vmax.f32 %v3029, 0.0
    %v3158 = vmax.f32 %v3030, 0.0
    %v3159 = vmax.f32 %v3031, 0.0
    %v3160 = vmax.f32 %v3032, 0.0
    %v3161 = vmax.f32 %v3033, 0.0
    %v3162 = vmax.f32 %v3034, 0.0
    %v3163 = vmax.f32 %v3035, 0.0
    %v3164 = vmax.f32 %v3036, 0.0
    %v3165 = vmax.f32 %v3037, 0.0
    %v3166 = vmax.f32 %v3038, 0.0
    %v3167 = vmax.f32 %v3039, 0.0
    %v3168 = vmax.f32 %v3040, 0.0
    %v3169 = vmax.f32 %v3041, 0.0
    %v3170 = vmax.f32 %v3042, 0.0
    %v3171 = vmax.f32 %v3043, 0.0
    %v3172 = vmax.f32 %v3044, 0.0
    %v3173 = vmax.f32 %v3045, 0.0
    %v3174 = vmax.f32 %v3046, 0.0
    %v3175 = vmax.f32 %v3047, 0.0
    %v3176 = vmax.f32 %v3048, 0.0
    %v3177 = vmax.f32 %v3049, 0.0
    %v3178 = vmax.f32 %v3050, 0.0
    %v3179 = vmax.f32 %v3051, 0.0
    %v3180 = vmax.f32 %v3052, 0.0
    %v3181 = vmax.f32 %v3053, 0.0
    %v3182 = vmax.f32 %v3054, 0.0
    %v3183 = vmax.f32 %v3055, 0.0
    %v3184 = vmax.f32 %v3056, 0.0
    %v3185 = vmax.f32 %v3057, 0.0
    %v3186 = vmax.f32 %v3058, 0.0
    %v3187 = vmax.f32 %v3059, 0.0
    %v3188 = vmax.f32 %v3060, 0.0
    %v3189 = vmax.f32 %v3061, 0.0
    %v3190 = vmax.f32 %v3062, 0.0
    %v3191 = vmax.f32 %v3063, 0.0
    %v3192 = vmax.f32 %v3064, 0.0
    %v3193 = vmax.f32 %v3065, 0.0
    %v3194 = vmax.f32 %v3066, 0.0
    %v3195 = vmax.f32 %v3067, 0.0
    %v3196 = vmax.f32 %v3068, 0.0
    %v3197 = vmax.f32 %v3069, 0.0
    %v3198 = vmax.f32 %v3070, 0.0
    %v3199 = vmax.f32 %v3071, 0.0
    %v3200 = vmax.f32 %v3072, 0.0
    %v3201 = vmax.f32 %v3073, 0.0
    %v3202 = vmax.f32 %v3074, 0.0
    %v3203 = vmax.f32 %v3075, 0.0
    %v3204 = vmax.f32 %v3076, 0.0
    %v3205 = vmax.f32 %v3077, 0.0
    %v3206 = vmax.f32 %v3078, 0.0
    %v3207 = vmax.f32 %v3079, 0.0
    %v3208 = vmax.f32 %v3080, 0.0
    %v3209 = vmax.f32 %v3081, 0.0
    %v3210 = vmax.f32 %v3082, 0.0
    %v3211 = vmax.f32 %v3083, 0.0
    %v3212 = vpack.c.bf16 %v3088, %v3084
    %v3213 = vpack.c.bf16 %v3089, %v3085
    %v3214 = vpack.c.bf16 %v3090, %v3086
    %v3215 = vpack.c.bf16 %v3091, %v3087
    %v3216 = vpack.c.bf16 %v3096, %v3092
    %v3217 = vpack.c.bf16 %v3097, %v3093
    %v3218 = vpack.c.bf16 %v3098, %v3094
    %v3219 = vpack.c.bf16 %v3099, %v3095
    %v3220 = vpack.c.bf16 %v3104, %v3100
    %v3221 = vpack.c.bf16 %v3105, %v3101
    %v3222 = vpack.c.bf16 %v3106, %v3102
    %v3223 = vpack.c.bf16 %v3107, %v3103
    %v3224 = vpack.c.bf16 %v3112, %v3108
    %v3225 = vpack.c.bf16 %v3113, %v3109
    %v3226 = vpack.c.bf16 %v3114, %v3110
    %v3227 = vpack.c.bf16 %v3115, %v3111
    %v3228 = vpack.c.bf16 %v3120, %v3116
    %v3229 = vpack.c.bf16 %v3121, %v3117
    %v3230 = vpack.c.bf16 %v3122, %v3118
    %v3231 = vpack.c.bf16 %v3123, %v3119
    %v3232 = vpack.c.bf16 %v3128, %v3124
    %v3233 = vpack.c.bf16 %v3129, %v3125
    %v3234 = vpack.c.bf16 %v3130, %v3126
    %v3235 = vpack.c.bf16 %v3131, %v3127
    %v3236 = vpack.c.bf16 %v3136, %v3132
    %v3237 = vpack.c.bf16 %v3137, %v3133
    %v3238 = vpack.c.bf16 %v3138, %v3134
    %v3239 = vpack.c.bf16 %v3139, %v3135
    %v3240 = vpack.c.bf16 %v3144, %v3140
    %v3241 = vpack.c.bf16 %v3145, %v3141
    %v3242 = vpack.c.bf16 %v3146, %v3142
    %v3243 = vpack.c.bf16 %v3147, %v3143
    %v3244 = vpack.c.bf16 %v3152, %v3148
    %v3245 = vpack.c.bf16 %v3153, %v3149
    %v3246 = vpack.c.bf16 %v3154, %v3150
    %v3247 = vpack.c.bf16 %v3155, %v3151
    %v3248 = vpack.c.bf16 %v3160, %v3156
    %v3249 = vpack.c.bf16 %v3161, %v3157
    %v3250 = vpack.c.bf16 %v3162, %v3158
    %v3251 = vpack.c.bf16 %v3163, %v3159
    %v3252 = vpack.c.bf16 %v3168, %v3164
    %v3253 = vpack.c.bf16 %v3169, %v3165
    %v3254 = vpack.c.bf16 %v3170, %v3166
    %v3255 = vpack.c.bf16 %v3171, %v3167
    %v3256 = vpack.c.bf16 %v3176, %v3172
    %v3257 = vpack.c.bf16 %v3177, %v3173
    %v3258 = vpack.c.bf16 %v3178, %v3174
    %v3259 = vpack.c.bf16 %v3179, %v3175
    %v3260 = vpack.c.bf16 %v3184, %v3180
    %v3261 = vpack.c.bf16 %v3185, %v3181
    %v3262 = vpack.c.bf16 %v3186, %v3182
    %v3263 = vpack.c.bf16 %v3187, %v3183
    %v3264 = vpack.c.bf16 %v3192, %v3188
    %v3265 = vpack.c.bf16 %v3193, %v3189
    %v3266 = vpack.c.bf16 %v3194, %v3190
    %v3267 = vpack.c.bf16 %v3195, %v3191
    %v3268 = vpack.c.bf16 %v3200, %v3196
    %v3269 = vpack.c.bf16 %v3201, %v3197
    %v3270 = vpack.c.bf16 %v3202, %v3198
    %v3271 = vpack.c.bf16 %v3203, %v3199
    %v3272 = vpack.c.bf16 %v3208, %v3204
    %v3273 = vpack.c.bf16 %v3209, %v3205
    %v3274 = vpack.c.bf16 %v3210, %v3206
    %v3275 = vpack.c.bf16 %v3211, %v3207
    %v3276 = vld [vmem:[#allocation7] sm:$0xff]
    %v3277 = vld [vmem:[#allocation7 + $0x8] sm:$0xff]
    %v3278 = vld [vmem:[#allocation7 + $0x10] sm:$0xff]
    %v3279 = vld [vmem:[#allocation7 + $0x18] sm:$0xff]
    %v3280 = vld [vmem:[#allocation7 + $0x20] sm:$0xff]
    %v3281 = vld [vmem:[#allocation7 + $0x28] sm:$0xff]
    %v3282 = vld [vmem:[#allocation7 + $0x30] sm:$0xff]
    %v3283 = vld [vmem:[#allocation7 + $0x38] sm:$0xff]
    %v3284 = vld [vmem:[#allocation7 + $0x40] sm:$0xff]
    %v3285 = vld [vmem:[#allocation7 + $0x48] sm:$0xff]
    %v3286 = vld [vmem:[#allocation7 + $0x50] sm:$0xff]
    %v3287 = vld [vmem:[#allocation7 + $0x58] sm:$0xff]
    %v3288 = vld [vmem:[#allocation7 + $0x60] sm:$0xff]
    %v3289 = vld [vmem:[#allocation7 + $0x68] sm:$0xff]
    %v3290 = vld [vmem:[#allocation7 + $0x70] sm:$0xff]
    %v3291 = vld [vmem:[#allocation7 + $0x78] sm:$0xff]
    %v3292 = vld [vmem:[#allocation7 + $0x80] sm:$0xff]
    %v3293 = vld [vmem:[#allocation7 + $0x88] sm:$0xff]
    %v3294 = vld [vmem:[#allocation7 + $0x90] sm:$0xff]
    %v3295 = vld [vmem:[#allocation7 + $0x98] sm:$0xff]
    %v3296 = vld [vmem:[#allocation7 + $0xa0] sm:$0xff]
    %v3297 = vld [vmem:[#allocation7 + $0xa8] sm:$0xff]
    %v3298 = vld [vmem:[#allocation7 + $0xb0] sm:$0xff]
    %v3299 = vld [vmem:[#allocation7 + $0xb8] sm:$0xff]
    %v3300 = vld [vmem:[#allocation7 + $0xc0] sm:$0xff]
    %v3301 = vld [vmem:[#allocation7 + $0xc8] sm:$0xff]
    %v3302 = vld [vmem:[#allocation7 + $0xd0] sm:$0xff]
    %v3303 = vld [vmem:[#allocation7 + $0xd8] sm:$0xff]
    %v3304 = vld [vmem:[#allocation7 + $0xe0] sm:$0xff]
    %v3305 = vld [vmem:[#allocation7 + $0xe8] sm:$0xff]
    %v3306 = vld [vmem:[#allocation7 + $0xf0] sm:$0xff]
    %v3307 = vld [vmem:[#allocation7 + $0xf8] sm:$0xff]
    %v3308 = vld [vmem:[#allocation7 + $0x100] sm:$0xff]
    %v3309 = vld [vmem:[#allocation7 + $0x108] sm:$0xff]
    %v3310 = vld [vmem:[#allocation7 + $0x110] sm:$0xff]
    %v3311 = vld [vmem:[#allocation7 + $0x118] sm:$0xff]
    %v3312 = vld [vmem:[#allocation7 + $0x120] sm:$0xff]
    %v3313 = vld [vmem:[#allocation7 + $0x128] sm:$0xff]
    %v3314 = vld [vmem:[#allocation7 + $0x130] sm:$0xff]
    %v3315 = vld [vmem:[#allocation7 + $0x138] sm:$0xff]
    %v3316 = vld [vmem:[#allocation7 + $0x140] sm:$0xff]
    %v3317 = vld [vmem:[#allocation7 + $0x148] sm:$0xff]
    %v3318 = vld [vmem:[#allocation7 + $0x150] sm:$0xff]
    %v3319 = vld [vmem:[#allocation7 + $0x158] sm:$0xff]
    %v3320 = vld [vmem:[#allocation7 + $0x160] sm:$0xff]
    %v3321 = vld [vmem:[#allocation7 + $0x168] sm:$0xff]
    %v3322 = vld [vmem:[#allocation7 + $0x170] sm:$0xff]
    %v3323 = vld [vmem:[#allocation7 + $0x178] sm:$0xff]
    %v3324 = vld [vmem:[#allocation7 + $0x180] sm:$0xff]
    %v3325 = vld [vmem:[#allocation7 + $0x188] sm:$0xff]
    %v3326 = vld [vmem:[#allocation7 + $0x190] sm:$0xff]
    %v3327 = vld [vmem:[#allocation7 + $0x198] sm:$0xff]
    %v3328 = vld [vmem:[#allocation7 + $0x1a0] sm:$0xff]
    %v3329 = vld [vmem:[#allocation7 + $0x1a8] sm:$0xff]
    %v3330 = vld [vmem:[#allocation7 + $0x1b0] sm:$0xff]
    %v3331 = vld [vmem:[#allocation7 + $0x1b8] sm:$0xff]
    %v3332 = vld [vmem:[#allocation7 + $0x1c0] sm:$0xff]
    %v3333 = vld [vmem:[#allocation7 + $0x1c8] sm:$0xff]
    %v3334 = vld [vmem:[#allocation7 + $0x1d0] sm:$0xff]
    %v3335 = vld [vmem:[#allocation7 + $0x1d8] sm:$0xff]
    %v3336 = vld [vmem:[#allocation7 + $0x1e0] sm:$0xff]
    %v3337 = vld [vmem:[#allocation7 + $0x1e8] sm:$0xff]
    %v3338 = vld [vmem:[#allocation7 + $0x1f0] sm:$0xff]
    %v3339 = vld [vmem:[#allocation7 + $0x1f8] sm:$0xff]
    %v3340 = vld [vmem:[%s9] sm:$0x3]
    %v3342 = vlaneseq
    %v3343 = vshrl.u32 %v3342, 7
    %v3344 = vsub.s32 0, %v3343
    %v3345 = vrot.slane %v3340, %v3344
    %v3346 = vlaneseq
    %v3347 = vshrl.u32 %v3346, 7
    %v3348 = vsub.s32 1, %v3347
    %v3349 = vrot.slane %v3340, %v3348
    %v3416 = vunpack.c.l.b16 %v3276
    %v3417 = vunpack.c.h.b16 %v3276
    %v3418 = vunpack.c.l.b16 %v3277
    %v3419 = vunpack.c.h.b16 %v3277
    %v3420 = vunpack.c.l.b16 %v3278
    %v3421 = vunpack.c.h.b16 %v3278
    %v3422 = vunpack.c.l.b16 %v3279
    %v3423 = vunpack.c.h.b16 %v3279
    %v3424 = vunpack.c.l.b16 %v3280
    %v3425 = vunpack.c.h.b16 %v3280
    %v3426 = vunpack.c.l.b16 %v3281
    %v3427 = vunpack.c.h.b16 %v3281
    %v3428 = vunpack.c.l.b16 %v3282
    %v3429 = vunpack.c.h.b16 %v3282
    %v3430 = vunpack.c.l.b16 %v3283
    %v3431 = vunpack.c.h.b16 %v3283
    %v3432 = vunpack.c.l.b16 %v3284
    %v3433 = vunpack.c.h.b16 %v3284
    %v3434 = vunpack.c.l.b16 %v3285
    %v3435 = vunpack.c.h.b16 %v3285
    %v3436 = vunpack.c.l.b16 %v3286
    %v3437 = vunpack.c.h.b16 %v3286
    %v3438 = vunpack.c.l.b16 %v3287
    %v3439 = vunpack.c.h.b16 %v3287
    %v3440 = vunpack.c.l.b16 %v3288
    %v3441 = vunpack.c.h.b16 %v3288
    %v3442 = vunpack.c.l.b16 %v3289
    %v3443 = vunpack.c.h.b16 %v3289
    %v3444 = vunpack.c.l.b16 %v3290
    %v3445 = vunpack.c.h.b16 %v3290
    %v3446 = vunpack.c.l.b16 %v3291
    %v3447 = vunpack.c.h.b16 %v3291
    %v3448 = vunpack.c.l.b16 %v3292
    %v3449 = vunpack.c.h.b16 %v3292
    %v3450 = vunpack.c.l.b16 %v3293
    %v3451 = vunpack.c.h.b16 %v3293
    %v3452 = vunpack.c.l.b16 %v3294
    %v3453 = vunpack.c.h.b16 %v3294
    %v3454 = vunpack.c.l.b16 %v3295
    %v3455 = vunpack.c.h.b16 %v3295
    %v3456 = vunpack.c.l.b16 %v3296
    %v3457 = vunpack.c.h.b16 %v3296
    %v3458 = vunpack.c.l.b16 %v3297
    %v3459 = vunpack.c.h.b16 %v3297
    %v3460 = vunpack.c.l.b16 %v3298
    %v3461 = vunpack.c.h.b16 %v3298
    %v3462 = vunpack.c.l.b16 %v3299
    %v3463 = vunpack.c.h.b16 %v3299
    %v3464 = vunpack.c.l.b16 %v3300
    %v3465 = vunpack.c.h.b16 %v3300
    %v3466 = vunpack.c.l.b16 %v3301
    %v3467 = vunpack.c.h.b16 %v3301
    %v3468 = vunpack.c.l.b16 %v3302
    %v3469 = vunpack.c.h.b16 %v3302
    %v3470 = vunpack.c.l.b16 %v3303
    %v3471 = vunpack.c.h.b16 %v3303
    %v3472 = vunpack.c.l.b16 %v3304
    %v3473 = vunpack.c.h.b16 %v3304
    %v3474 = vunpack.c.l.b16 %v3305
    %v3475 = vunpack.c.h.b16 %v3305
    %v3476 = vunpack.c.l.b16 %v3306
    %v3477 = vunpack.c.h.b16 %v3306
    %v3478 = vunpack.c.l.b16 %v3307
    %v3479 = vunpack.c.h.b16 %v3307
    %v3480 = vunpack.c.l.b16 %v3308
    %v3481 = vunpack.c.h.b16 %v3308
    %v3482 = vunpack.c.l.b16 %v3309
    %v3483 = vunpack.c.h.b16 %v3309
    %v3484 = vunpack.c.l.b16 %v3310
    %v3485 = vunpack.c.h.b16 %v3310
    %v3486 = vunpack.c.l.b16 %v3311
    %v3487 = vunpack.c.h.b16 %v3311
    %v3488 = vunpack.c.l.b16 %v3312
    %v3489 = vunpack.c.h.b16 %v3312
    %v3490 = vunpack.c.l.b16 %v3313
    %v3491 = vunpack.c.h.b16 %v3313
    %v3492 = vunpack.c.l.b16 %v3314
    %v3493 = vunpack.c.h.b16 %v3314
    %v3494 = vunpack.c.l.b16 %v3315
    %v3495 = vunpack.c.h.b16 %v3315
    %v3496 = vunpack.c.l.b16 %v3316
    %v3497 = vunpack.c.h.b16 %v3316
    %v3498 = vunpack.c.l.b16 %v3317
    %v3499 = vunpack.c.h.b16 %v3317
    %v3500 = vunpack.c.l.b16 %v3318
    %v3501 = vunpack.c.h.b16 %v3318
    %v3502 = vunpack.c.l.b16 %v3319
    %v3503 = vunpack.c.h.b16 %v3319
    %v3504 = vunpack.c.l.b16 %v3320
    %v3505 = vunpack.c.h.b16 %v3320
    %v3506 = vunpack.c.l.b16 %v3321
    %v3507 = vunpack.c.h.b16 %v3321
    %v3508 = vunpack.c.l.b16 %v3322
    %v3509 = vunpack.c.h.b16 %v3322
    %v3510 = vunpack.c.l.b16 %v3323
    %v3511 = vunpack.c.h.b16 %v3323
    %v3512 = vunpack.c.l.b16 %v3324
    %v3513 = vunpack.c.h.b16 %v3324
    %v3514 = vunpack.c.l.b16 %v3325
    %v3515 = vunpack.c.h.b16 %v3325
    %v3516 = vunpack.c.l.b16 %v3326
    %v3517 = vunpack.c.h.b16 %v3326
    %v3518 = vunpack.c.l.b16 %v3327
    %v3519 = vunpack.c.h.b16 %v3327
    %v3520 = vunpack.c.l.b16 %v3328
    %v3521 = vunpack.c.h.b16 %v3328
    %v3522 = vunpack.c.l.b16 %v3329
    %v3523 = vunpack.c.h.b16 %v3329
    %v3524 = vunpack.c.l.b16 %v3330
    %v3525 = vunpack.c.h.b16 %v3330
    %v3526 = vunpack.c.l.b16 %v3331
    %v3527 = vunpack.c.h.b16 %v3331
    %v3528 = vunpack.c.l.b16 %v3332
    %v3529 = vunpack.c.h.b16 %v3332
    %v3530 = vunpack.c.l.b16 %v3333
    %v3531 = vunpack.c.h.b16 %v3333
    %v3532 = vunpack.c.l.b16 %v3334
    %v3533 = vunpack.c.h.b16 %v3334
    %v3534 = vunpack.c.l.b16 %v3335
    %v3535 = vunpack.c.h.b16 %v3335
    %v3536 = vunpack.c.l.b16 %v3336
    %v3537 = vunpack.c.h.b16 %v3336
    %v3538 = vunpack.c.l.b16 %v3337
    %v3539 = vunpack.c.h.b16 %v3337
    %v3540 = vunpack.c.l.b16 %v3338
    %v3541 = vunpack.c.h.b16 %v3338
    %v3542 = vunpack.c.l.b16 %v3339
    %v3543 = vunpack.c.h.b16 %v3339
    %v3544 = vpack.c.b16 %v3418, %v3416
    %v3545 = vpack.c.b16 %v3419, %v3417
    %v3546 = vpack.c.b16 %v3422, %v3420
    %v3547 = vpack.c.b16 %v3423, %v3421
    %v3548 = vpack.c.b16 %v3426, %v3424
    %v3549 = vpack.c.b16 %v3427, %v3425
    %v3550 = vpack.c.b16 %v3430, %v3428
    %v3551 = vpack.c.b16 %v3431, %v3429
    %v3552 = vpack.c.b16 %v3434, %v3432
    %v3553 = vpack.c.b16 %v3435, %v3433
    %v3554 = vpack.c.b16 %v3438, %v3436
    %v3555 = vpack.c.b16 %v3439, %v3437
    %v3556 = vpack.c.b16 %v3442, %v3440
    %v3557 = vpack.c.b16 %v3443, %v3441
    %v3558 = vpack.c.b16 %v3446, %v3444
    %v3559 = vpack.c.b16 %v3447, %v3445
    %v3560 = vpack.c.b16 %v3450, %v3448
    %v3561 = vpack.c.b16 %v3451, %v3449
    %v3562 = vpack.c.b16 %v3454, %v3452
    %v3563 = vpack.c.b16 %v3455, %v3453
    %v3564 = vpack.c.b16 %v3458, %v3456
    %v3565 = vpack.c.b16 %v3459, %v3457
    %v3566 = vpack.c.b16 %v3462, %v3460
    %v3567 = vpack.c.b16 %v3463, %v3461
    %v3568 = vpack.c.b16 %v3466, %v3464
    %v3569 = vpack.c.b16 %v3467, %v3465
    %v3570 = vpack.c.b16 %v3470, %v3468
    %v3571 = vpack.c.b16 %v3471, %v3469
    %v3572 = vpack.c.b16 %v3474, %v3472
    %v3573 = vpack.c.b16 %v3475, %v3473
    %v3574 = vpack.c.b16 %v3478, %v3476
    %v3575 = vpack.c.b16 %v3479, %v3477
    %v3576 = vpack.c.b16 %v3482, %v3480
    %v3577 = vpack.c.b16 %v3483, %v3481
    %v3578 = vpack.c.b16 %v3486, %v3484
    %v3579 = vpack.c.b16 %v3487, %v3485
    %v3580 = vpack.c.b16 %v3490, %v3488
    %v3581 = vpack.c.b16 %v3491, %v3489
    %v3582 = vpack.c.b16 %v3494, %v3492
    %v3583 = vpack.c.b16 %v3495, %v3493
    %v3584 = vpack.c.b16 %v3498, %v3496
    %v3585 = vpack.c.b16 %v3499, %v3497
    %v3586 = vpack.c.b16 %v3502, %v3500
    %v3587 = vpack.c.b16 %v3503, %v3501
    %v3588 = vpack.c.b16 %v3506, %v3504
    %v3589 = vpack.c.b16 %v3507, %v3505
    %v3590 = vpack.c.b16 %v3510, %v3508
    %v3591 = vpack.c.b16 %v3511, %v3509
    %v3592 = vpack.c.b16 %v3514, %v3512
    %v3593 = vpack.c.b16 %v3515, %v3513
    %v3594 = vpack.c.b16 %v3518, %v3516
    %v3595 = vpack.c.b16 %v3519, %v3517
    %v3596 = vpack.c.b16 %v3522, %v3520
    %v3597 = vpack.c.b16 %v3523, %v3521
    %v3598 = vpack.c.b16 %v3526, %v3524
    %v3599 = vpack.c.b16 %v3527, %v3525
    %v3600 = vpack.c.b16 %v3530, %v3528
    %v3601 = vpack.c.b16 %v3531, %v3529
    %v3602 = vpack.c.b16 %v3534, %v3532
    %v3603 = vpack.c.b16 %v3535, %v3533
    %v3604 = vpack.c.b16 %v3538, %v3536
    %v3605 = vpack.c.b16 %v3539, %v3537
    %v3606 = vpack.c.b16 %v3542, %v3540
    %v3607 = vpack.c.b16 %v3543, %v3541
    %3672 = vmatprep.subr.bf16.mxu0 %v3545
    %3673 = vmatpush1.bf16.msra.mxu0 %v3544
    %3674 = vmatprep.subr.bf16.mxu0 %v3547
    %3675 = vmatpush1.bf16.msra.mxu0 %v3546
    %3676 = vmatprep.subr.bf16.mxu0 %v3549
    %3677 = vmatpush1.bf16.msra.mxu0 %v3548
    %3678 = vmatprep.subr.bf16.mxu0 %v3551
    %3679 = vmatpush1.bf16.msra.mxu0 %v3550
    %3680 = vmatprep.subr.bf16.mxu0 %v3553
    %3681 = vmatpush1.bf16.msra.mxu0 %v3552
    %3682 = vmatprep.subr.bf16.mxu0 %v3555
    %3683 = vmatpush1.bf16.msra.mxu0 %v3554
    %3684 = vmatprep.subr.bf16.mxu0 %v3557
    %3685 = vmatpush1.bf16.msra.mxu0 %v3556
    %3686 = vmatprep.subr.bf16.mxu0 %v3559
    %3687 = vmatpush1.bf16.msra.mxu0 %v3558
    %3688 = vmatprep.subr.bf16.mxu0 %v3561
    %3689 = vmatpush1.bf16.msra.mxu0 %v3560
    %3690 = vmatprep.subr.bf16.mxu0 %v3563
    %3691 = vmatpush1.bf16.msra.mxu0 %v3562
    %3692 = vmatprep.subr.bf16.mxu0 %v3565
    %3693 = vmatpush1.bf16.msra.mxu0 %v3564
    %3694 = vmatprep.subr.bf16.mxu0 %v3567
    %3695 = vmatpush1.bf16.msra.mxu0 %v3566
    %3696 = vmatprep.subr.bf16.mxu0 %v3569
    %3697 = vmatpush1.bf16.msra.mxu0 %v3568
    %3698 = vmatprep.subr.bf16.mxu0 %v3571
    %3699 = vmatpush1.bf16.msra.mxu0 %v3570
    %3700 = vmatprep.subr.bf16.mxu0 %v3573
    %3701 = vmatpush1.bf16.msra.mxu0 %v3572
    %3702 = vmatprep.subr.bf16.mxu0 %v3575
    %3703 = vmatpush1.bf16.msra.mxu0 %v3574
    %3704 = vmatprep.mubr.bf16.mxu0 %v3213
    %3705 = vmatmul.mubr.bf16.gmra.mrb[0].mxu0 %v3212
    %v3706 = vpop.f32.mrb[0].mxu0
    %v3707 = vadd.f32 %v3345, %v3706
    %v3708 = vpop.f32.mrb[0].mxu0
    %v3709 = vadd.f32 %v3349, %v3708
    %v3710 = vpop.f32.mrb[0].mxu0
    %v3711 = vadd.f32 %v3345, %v3710
    %v3712 = vpop.f32.mrb[0].mxu0
    %v3713 = vadd.f32 %v3349, %v3712
    %3714 = vmatprep.mubr.bf16.mxu0 %v3217
    %3715 = vmatmul.mubr.bf16.gmra.mrb[0].mxu0 %v3216
    %v3716 = vpop.f32.mrb[0].mxu0
    %v3717 = vadd.f32 %v3345, %v3716
    %v3718 = vpop.f32.mrb[0].mxu0
    %v3719 = vadd.f32 %v3349, %v3718
    %v3720 = vpop.f32.mrb[0].mxu0
    %v3721 = vadd.f32 %v3345, %v3720
    %v3722 = vpop.f32.mrb[0].mxu0
    %v3723 = vadd.f32 %v3349, %v3722
    %3724 = vmatprep.mubr.bf16.mxu0 %v3221
    %3725 = vmatmul.mubr.bf16.gmra.mrb[0].mxu0 %v3220
    %v3726 = vpop.f32.mrb[0].mxu0
    %v3727 = vadd.f32 %v3345, %v3726
    %v3728 = vpop.f32.mrb[0].mxu0
    %v3729 = vadd.f32 %v3349, %v3728
    %v3730 = vpop.f32.mrb[0].mxu0
    %v3731 = vadd.f32 %v3345, %v3730
    %v3732 = vpop.f32.mrb[0].mxu0
    %v3733 = vadd.f32 %v3349, %v3732
    %3734 = vmatprep.mubr.bf16.mxu0 %v3225
    %3735 = vmatmul.mubr.bf16.gmra.mrb[0].mxu0 %v3224
    %v3736 = vpop.f32.mrb[0].mxu0
    %v3737 = vadd.f32 %v3345, %v3736
    %v3738 = vpop.f32.mrb[0].mxu0
    %v3739 = vadd.f32 %v3349, %v3738
    %v3740 = vpop.f32.mrb[0].mxu0
    %v3741 = vadd.f32 %v3345, %v3740
    %v3742 = vpop.f32.mrb[0].mxu0
    %v3743 = vadd.f32 %v3349, %v3742
    %3744 = vmatprep.mubr.bf16.mxu0 %v3229
    %3745 = vmatmul.mubr.bf16.gmra.mrb[0].mxu0 %v3228
    %v3746 = vpop.f32.mrb[0].mxu0
    %v3747 = vadd.f32 %v3345, %v3746
    %v3748 = vpop.f32.mrb[0].mxu0
    %v3749 = vadd.f32 %v3349, %v3748
    %v3750 = vpop.f32.mrb[0].mxu0
    %v3751 = vadd.f32 %v3345, %v3750
    %v3752 = vpop.f32.mrb[0].mxu0
    %v3753 = vadd.f32 %v3349, %v3752
    %3754 = vmatprep.mubr.bf16.mxu0 %v3233
    %3755 = vmatmul.mubr.bf16.gmra.mrb[0].mxu0 %v3232
    %v3756 = vpop.f32.mrb[0].mxu0
    %v3757 = vadd.f32 %v3345, %v3756
    %v3758 = vpop.f32.mrb[0].mxu0
    %v3759 = vadd.f32 %v3349, %v3758
    %v3760 = vpop.f32.mrb[0].mxu0
    %v3761 = vadd.f32 %v3345, %v3760
    %v3762 = vpop.f32.mrb[0].mxu0
    %v3763 = vadd.f32 %v3349, %v3762
    %3764 = vmatprep.mubr.bf16.mxu0 %v3237
    %3765 = vmatmul.mubr.bf16.gmra.mrb[0].mxu0 %v3236
    %v3766 = vpop.f32.mrb[0].mxu0
    %v3767 = vadd.f32 %v3345, %v3766
    %v3768 = vpop.f32.mrb[0].mxu0
    %v3769 = vadd.f32 %v3349, %v3768
    %v3770 = vpop.f32.mrb[0].mxu0
    %v3771 = vadd.f32 %v3345, %v3770
    %v3772 = vpop.f32.mrb[0].mxu0
    %v3773 = vadd.f32 %v3349, %v3772
    %3774 = vmatprep.mubr.bf16.mxu0 %v3241
    %3775 = vmatmul.mubr.bf16.gmra.mrb[0].mxu0 %v3240
    %v3776 = vpop.f32.mrb[0].mxu0
    %v3777 = vadd.f32 %v3345, %v3776
    %v3778 = vpop.f32.mrb[0].mxu0
    %v3779 = vadd.f32 %v3349, %v3778
    %v3780 = vpop.f32.mrb[0].mxu0
    %v3781 = vadd.f32 %v3345, %v3780
    %v3782 = vpop.f32.mrb[0].mxu0
    %v3783 = vadd.f32 %v3349, %v3782
    %3784 = vmatprep.mubr.bf16.mxu0 %v3245
    %3785 = vmatmul.mubr.bf16.gmra.mrb[0].mxu0 %v3244
    %v3786 = vpop.f32.mrb[0].mxu0
    %v3787 = vadd.f32 %v3345, %v3786
    %v3788 = vpop.f32.mrb[0].mxu0
    %v3789 = vadd.f32 %v3349, %v3788
    %v3790 = vpop.f32.mrb[0].mxu0
    %v3791 = vadd.f32 %v3345, %v3790
    %v3792 = vpop.f32.mrb[0].mxu0
    %v3793 = vadd.f32 %v3349, %v3792
    %3794 = vmatprep.mubr.bf16.mxu0 %v3249
    %3795 = vmatmul.mubr.bf16.gmra.mrb[0].mxu0 %v3248
    %v3796 = vpop.f32.mrb[0].mxu0
    %v3797 = vadd.f32 %v3345, %v3796
    %v3798 = vpop.f32.mrb[0].mxu0
    %v3799 = vadd.f32 %v3349, %v3798
    %v3800 = vpop.f32.mrb[0].mxu0
    %v3801 = vadd.f32 %v3345, %v3800
    %v3802 = vpop.f32.mrb[0].mxu0
    %v3803 = vadd.f32 %v3349, %v3802
    %3804 = vmatprep.mubr.bf16.mxu0 %v3253
    %3805 = vmatmul.mubr.bf16.gmra.mrb[0].mxu0 %v3252
    %v3806 = vpop.f32.mrb[0].mxu0
    %v3807 = vadd.f32 %v3345, %v3806
    %v3808 = vpop.f32.mrb[0].mxu0
    %v3809 = vadd.f32 %v3349, %v3808
    %v3810 = vpop.f32.mrb[0].mxu0
    %v3811 = vadd.f32 %v3345, %v3810
    %v3812 = vpop.f32.mrb[0].mxu0
    %v3813 = vadd.f32 %v3349, %v3812
    %3814 = vmatprep.mubr.bf16.mxu0 %v3257
    %3815 = vmatmul.mubr.bf16.gmra.mrb[0].mxu0 %v3256
    %v3816 = vpop.f32.mrb[0].mxu0
    %v3817 = vadd.f32 %v3345, %v3816
    %v3818 = vpop.f32.mrb[0].mxu0
    %v3819 = vadd.f32 %v3349, %v3818
    %v3820 = vpop.f32.mrb[0].mxu0
    %v3821 = vadd.f32 %v3345, %v3820
    %v3822 = vpop.f32.mrb[0].mxu0
    %v3823 = vadd.f32 %v3349, %v3822
    %3824 = vmatprep.mubr.bf16.mxu0 %v3261
    %3825 = vmatmul.mubr.bf16.gmra.mrb[0].mxu0 %v3260
    %v3826 = vpop.f32.mrb[0].mxu0
    %v3827 = vadd.f32 %v3345, %v3826
    %v3828 = vpop.f32.mrb[0].mxu0
    %v3829 = vadd.f32 %v3349, %v3828
    %v3830 = vpop.f32.mrb[0].mxu0
    %v3831 = vadd.f32 %v3345, %v3830
    %v3832 = vpop.f32.mrb[0].mxu0
    %v3833 = vadd.f32 %v3349, %v3832
    %3834 = vmatprep.mubr.bf16.mxu0 %v3265
    %3835 = vmatmul.mubr.bf16.gmra.mrb[0].mxu0 %v3264
    %v3836 = vpop.f32.mrb[0].mxu0
    %v3837 = vadd.f32 %v3345, %v3836
    %v3838 = vpop.f32.mrb[0].mxu0
    %v3839 = vadd.f32 %v3349, %v3838
    %v3840 = vpop.f32.mrb[0].mxu0
    %v3841 = vadd.f32 %v3345, %v3840
    %v3842 = vpop.f32.mrb[0].mxu0
    %v3843 = vadd.f32 %v3349, %v3842
    %3844 = vmatprep.mubr.bf16.mxu0 %v3269
    %3845 = vmatmul.mubr.bf16.gmra.mrb[0].mxu0 %v3268
    %v3846 = vpop.f32.mrb[0].mxu0
    %v3847 = vadd.f32 %v3345, %v3846
    %v3848 = vpop.f32.mrb[0].mxu0
    %v3849 = vadd.f32 %v3349, %v3848
    %v3850 = vpop.f32.mrb[0].mxu0
    %v3851 = vadd.f32 %v3345, %v3850
    %v3852 = vpop.f32.mrb[0].mxu0
    %v3853 = vadd.f32 %v3349, %v3852
    %3854 = vmatprep.mubr.bf16.mxu0 %v3273
    %3855 = vmatmul.mubr.bf16.gmra.mrb[0].mxu0 %v3272
    %v3856 = vpop.f32.mrb[0].mxu0
    %v3857 = vadd.f32 %v3345, %v3856
    %v3858 = vpop.f32.mrb[0].mxu0
    %v3859 = vadd.f32 %v3349, %v3858
    %v3860 = vpop.f32.mrb[0].mxu0
    %v3861 = vadd.f32 %v3345, %v3860
    %v3862 = vpop.f32.mrb[0].mxu0
    %v3863 = vadd.f32 %v3349, %v3862
    %3864 = vdwg.mxu0
    %3865 = vmatprep.subr.bf16.mxu0 %v3577
    %3866 = vmatpush1.bf16.msra.mxu0 %v3576
    %3867 = vmatprep.subr.bf16.mxu0 %v3579
    %3868 = vmatpush1.bf16.msra.mxu0 %v3578
    %3869 = vmatprep.subr.bf16.mxu0 %v3581
    %3870 = vmatpush1.bf16.msra.mxu0 %v3580
    %3871 = vmatprep.subr.bf16.mxu0 %v3583
    %3872 = vmatpush1.bf16.msra.mxu0 %v3582
    %3873 = vmatprep.subr.bf16.mxu0 %v3585
    %3874 = vmatpush1.bf16.msra.mxu0 %v3584
    %3875 = vmatprep.subr.bf16.mxu0 %v3587
    %3876 = vmatpush1.bf16.msra.mxu0 %v3586
    %3877 = vmatprep.subr.bf16.mxu0 %v3589
    %3878 = vmatpush1.bf16.msra.mxu0 %v3588
    %3879 = vmatprep.subr.bf16.mxu0 %v3591
    %3880 = vmatpush1.bf16.msra.mxu0 %v3590
    %3881 = vmatprep.subr.bf16.mxu0 %v3593
    %3882 = vmatpush1.bf16.msra.mxu0 %v3592
    %3883 = vmatprep.subr.bf16.mxu0 %v3595
    %3884 = vmatpush1.bf16.msra.mxu0 %v3594
    %3885 = vmatprep.subr.bf16.mxu0 %v3597
    %3886 = vmatpush1.bf16.msra.mxu0 %v3596
    %3887 = vmatprep.subr.bf16.mxu0 %v3599
    %3888 = vmatpush1.bf16.msra.mxu0 %v3598
    %3889 = vmatprep.subr.bf16.mxu0 %v3601
    %3890 = vmatpush1.bf16.msra.mxu0 %v3600
    %3891 = vmatprep.subr.bf16.mxu0 %v3603
    %3892 = vmatpush1.bf16.msra.mxu0 %v3602
    %3893 = vmatprep.subr.bf16.mxu0 %v3605
    %3894 = vmatpush1.bf16.msra.mxu0 %v3604
    %3895 = vmatprep.subr.bf16.mxu0 %v3607
    %3896 = vmatpush1.bf16.msra.mxu0 %v3606
    %3897 = vmatprep.mubr.bf16.mxu0 %v3215
    %3898 = vmatmul.mubr.bf16.gmra.mrb[0].mxu0 %v3214
    %v3899 = vpop.f32.mrb[0].mxu0
    %v3900 = vadd.f32 %v3707, %v3899
    %v3901 = vpop.f32.mrb[0].mxu0
    %v3902 = vadd.f32 %v3709, %v3901
    %v3903 = vpop.f32.mrb[0].mxu0
    %v3904 = vadd.f32 %v3711, %v3903
    %v3905 = vpop.f32.mrb[0].mxu0
    %v3906 = vadd.f32 %v3713, %v3905
    %3907 = vmatprep.mubr.bf16.mxu0 %v3219
    %3908 = vmatmul.mubr.bf16.gmra.mrb[0].mxu0 %v3218
    %v3909 = vpop.f32.mrb[0].mxu0
    %v3910 = vadd.f32 %v3717, %v3909
    %v3911 = vpop.f32.mrb[0].mxu0
    %v3912 = vadd.f32 %v3719, %v3911
    %v3913 = vpop.f32.mrb[0].mxu0
    %v3914 = vadd.f32 %v3721, %v3913
    %v3915 = vpop.f32.mrb[0].mxu0
    %v3916 = vadd.f32 %v3723, %v3915
    %3917 = vmatprep.mubr.bf16.mxu0 %v3223
    %3918 = vmatmul.mubr.bf16.gmra.mrb[0].mxu0 %v3222
    %v3919 = vpop.f32.mrb[0].mxu0
    %v3920 = vadd.f32 %v3727, %v3919
    %v3921 = vpop.f32.mrb[0].mxu0
    %v3922 = vadd.f32 %v3729, %v3921
    %v3923 = vpop.f32.mrb[0].mxu0
    %v3924 = vadd.f32 %v3731, %v3923
    %v3925 = vpop.f32.mrb[0].mxu0
    %v3926 = vadd.f32 %v3733, %v3925
    %3927 = vmatprep.mubr.bf16.mxu0 %v3227
    %3928 = vmatmul.mubr.bf16.gmra.mrb[0].mxu0 %v3226
    %v3929 = vpop.f32.mrb[0].mxu0
    %v3930 = vadd.f32 %v3737, %v3929
    %v3931 = vpop.f32.mrb[0].mxu0
    %v3932 = vadd.f32 %v3739, %v3931
    %v3933 = vpop.f32.mrb[0].mxu0
    %v3934 = vadd.f32 %v3741, %v3933
    %v3935 = vpop.f32.mrb[0].mxu0
    %v3936 = vadd.f32 %v3743, %v3935
    %3937 = vmatprep.mubr.bf16.mxu0 %v3231
    %3938 = vmatmul.mubr.bf16.gmra.mrb[0].mxu0 %v3230
    %v3939 = vpop.f32.mrb[0].mxu0
    %v3940 = vadd.f32 %v3747, %v3939
    %v3941 = vpop.f32.mrb[0].mxu0
    %v3942 = vadd.f32 %v3749, %v3941
    %v3943 = vpop.f32.mrb[0].mxu0
    %v3944 = vadd.f32 %v3751, %v3943
    %v3945 = vpop.f32.mrb[0].mxu0
    %v3946 = vadd.f32 %v3753, %v3945
    %3947 = vmatprep.mubr.bf16.mxu0 %v3235
    %3948 = vmatmul.mubr.bf16.gmra.mrb[0].mxu0 %v3234
    %v3949 = vpop.f32.mrb[0].mxu0
    %v3950 = vadd.f32 %v3757, %v3949
    %v3951 = vpop.f32.mrb[0].mxu0
    %v3952 = vadd.f32 %v3759, %v3951
    %v3953 = vpop.f32.mrb[0].mxu0
    %v3954 = vadd.f32 %v3761, %v3953
    %v3955 = vpop.f32.mrb[0].mxu0
    %v3956 = vadd.f32 %v3763, %v3955
    %3957 = vmatprep.mubr.bf16.mxu0 %v3239
    %3958 = vmatmul.mubr.bf16.gmra.mrb[0].mxu0 %v3238
    %v3959 = vpop.f32.mrb[0].mxu0
    %v3960 = vadd.f32 %v3767, %v3959
    %v3961 = vpop.f32.mrb[0].mxu0
    %v3962 = vadd.f32 %v3769, %v3961
    %v3963 = vpop.f32.mrb[0].mxu0
    %v3964 = vadd.f32 %v3771, %v3963
    %v3965 = vpop.f32.mrb[0].mxu0
    %v3966 = vadd.f32 %v3773, %v3965
    %3967 = vmatprep.mubr.bf16.mxu0 %v3243
    %3968 = vmatmul.mubr.bf16.gmra.mrb[0].mxu0 %v3242
    %v3969 = vpop.f32.mrb[0].mxu0
    %v3970 = vadd.f32 %v3777, %v3969
    %v3971 = vpop.f32.mrb[0].mxu0
    %v3972 = vadd.f32 %v3779, %v3971
    %v3973 = vpop.f32.mrb[0].mxu0
    %v3974 = vadd.f32 %v3781, %v3973
    %v3975 = vpop.f32.mrb[0].mxu0
    %v3976 = vadd.f32 %v3783, %v3975
    %3977 = vmatprep.mubr.bf16.mxu0 %v3247
    %3978 = vmatmul.mubr.bf16.gmra.mrb[0].mxu0 %v3246
    %v3979 = vpop.f32.mrb[0].mxu0
    %v3980 = vadd.f32 %v3787, %v3979
    %v3981 = vpop.f32.mrb[0].mxu0
    %v3982 = vadd.f32 %v3789, %v3981
    %v3983 = vpop.f32.mrb[0].mxu0
    %v3984 = vadd.f32 %v3791, %v3983
    %v3985 = vpop.f32.mrb[0].mxu0
    %v3986 = vadd.f32 %v3793, %v3985
    %3987 = vmatprep.mubr.bf16.mxu0 %v3251
    %3988 = vmatmul.mubr.bf16.gmra.mrb[0].mxu0 %v3250
    %v3989 = vpop.f32.mrb[0].mxu0
    %v3990 = vadd.f32 %v3797, %v3989
    %v3991 = vpop.f32.mrb[0].mxu0
    %v3992 = vadd.f32 %v3799, %v3991
    %v3993 = vpop.f32.mrb[0].mxu0
    %v3994 = vadd.f32 %v3801, %v3993
    %v3995 = vpop.f32.mrb[0].mxu0
    %v3996 = vadd.f32 %v3803, %v3995
    %3997 = vmatprep.mubr.bf16.mxu0 %v3255
    %3998 = vmatmul.mubr.bf16.gmra.mrb[0].mxu0 %v3254
    %v3999 = vpop.f32.mrb[0].mxu0
    %v4000 = vadd.f32 %v3807, %v3999
    %v4001 = vpop.f32.mrb[0].mxu0
    %v4002 = vadd.f32 %v3809, %v4001
    %v4003 = vpop.f32.mrb[0].mxu0
    %v4004 = vadd.f32 %v3811, %v4003
    %v4005 = vpop.f32.mrb[0].mxu0
    %v4006 = vadd.f32 %v3813, %v4005
    %4007 = vmatprep.mubr.bf16.mxu0 %v3259
    %4008 = vmatmul.mubr.bf16.gmra.mrb[0].mxu0 %v3258
    %v4009 = vpop.f32.mrb[0].mxu0
    %v4010 = vadd.f32 %v3817, %v4009
    %v4011 = vpop.f32.mrb[0].mxu0
    %v4012 = vadd.f32 %v3819, %v4011
    %v4013 = vpop.f32.mrb[0].mxu0
    %v4014 = vadd.f32 %v3821, %v4013
    %v4015 = vpop.f32.mrb[0].mxu0
    %v4016 = vadd.f32 %v3823, %v4015
    %4017 = vmatprep.mubr.bf16.mxu0 %v3263
    %4018 = vmatmul.mubr.bf16.gmra.mrb[0].mxu0 %v3262
    %v4019 = vpop.f32.mrb[0].mxu0
    %v4020 = vadd.f32 %v3827, %v4019
    %v4021 = vpop.f32.mrb[0].mxu0
    %v4022 = vadd.f32 %v3829, %v4021
    %v4023 = vpop.f32.mrb[0].mxu0
    %v4024 = vadd.f32 %v3831, %v4023
    %v4025 = vpop.f32.mrb[0].mxu0
    %v4026 = vadd.f32 %v3833, %v4025
    %4027 = vmatprep.mubr.bf16.mxu0 %v3267
    %4028 = vmatmul.mubr.bf16.gmra.mrb[0].mxu0 %v3266
    %v4029 = vpop.f32.mrb[0].mxu0
    %v4030 = vadd.f32 %v3837, %v4029
    %v4031 = vpop.f32.mrb[0].mxu0
    %v4032 = vadd.f32 %v3839, %v4031
    %v4033 = vpop.f32.mrb[0].mxu0
    %v4034 = vadd.f32 %v3841, %v4033
    %v4035 = vpop.f32.mrb[0].mxu0
    %v4036 = vadd.f32 %v3843, %v4035
    %4037 = vmatprep.mubr.bf16.mxu0 %v3271
    %4038 = vmatmul.mubr.bf16.gmra.mrb[0].mxu0 %v3270
    %v4039 = vpop.f32.mrb[0].mxu0
    %v4040 = vadd.f32 %v3847, %v4039
    %v4041 = vpop.f32.mrb[0].mxu0
    %v4042 = vadd.f32 %v3849, %v4041
    %v4043 = vpop.f32.mrb[0].mxu0
    %v4044 = vadd.f32 %v3851, %v4043
    %v4045 = vpop.f32.mrb[0].mxu0
    %v4046 = vadd.f32 %v3853, %v4045
    %4047 = vmatprep.mubr.bf16.mxu0 %v3275
    %4048 = vmatmul.mubr.bf16.gmra.mrb[0].mxu0 %v3274
    %v4049 = vpop.f32.mrb[0].mxu0
    %v4050 = vadd.f32 %v3857, %v4049
    %v4051 = vpop.f32.mrb[0].mxu0
    %v4052 = vadd.f32 %v3859, %v4051
    %v4053 = vpop.f32.mrb[0].mxu0
    %v4054 = vadd.f32 %v3861, %v4053
    %v4055 = vpop.f32.mrb[0].mxu0
    %v4056 = vadd.f32 %v3863, %v4055
    %4057 = vdwg.mxu0
    %v4058 = vmax.f32 %v3900, %v3904
    %v4059 = vmax.f32 %v4058, %v3910
    %v4060 = vmax.f32 %v4059, %v3914
    %v4061 = vrot.slane %v4060, 4
    %v4062 = vmax.f32 %v4060, %v4061
    %v4063 = vrot.slane %v4062, 2
    %v4064 = vmax.f32 %v4062, %v4063
    %v4065 = vrot.slane %v4064, 1
    %v4066 = vmax.f32 %v4064, %v4065
    %v4067 = vmax.f32 %v3902, %v3906
    %v4068 = vmax.f32 %v4067, %v3912
    %v4069 = vmax.f32 %v4068, %v3916
    %v4070 = vrot.slane %v4069, 4
    %v4071 = vmax.f32 %v4069, %v4070
    %v4072 = vrot.slane %v4071, 2
    %v4073 = vmax.f32 %v4071, %v4072
    %v4074 = vrot.slane %v4073, 1
    %v4075 = vmax.f32 %v4073, %v4074
    %v4076 = vmax.f32 %v3920, %v3924
    %v4077 = vmax.f32 %v4076, %v3930
    %v4078 = vmax.f32 %v4077, %v3934
    %v4079 = vrot.slane %v4078, 4
    %v4080 = vmax.f32 %v4078, %v4079
    %v4081 = vrot.slane %v4080, 2
    %v4082 = vmax.f32 %v4080, %v4081
    %v4083 = vrot.slane %v4082, 1
    %v4084 = vmax.f32 %v4082, %v4083
    %v4085 = vmax.f32 %v3922, %v3926
    %v4086 = vmax.f32 %v4085, %v3932
    %v4087 = vmax.f32 %v4086, %v3936
    %v4088 = vrot.slane %v4087, 4
    %v4089 = vmax.f32 %v4087, %v4088
    %v4090 = vrot.slane %v4089, 2
    %v4091 = vmax.f32 %v4089, %v4090
    %v4092 = vrot.slane %v4091, 1
    %v4093 = vmax.f32 %v4091, %v4092
    %v4094 = vmax.f32 %v3940, %v3944
    %v4095 = vmax.f32 %v4094, %v3950
    %v4096 = vmax.f32 %v4095, %v3954
    %v4097 = vrot.slane %v4096, 4
    %v4098 = vmax.f32 %v4096, %v4097
    %v4099 = vrot.slane %v4098, 2
    %v4100 = vmax.f32 %v4098, %v4099
    %v4101 = vrot.slane %v4100, 1
    %v4102 = vmax.f32 %v4100, %v4101
    %v4103 = vmax.f32 %v3942, %v3946
    %v4104 = vmax.f32 %v4103, %v3952
    %v4105 = vmax.f32 %v4104, %v3956
    %v4106 = vrot.slane %v4105, 4
    %v4107 = vmax.f32 %v4105, %v4106
    %v4108 = vrot.slane %v4107, 2
    %v4109 = vmax.f32 %v4107, %v4108
    %v4110 = vrot.slane %v4109, 1
    %v4111 = vmax.f32 %v4109, %v4110
    %v4112 = vmax.f32 %v3960, %v3964
    %v4113 = vmax.f32 %v4112, %v3970
    %v4114 = vmax.f32 %v4113, %v3974
    %v4115 = vrot.slane %v4114, 4
    %v4116 = vmax.f32 %v4114, %v4115
    %v4117 = vrot.slane %v4116, 2
    %v4118 = vmax.f32 %v4116, %v4117
    %v4119 = vrot.slane %v4118, 1
    %v4120 = vmax.f32 %v4118, %v4119
    %v4121 = vmax.f32 %v3962, %v3966
    %v4122 = vmax.f32 %v4121, %v3972
    %v4123 = vmax.f32 %v4122, %v3976
    %v4124 = vrot.slane %v4123, 4
    %v4125 = vmax.f32 %v4123, %v4124
    %v4126 = vrot.slane %v4125, 2
    %v4127 = vmax.f32 %v4125, %v4126
    %v4128 = vrot.slane %v4127, 1
    %v4129 = vmax.f32 %v4127, %v4128
    %v4130 = vmax.f32 %v3980, %v3984
    %v4131 = vmax.f32 %v4130, %v3990
    %v4132 = vmax.f32 %v4131, %v3994
    %v4133 = vrot.slane %v4132, 4
    %v4134 = vmax.f32 %v4132, %v4133
    %v4135 = vrot.slane %v4134, 2
    %v4136 = vmax.f32 %v4134, %v4135
    %v4137 = vrot.slane %v4136, 1
    %v4138 = vmax.f32 %v4136, %v4137
    %v4139 = vmax.f32 %v3982, %v3986
    %v4140 = vmax.f32 %v4139, %v3992
    %v4141 = vmax.f32 %v4140, %v3996
    %v4142 = vrot.slane %v4141, 4
    %v4143 = vmax.f32 %v4141, %v4142
    %v4144 = vrot.slane %v4143, 2
    %v4145 = vmax.f32 %v4143, %v4144
    %v4146 = vrot.slane %v4145, 1
    %v4147 = vmax.f32 %v4145, %v4146
    %v4148 = vmax.f32 %v4000, %v4004
    %v4149 = vmax.f32 %v4148, %v4010
    %v4150 = vmax.f32 %v4149, %v4014
    %v4151 = vrot.slane %v4150, 4
    %v4152 = vmax.f32 %v4150, %v4151
    %v4153 = vrot.slane %v4152, 2
    %v4154 = vmax.f32 %v4152, %v4153
    %v4155 = vrot.slane %v4154, 1
    %v4156 = vmax.f32 %v4154, %v4155
    %v4157 = vmax.f32 %v4002, %v4006
    %v4158 = vmax.f32 %v4157, %v4012
    %v4159 = vmax.f32 %v4158, %v4016
    %v4160 = vrot.slane %v4159, 4
    %v4161 = vmax.f32 %v4159, %v4160
    %v4162 = vrot.slane %v4161, 2
    %v4163 = vmax.f32 %v4161, %v4162
    %v4164 = vrot.slane %v4163, 1
    %v4165 = vmax.f32 %v4163, %v4164
    %v4166 = vmax.f32 %v4020, %v4024
    %v4167 = vmax.f32 %v4166, %v4030
    %v4168 = vmax.f32 %v4167, %v4034
    %v4169 = vrot.slane %v4168, 4
    %v4170 = vmax.f32 %v4168, %v4169
    %v4171 = vrot.slane %v4170, 2
    %v4172 = vmax.f32 %v4170, %v4171
    %v4173 = vrot.slane %v4172, 1
    %v4174 = vmax.f32 %v4172, %v4173
    %v4175 = vmax.f32 %v4022, %v4026
    %v4176 = vmax.f32 %v4175, %v4032
    %v4177 = vmax.f32 %v4176, %v4036
    %v4178 = vrot.slane %v4177, 4
    %v4179 = vmax.f32 %v4177, %v4178
    %v4180 = vrot.slane %v4179, 2
    %v4181 = vmax.f32 %v4179, %v4180
    %v4182 = vrot.slane %v4181, 1
    %v4183 = vmax.f32 %v4181, %v4182
    %v4184 = vmax.f32 %v4040, %v4044
    %v4185 = vmax.f32 %v4184, %v4050
    %v4186 = vmax.f32 %v4185, %v4054
    %v4187 = vrot.slane %v4186, 4
    %v4188 = vmax.f32 %v4186, %v4187
    %v4189 = vrot.slane %v4188, 2
    %v4190 = vmax.f32 %v4188, %v4189
    %v4191 = vrot.slane %v4190, 1
    %v4192 = vmax.f32 %v4190, %v4191
    %v4193 = vmax.f32 %v4042, %v4046
    %v4194 = vmax.f32 %v4193, %v4052
    %v4195 = vmax.f32 %v4194, %v4056
    %v4196 = vrot.slane %v4195, 4
    %v4197 = vmax.f32 %v4195, %v4196
    %v4198 = vrot.slane %v4197, 2
    %v4199 = vmax.f32 %v4197, %v4198
    %v4200 = vrot.slane %v4199, 1
    %v4201 = vmax.f32 %v4199, %v4200
    %v4218 = vsel %vm1345, %v4084, %v4066
    %v4219 = vsel %vm1347, %v4102, %v4218
    %v4220 = vsel %vm1349, %v4120, %v4219
    %v4221 = vsel %vm1351, %v4138, %v4220
    %v4222 = vsel %vm1353, %v4156, %v4221
    %v4223 = vsel %vm1355, %v4174, %v4222
    %v4224 = vsel %vm1357, %v4192, %v4223
    %v4225 = vsel %vm1345, %v4093, %v4075
    %v4226 = vsel %vm1347, %v4111, %v4225
    %v4227 = vsel %vm1349, %v4129, %v4226
    %v4228 = vsel %vm1351, %v4147, %v4227
    %v4229 = vsel %vm1353, %v4165, %v4228
    %v4230 = vsel %vm1355, %v4183, %v4229
    %v4231 = vsel %vm1357, %v4201, %v4230
    %4234 = vst [vmem:[#allocation8] sm:$0xff] %v4224
    %4235 = vst [vmem:[#allocation8 + $0x8] sm:$0xff] %v4231
    // Predicated region
    $region54: #{tpu_custom_call.1} parent=1 // pred_check
      _
    $region55: #{tpu_custom_call.1} parent=1 // pred_check_branch
      %4237 = sbr.rel (0) target = $region57
    $region56: #{tpu_custom_call.1} parent=1 // pred_region
      %s4239 = ssub.s32 256, 256
      %4240 = vsyncadd [#allocation4], %s4239
      %s4242 = sshll.u32 [#allocation8], 4
      %s4243 = int_to_ptr.vmem [resolvable:$true] %s4242
      %4245 = dma.vmem_to_hbm [thread:$0]  %s4243, 256, %s10, [#allocation4]
    $region57: #{tpu_custom_call.1} parent=1 // pred_fallthru
      _
    // Predicated region
    $region58: #{tpu_custom_call.1} parent=1 // pred_check
      _
    $region59: #{tpu_custom_call.1} parent=1 // pred_check_branch
      %4247 = sbr.rel (0) target = $region61
    $region60: #{tpu_custom_call.1} parent=1 // pred_region
      %4248 = dma.done [#allocation4], 256
    $region61: #{tpu_custom_call.1} parent=1 // pred_fallthru
      _
    %4249 = vsyncpa [#allocation3], 1
    %4250 = vsyncpa [#allocation6], 1
    %4251 = vsyncpa [#allocation4], 1

</llo_original>
